<compile_context>
chip_gen: v6e
topology: v6e:2x2x1
jax: 0.10.0
libtpu: 0.0.40
codegen_flags: <defaults>
</compile_context>

<pallas_src>
import jax
import jax.numpy as jnp
from jax import lax
from jax.experimental import pallas as pl
from jax.experimental.pallas import tpu as pltpu

H, W = 105, 8            # fixed by the module (105 * 8 fc output)
HW = H * W               # 840, flat pixel index p = h*W + w
C_MID = 64               # conv1 output channels
EMB_DIM = 100            # nn.Embedding(n_classes, 100)
EPS = 1e-5
PAD = W + 1              # max |flat shift| of a 3x3 tap = W + 1 = 9
# flat lane shift of tap (dh, dw): source pixel index = p + (dh-1)*W + (dw-1)
SHIFTS = tuple((dh - 1) * W + (dw - 1) for dh in range(3) for dw in range(3))


def _tap_masks():
    """(9, HW) f32 validity mask per 3x3 tap (zero-padding boundary)."""
    p = jnp.arange(HW)
    hh = p // W
    ww = p % W
    rows = []
    for dh in range(3):
        for dw in range(3):
            ok = ((hh + dh - 1 >= 0) & (hh + dh - 1 < H)
                  & (ww + dw - 1 >= 0) & (ww + dw - 1 < W))
            rows.append(ok.astype(jnp.float32))
    return jnp.stack(rows, axis=0)


# ----------------------------------------------------------------------------
# Fused kernel: FC x2 + conv1 per batch element, then (on the last batch
# element) BatchNorm with batch statistics + ReLU + conv2 for the whole batch.
# Grid = (B,) and MUST be sequential ("arbitrary"): act_ref accumulates across
# steps and the output is written only on the last step.
# ----------------------------------------------------------------------------
def _fused_generator_kernel(lab_ref, noise_ref, emb_ref, wn_ref, bnb_ref,
                            we_ref, beb_ref, w1_ref, b1_ref, gamma_ref,
                            beta_ref, w2_ref, b2_ref, mask_ref,
                            out_ref, act_ref):
    del lab_ref  # labels are only consumed by the embedding index_map
    b = pl.program_id(0)
    n_b = pl.num_programs(0)

    # ---- fc_noise / fc_word_embedding: two (1, HW) channel rows (MXU) ----
    n_row = jnp.dot(noise_ref[0], wn_ref[...],
                    preferred_element_type=jnp.float32) + bnb_ref[...]
    e_row = jnp.dot(emb_ref[0], we_ref[...],
                    preferred_element_type=jnp.float32) + beb_ref[...]
    x = jnp.concatenate([n_row, e_row], axis=0)              # (2, HW)

    # ---- conv1 (2 -> 64, 3x3, pad 1) as one im2col matmul ----
    # Lane-pad so every tap is a static lane slice; the per-tap mask zeroes
    # positions whose source pixel falls outside the 105x8 frame.
    zpad2 = jnp.zeros((2, PAD), jnp.float32)
    xp = jnp.concatenate([zpad2, x, zpad2], axis=1)          # (2, HW + 2*PAD)
    rows = []
    for t, s in enumerate(SHIFTS):
        shifted = xp[:, PAD + s: PAD + s + HW]               # x[:, p + s]
        rows.append(shifted * mask_ref[t:t + 1, :])
    patches = jnp.concatenate(rows, axis=0)                  # (18, HW)
    hid = jnp.dot(w1_ref[...], patches,
                  preferred_element_type=jnp.float32) + b1_ref[...]  # (64, HW)
    act_ref[pl.ds(b, 1)] = hid[None]                         # keep in VMEM

    # ---- last step: BatchNorm (batch stats) + ReLU + conv2 (64 -> 1) ----
    @pl.when(b == n_b - 1)
    def _():
        a = act_ref[...]                                     # (B, 64, HW)
        n_batch = a.shape[0]
        cnt = float(n_batch * HW)
        mean = jnp.sum(jnp.sum(a, axis=2, keepdims=True),
                       axis=0, keepdims=True) / cnt          # (1, 64, 1)
        d = a - mean
        var = jnp.sum(jnp.sum(d * d, axis=2, keepdims=True),
                      axis=0, keepdims=True) / cnt           # biased, 2-pass
        inv = 1.0 / jnp.sqrt(var + EPS)
        scale = gamma_ref[...][None] * inv                   # (1, 64, 1)
        shift = beta_ref[...][None] - mean * scale
        y = jnp.maximum(a * scale + shift, 0.0)              # (B, 64, HW)

        zpad9 = jnp.zeros((9, PAD), jnp.float32)
        for i in range(n_batch):                             # static B
            # per-tap channel contraction first (MXU), then masked lane shift
            z = jnp.dot(w2_ref[...], y[i],
                        preferred_element_type=jnp.float32)  # (9, HW)
            zp = jnp.concatenate([zpad9, z, zpad9], axis=1)  # (9, HW + 2*PAD)
            o = jnp.zeros((1, HW), jnp.float32)
            for t, s in enumerate(SHIFTS):
                o = o + mask_ref[t:t + 1, :] * zp[t:t + 1, PAD + s: PAD + s + HW]
            out_ref[i] = o + b2_ref[...]


# ----------------------------------------------------------------------------
# Wrapper: packs weights into kernel-friendly layouts and runs the fused call.
# ----------------------------------------------------------------------------
def generator_forward(params, noise, labels):
    B, nd = noise.shape
    n_classes = params["emb_table"].shape[0]

    noise3 = noise.reshape(B, 1, nd)
    emb3 = params["emb_table"].reshape(n_classes, 1, EMB_DIM)
    wn = params["wn"]
    bnb = params["bn"].reshape(1, HW)
    we = params["we"]
    beb = params["be"].reshape(1, HW)
    # conv1 weights as [co, (dh*3+dw)*2 + ci] to match im2col row order
    w1m = jnp.transpose(params["w1"], (0, 2, 3, 1)).reshape(C_MID, 18)
    b1c = params["b1"].reshape(C_MID, 1)
    gam = params["gamma"].reshape(C_MID, 1)
    bet = params["beta"].reshape(C_MID, 1)
    # conv2 weights as [dh*3+dw, ci]
    w2m = jnp.transpose(params["w2"][0], (1, 2, 0)).reshape(9, C_MID)
    b2c = params["b2"].reshape(1, 1)
    maskm = _tap_masks()

    out_flat = pl.pallas_call(
        _fused_generator_kernel,
        out_shape=jax.ShapeDtypeStruct((B, 1, HW), jnp.float32),
        grid_spec=pltpu.PrefetchScalarGridSpec(
            num_scalar_prefetch=1,                 # class labels (SMEM)
            grid=(B,),
            in_specs=[
                pl.BlockSpec((1, 1, nd), lambda b, lab: (b, 0, 0)),
                # embedding lookup: DMA only row lab[b] of the table
                pl.BlockSpec((1, 1, EMB_DIM), lambda b, lab: (lab[b], 0, 0)),
                pl.BlockSpec((nd, HW), lambda b, lab: (0, 0)),
                pl.BlockSpec((1, HW), lambda b, lab: (0, 0)),
                pl.BlockSpec((EMB_DIM, HW), lambda b, lab: (0, 0)),
                pl.BlockSpec((1, HW), lambda b, lab: (0, 0)),
                pl.BlockSpec((C_MID, 18), lambda b, lab: (0, 0)),
                pl.BlockSpec((C_MID, 1), lambda b, lab: (0, 0)),
                pl.BlockSpec((C_MID, 1), lambda b, lab: (0, 0)),
                pl.BlockSpec((C_MID, 1), lambda b, lab: (0, 0)),
                pl.BlockSpec((9, C_MID), lambda b, lab: (0, 0)),
                pl.BlockSpec((1, 1), lambda b, lab: (0, 0)),
                pl.BlockSpec((9, HW), lambda b, lab: (0, 0)),
            ],
            out_specs=pl.BlockSpec((B, 1, HW), lambda b, lab: (0, 0, 0)),
            scratch_shapes=[pltpu.VMEM((B, C_MID, HW), jnp.float32)],
        ),
        compiler_params=pltpu.CompilerParams(
            # batch axis must be sequential: resident act scratch + finalize
            dimension_semantics=("arbitrary",),
        ),
    )(labels.astype(jnp.int32), noise3, emb3, wn, bnb, we, beb,
      w1m, b1c, gam, bet, w2m, b2c, maskm)

    return out_flat.reshape(B, 1, H, W)


# ----------------------------------------------------------------------------
# Deterministic parameter init (shapes from the module __init__).
# ----------------------------------------------------------------------------
def init_params(key, noise_dim, n_classes):
    ks = jax.random.split(key, 9)
    emb_table = jax.random.normal(ks[0], (n_classes, EMB_DIM), jnp.float32)
    wn = jax.random.normal(ks[1], (noise_dim, HW), jnp.float32) * 0.05
    bn = jax.random.normal(ks[2], (HW,), jnp.float32) * 0.05
    we = jax.random.normal(ks[3], (EMB_DIM, HW), jnp.float32) * 0.05
    be = jax.random.normal(ks[4], (HW,), jnp.float32) * 0.05
    w1 = jax.random.normal(ks[5], (C_MID, 2, 3, 3), jnp.float32) * 0.1
    b1 = jax.random.normal(ks[6], (C_MID,), jnp.float32) * 0.1
    w2 = jax.random.normal(ks[7], (1, C_MID, 3, 3), jnp.float32) * 0.1
    b2 = jax.random.normal(ks[8], (1,), jnp.float32) * 0.1
    gamma = jnp.linspace(0.5, 1.5, C_MID, dtype=jnp.float32)
    beta = jnp.linspace(-0.1, 0.1, C_MID, dtype=jnp.float32)
    return dict(emb_table=emb_table, wn=wn, bn=bn, we=we, be=be,
                w1=w1, b1=b1, w2=w2, b2=b2, gamma=gamma, beta=beta)


# ----------------------------------------------------------------------------
# Pure-JAX reference (correctness check).  Training-mode BatchNorm (batch
# stats, biased variance).  HIGHEST precision so both paths are ~f32 exact.
# ----------------------------------------------------------------------------
def reference_forward(params, noise, labels):
    B = noise.shape[0]
    hp = lax.Precision.HIGHEST
    emb = params["emb_table"][labels]                                 # (B,100)
    n = jnp.dot(noise, params["wn"], precision=hp) + params["bn"]
    e = jnp.dot(emb, params["we"], precision=hp) + params["be"]
    x = jnp.concatenate([n.reshape(B, 1, H, W), e.reshape(B, 1, H, W)], axis=1)
    z = lax.conv_general_dilated(x, params["w1"], (1, 1), "SAME",
                                 dimension_numbers=("NCHW", "OIHW", "NCHW"),
                                 precision=hp)
    z = z + params["b1"][None, :, None, None]
    mean = z.mean(axis=(0, 2, 3))
    var = jnp.mean((z - mean[None, :, None, None]) ** 2, axis=(0, 2, 3))
    zn = (z - mean[None, :, None, None]) / jnp.sqrt(var + EPS)[None, :, None, None]
    zn = zn * params["gamma"][None, :, None, None] + params["beta"][None, :, None, None]
    zn = jnp.maximum(zn, 0.0)
    out = lax.conv_general_dilated(zn, params["w2"], (1, 1), "SAME",
                                   dimension_numbers=("NCHW", "OIHW", "NCHW"),
                                   precision=hp)
    return out + params["b2"][None, :, None, None]


if __name__ == "__main__":
    key = jax.random.PRNGKey(0)
    k_noise, k_lab, k_params = jax.random.split(key, 3)

    B = 2
    NOISE_DIM = 100
    N_CLASSES = 5860                      # module default
    noise = jax.random.normal(k_noise, (B, NOISE_DIM), jnp.float32)
    labels = jax.random.randint(k_lab, (B,), 0, N_CLASSES, dtype=jnp.int32)
    params = init_params(k_params, NOISE_DIM, N_CLASSES)

    out = generator_forward(params, noise, labels)
    out = jax.block_until_ready(out)
    assert out.shape == (B, 1, H, W), out.shape

    ref = jax.block_until_ready(reference_forward(params, noise, labels))
    max_err = float(jnp.max(jnp.abs(out - ref)))
    assert max_err < 2e-3, f"max abs err too large: {max_err}"

    # TODO(synk): BatchNorm running-mean/var buffer updates (training-side
    # state) are not emitted; the forward output itself is fully reproduced.
    print("KERNEL_OK")
</pallas_src>

<mosaic_0001>
module attributes {stable_mosaic.version = 11 : i64} {
  func.func @_fused_generator_kernel(%arg0: i32, %arg1: memref<2xi32, #tpu.memory_space<smem>>, %arg2: memref<1x1x100xf32, #tpu.memory_space<vmem>>, %arg3: memref<1x1x100xf32, #tpu.memory_space<vmem>>, %arg4: memref<100x840xf32, #tpu.memory_space<vmem>>, %arg5: memref<1x840xf32, #tpu.memory_space<vmem>>, %arg6: memref<100x840xf32, #tpu.memory_space<vmem>>, %arg7: memref<1x840xf32, #tpu.memory_space<vmem>>, %arg8: memref<64x18xf32, #tpu.memory_space<vmem>>, %arg9: memref<64x1xf32, #tpu.memory_space<vmem>>, %arg10: memref<64x1xf32, #tpu.memory_space<vmem>>, %arg11: memref<64x1xf32, #tpu.memory_space<vmem>>, %arg12: memref<9x64xf32, #tpu.memory_space<vmem>>, %arg13: memref<1x1xf32, #tpu.memory_space<vmem>>, %arg14: memref<9x840xf32, #tpu.memory_space<vmem>>, %arg15: memref<2x1x840xf32, #tpu.memory_space<vmem>>, %arg16: memref<2x64x840xf32, #tpu.memory_space<vmem>>) attributes {dimension_semantics = [#tpu.dimension_semantics<arbitrary>], iteration_bounds = array<i64: 2>, scalar_prefetch = 1 : i64, scratch_operands = 1 : i64, tpu.core_type = #tpu.core_type<tc>, window_params = [{transform_indices = @transform_0, window_bounds = array<i64: 1, 1, 100>}, {transform_indices = @transform_1, window_bounds = array<i64: 1, 1, 100>}, {pipeline_mode = #tpu.pipeline_mode<synchronous>, transform_indices = @transform_2, window_bounds = array<i64: 100, 840>}, {pipeline_mode = #tpu.pipeline_mode<synchronous>, transform_indices = @transform_3, window_bounds = array<i64: 1, 840>}, {pipeline_mode = #tpu.pipeline_mode<synchronous>, transform_indices = @transform_4, window_bounds = array<i64: 100, 840>}, {pipeline_mode = #tpu.pipeline_mode<synchronous>, transform_indices = @transform_5, window_bounds = array<i64: 1, 840>}, {pipeline_mode = #tpu.pipeline_mode<synchronous>, transform_indices = @transform_6, window_bounds = array<i64: 64, 18>}, {pipeline_mode = #tpu.pipeline_mode<synchronous>, transform_indices = @transform_7, window_bounds = array<i64: 64, 1>}, {pipeline_mode = #tpu.pipeline_mode<synchronous>, transform_indices = @transform_8, window_bounds = array<i64: 64, 1>}, {pipeline_mode = #tpu.pipeline_mode<synchronous>, transform_indices = @transform_9, window_bounds = array<i64: 64, 1>}, {pipeline_mode = #tpu.pipeline_mode<synchronous>, transform_indices = @transform_10, window_bounds = array<i64: 9, 64>}, {pipeline_mode = #tpu.pipeline_mode<synchronous>, transform_indices = @transform_11, window_bounds = array<i64: 1, 1>}, {pipeline_mode = #tpu.pipeline_mode<synchronous>, transform_indices = @transform_12, window_bounds = array<i64: 9, 840>}, {pipeline_mode = #tpu.pipeline_mode<synchronous>, transform_indices = @transform_13, window_bounds = array<i64: 2, 1, 840>}]} {
    %c0 = arith.constant 0 : index
    %c0_0 = arith.constant 0 : index
    %c0_1 = arith.constant 0 : index
    %0 = vector.load %arg2[%c0, %c0_0, %c0_1] : memref<1x1x100xf32, #tpu.memory_space<vmem>>, vector<1x1x100xf32>
    %1 = vector.shape_cast %0 : vector<1x1x100xf32> to vector<1x100xf32>
    %c0_2 = arith.constant 0 : index
    %c0_3 = arith.constant 0 : index
    %2 = vector.load %arg4[%c0_2, %c0_3] : memref<100x840xf32, #tpu.memory_space<vmem>>, vector<100x840xf32>
    %cst = arith.constant dense<0.000000e+00> : vector<1x840xf32>
    %3 = tpu.matmul %1, %2, %cst {dimension_numbers = #tpu.dot_dimension_numbers<[1], [0], [0], [1], [0, 0, 1, 1], [], []>} : vector<1x100xf32>, vector<100x840xf32>, vector<1x840xf32> -> vector<1x840xf32>
    %c0_4 = arith.constant 0 : index
    %c0_5 = arith.constant 0 : index
    %4 = vector.load %arg5[%c0_4, %c0_5] : memref<1x840xf32, #tpu.memory_space<vmem>>, vector<1x840xf32>
    %5 = arith.addf %3, %4 : vector<1x840xf32>
    %c0_6 = arith.constant 0 : index
    %c0_7 = arith.constant 0 : index
    %c0_8 = arith.constant 0 : index
    %6 = vector.load %arg3[%c0_6, %c0_7, %c0_8] : memref<1x1x100xf32, #tpu.memory_space<vmem>>, vector<1x1x100xf32>
    %7 = vector.shape_cast %6 : vector<1x1x100xf32> to vector<1x100xf32>
    %c0_9 = arith.constant 0 : index
    %c0_10 = arith.constant 0 : index
    %8 = vector.load %arg6[%c0_9, %c0_10] : memref<100x840xf32, #tpu.memory_space<vmem>>, vector<100x840xf32>
    %cst_11 = arith.constant dense<0.000000e+00> : vector<1x840xf32>
    %9 = tpu.matmul %7, %8, %cst_11 {dimension_numbers = #tpu.dot_dimension_numbers<[1], [0], [0], [1], [0, 0, 1, 1], [], []>} : vector<1x100xf32>, vector<100x840xf32>, vector<1x840xf32> -> vector<1x840xf32>
    %c0_12 = arith.constant 0 : index
    %c0_13 = arith.constant 0 : index
    %10 = vector.load %arg7[%c0_12, %c0_13] : memref<1x840xf32, #tpu.memory_space<vmem>>, vector<1x840xf32>
    %11 = arith.addf %9, %10 : vector<1x840xf32>
    %12 = tpu.concatenate %5, %11 in 0 : vector<1x840xf32>, vector<1x840xf32> -> vector<2x840xf32>
    %cst_14 = arith.constant 0.000000e+00 : f32
    %13 = vector.broadcast %cst_14 : f32 to vector<2x9xf32>
    %14 = tpu.concatenate %13, %12, %13 in 1 : vector<2x9xf32>, vector<2x840xf32>, vector<2x9xf32> -> vector<2x858xf32>
    %15 = vector.extract_strided_slice %14 {offsets = [0, 0], sizes = [2, 840], strides = [1, 1]} : vector<2x858xf32> to vector<2x840xf32>
    %c0_15 = arith.constant 0 : index
    %c0_16 = arith.constant 0 : index
    %16 = vector.load %arg14[%c0_15, %c0_16] : memref<9x840xf32, #tpu.memory_space<vmem>>, vector<1x840xf32>
    %17 = vector.broadcast %16 : vector<1x840xf32> to vector<2x840xf32>
    %18 = arith.mulf %15, %17 : vector<2x840xf32>
    %19 = vector.extract_strided_slice %14 {offsets = [0, 1], sizes = [2, 840], strides = [1, 1]} : vector<2x858xf32> to vector<2x840xf32>
    %c1 = arith.constant 1 : index
    %c0_17 = arith.constant 0 : index
    %20 = vector.load %arg14[%c1, %c0_17] : memref<9x840xf32, #tpu.memory_space<vmem>>, vector<1x840xf32>
    %21 = vector.broadcast %20 : vector<1x840xf32> to vector<2x840xf32>
    %22 = arith.mulf %19, %21 : vector<2x840xf32>
    %23 = vector.extract_strided_slice %14 {offsets = [0, 2], sizes = [2, 840], strides = [1, 1]} : vector<2x858xf32> to vector<2x840xf32>
    %c2 = arith.constant 2 : index
    %c0_18 = arith.constant 0 : index
    %24 = vector.load %arg14[%c2, %c0_18] : memref<9x840xf32, #tpu.memory_space<vmem>>, vector<1x840xf32>
    %25 = vector.broadcast %24 : vector<1x840xf32> to vector<2x840xf32>
    %26 = arith.mulf %23, %25 : vector<2x840xf32>
    %27 = vector.extract_strided_slice %14 {offsets = [0, 8], sizes = [2, 840], strides = [1, 1]} : vector<2x858xf32> to vector<2x840xf32>
    %c3 = arith.constant 3 : index
    %c0_19 = arith.constant 0 : index
    %28 = vector.load %arg14[%c3, %c0_19] : memref<9x840xf32, #tpu.memory_space<vmem>>, vector<1x840xf32>
    %29 = vector.broadcast %28 : vector<1x840xf32> to vector<2x840xf32>
    %30 = arith.mulf %27, %29 : vector<2x840xf32>
    %31 = vector.extract_strided_slice %14 {offsets = [0, 9], sizes = [2, 840], strides = [1, 1]} : vector<2x858xf32> to vector<2x840xf32>
    %c4 = arith.constant 4 : index
    %c0_20 = arith.constant 0 : index
    %32 = vector.load %arg14[%c4, %c0_20] : memref<9x840xf32, #tpu.memory_space<vmem>>, vector<1x840xf32>
    %33 = vector.broadcast %32 : vector<1x840xf32> to vector<2x840xf32>
    %34 = arith.mulf %31, %33 : vector<2x840xf32>
    %35 = vector.extract_strided_slice %14 {offsets = [0, 10], sizes = [2, 840], strides = [1, 1]} : vector<2x858xf32> to vector<2x840xf32>
    %c5 = arith.constant 5 : index
    %c0_21 = arith.constant 0 : index
    %36 = vector.load %arg14[%c5, %c0_21] : memref<9x840xf32, #tpu.memory_space<vmem>>, vector<1x840xf32>
    %37 = vector.broadcast %36 : vector<1x840xf32> to vector<2x840xf32>
    %38 = arith.mulf %35, %37 : vector<2x840xf32>
    %39 = vector.extract_strided_slice %14 {offsets = [0, 16], sizes = [2, 840], strides = [1, 1]} : vector<2x858xf32> to vector<2x840xf32>
    %c6 = arith.constant 6 : index
    %c0_22 = arith.constant 0 : index
    %40 = vector.load %arg14[%c6, %c0_22] : memref<9x840xf32, #tpu.memory_space<vmem>>, vector<1x840xf32>
    %41 = vector.broadcast %40 : vector<1x840xf32> to vector<2x840xf32>
    %42 = arith.mulf %39, %41 : vector<2x840xf32>
    %43 = vector.extract_strided_slice %14 {offsets = [0, 17], sizes = [2, 840], strides = [1, 1]} : vector<2x858xf32> to vector<2x840xf32>
    %c7 = arith.constant 7 : index
    %c0_23 = arith.constant 0 : index
    %44 = vector.load %arg14[%c7, %c0_23] : memref<9x840xf32, #tpu.memory_space<vmem>>, vector<1x840xf32>
    %45 = vector.broadcast %44 : vector<1x840xf32> to vector<2x840xf32>
    %46 = arith.mulf %43, %45 : vector<2x840xf32>
    %47 = vector.extract_strided_slice %14 {offsets = [0, 18], sizes = [2, 840], strides = [1, 1]} : vector<2x858xf32> to vector<2x840xf32>
    %c8 = arith.constant 8 : index
    %c0_24 = arith.constant 0 : index
    %48 = vector.load %arg14[%c8, %c0_24] : memref<9x840xf32, #tpu.memory_space<vmem>>, vector<1x840xf32>
    %49 = vector.broadcast %48 : vector<1x840xf32> to vector<2x840xf32>
    %50 = arith.mulf %47, %49 : vector<2x840xf32>
    %51 = tpu.concatenate %18, %22, %26, %30, %34, %38, %42, %46, %50 in 0 : vector<2x840xf32>, vector<2x840xf32>, vector<2x840xf32>, vector<2x840xf32>, vector<2x840xf32>, vector<2x840xf32>, vector<2x840xf32>, vector<2x840xf32>, vector<2x840xf32> -> vector<18x840xf32>
    %c0_25 = arith.constant 0 : index
    %c0_26 = arith.constant 0 : index
    %52 = vector.load %arg8[%c0_25, %c0_26] : memref<64x18xf32, #tpu.memory_space<vmem>>, vector<64x18xf32>
    %cst_27 = arith.constant dense<0.000000e+00> : vector<64x840xf32>
    %53 = tpu.matmul %52, %51, %cst_27 {dimension_numbers = #tpu.dot_dimension_numbers<[1], [0], [0], [1], [0, 0, 1, 1], [], []>} : vector<64x18xf32>, vector<18x840xf32>, vector<64x840xf32> -> vector<64x840xf32>
    %c0_28 = arith.constant 0 : index
    %c0_29 = arith.constant 0 : index
    %54 = vector.load %arg9[%c0_28, %c0_29] : memref<64x1xf32, #tpu.memory_space<vmem>>, vector<64x1xf32>
    %55 = vector.broadcast %54 : vector<64x1xf32> to vector<64x840xf32>
    %56 = arith.addf %53, %55 : vector<64x840xf32>
    %57 = vector.shape_cast %56 : vector<64x840xf32> to vector<1x64x840xf32>
    %58 = arith.index_cast %arg0 : i32 to index
    %c0_30 = arith.constant 0 : index
    %c0_31 = arith.constant 0 : index
    %59 = vector.load %arg16[%58, %c0_30, %c0_31] : memref<2x64x840xf32, #tpu.memory_space<vmem>>, vector<1x64x840xf32>
    tpu.vector_store %arg16[%58, %c0_30, %c0_31], %57 {strides = array<i32>} : memref<2x64x840xf32, #tpu.memory_space<vmem>>, vector<1x64x840xf32>,
    %c1_i32 = arith.constant 1 : i32
    %60 = arith.cmpi eq, %arg0, %c1_i32 : i32
    %61 = arith.extui %60 : i1 to i32
    %c0_i32 = arith.constant 0 : i32
    %62 = arith.cmpi ne, %61, %c0_i32 : i32
    scf.if %62 {
      %c0_32 = arith.constant 0 : index
      %c0_33 = arith.constant 0 : index
      %c0_34 = arith.constant 0 : index
      %63 = vector.load %arg16[%c0_32, %c0_33, %c0_34] : memref<2x64x840xf32, #tpu.memory_space<vmem>>, vector<2x64x840xf32>
      %cst_35 = arith.constant dense<0.000000e+00> : vector<2x64xf32>
      %64 = vector.multi_reduction <add>, %63, %cst_35 [2] : vector<2x64x840xf32> to vector<2x64xf32>
      %65 = vector.shape_cast %64 : vector<2x64xf32> to vector<2x64x1xf32>
      %cst_36 = arith.constant dense<0.000000e+00> : vector<64x1xf32>
      %66 = vector.multi_reduction <add>, %65, %cst_36 [0] : vector<2x64x1xf32> to vector<64x1xf32>
      %67 = vector.shape_cast %66 : vector<64x1xf32> to vector<1x64x1xf32>
      %cst_37 = arith.constant 1.680000e+03 : f32
      %68 = vector.broadcast %cst_37 : f32 to vector<1x64x1xf32>
      %69 = arith.divf %67, %68 : vector<1x64x1xf32>
      %70 = vector.broadcast %69 : vector<1x64x1xf32> to vector<2x64x840xf32>
      %71 = arith.subf %63, %70 : vector<2x64x840xf32>
      %72 = arith.mulf %71, %71 : vector<2x64x840xf32>
      %cst_38 = arith.constant dense<0.000000e+00> : vector<2x64xf32>
      %73 = vector.multi_reduction <add>, %72, %cst_38 [2] : vector<2x64x840xf32> to vector<2x64xf32>
      %74 = vector.shape_cast %73 : vector<2x64xf32> to vector<2x64x1xf32>
      %cst_39 = arith.constant dense<0.000000e+00> : vector<64x1xf32>
      %75 = vector.multi_reduction <add>, %74, %cst_39 [0] : vector<2x64x1xf32> to vector<64x1xf32>
      %76 = vector.shape_cast %75 : vector<64x1xf32> to vector<1x64x1xf32>
      %cst_40 = arith.constant 1.680000e+03 : f32
      %77 = vector.broadcast %cst_40 : f32 to vector<1x64x1xf32>
      %78 = arith.divf %76, %77 : vector<1x64x1xf32>
      %cst_41 = arith.constant 9.99999974E-6 : f32
      %79 = vector.broadcast %cst_41 : f32 to vector<1x64x1xf32>
      %80 = arith.addf %78, %79 : vector<1x64x1xf32>
      %81 = math.sqrt %80 : vector<1x64x1xf32>
      %cst_42 = arith.constant 1.000000e+00 : f32
      %82 = vector.broadcast %cst_42 : f32 to vector<1x64x1xf32>
      %83 = arith.divf %82, %81 : vector<1x64x1xf32>
      %c0_43 = arith.constant 0 : index
      %c0_44 = arith.constant 0 : index
      %84 = vector.load %arg10[%c0_43, %c0_44] : memref<64x1xf32, #tpu.memory_space<vmem>>, vector<64x1xf32>
      %85 = vector.shape_cast %84 : vector<64x1xf32> to vector<1x64x1xf32>
      %86 = arith.mulf %85, %83 : vector<1x64x1xf32>
      %c0_45 = arith.constant 0 : index
      %c0_46 = arith.constant 0 : index
      %87 = vector.load %arg11[%c0_45, %c0_46] : memref<64x1xf32, #tpu.memory_space<vmem>>, vector<64x1xf32>
      %88 = vector.shape_cast %87 : vector<64x1xf32> to vector<1x64x1xf32>
      %89 = arith.mulf %69, %86 : vector<1x64x1xf32>
      %90 = arith.subf %88, %89 : vector<1x64x1xf32>
      %91 = vector.broadcast %86 : vector<1x64x1xf32> to vector<2x64x840xf32>
      %92 = arith.mulf %63, %91 : vector<2x64x840xf32>
      %93 = vector.broadcast %90 : vector<1x64x1xf32> to vector<2x64x840xf32>
      %94 = arith.addf %92, %93 : vector<2x64x840xf32>
      %cst_47 = arith.constant 0.000000e+00 : f32
      %95 = vector.broadcast %cst_47 : f32 to vector<2x64x840xf32>
      %96 = arith.maximumf %94, %95 : vector<2x64x840xf32>
      %cst_48 = arith.constant 0.000000e+00 : f32
      %97 = vector.broadcast %cst_48 : f32 to vector<9x9xf32>
      %c0_49 = arith.constant 0 : index
      %c0_50 = arith.constant 0 : index
      %98 = vector.load %arg12[%c0_49, %c0_50] : memref<9x64xf32, #tpu.memory_space<vmem>>, vector<9x64xf32>
      %99 = vector.extract_strided_slice %96 {offsets = [0, 0, 0], sizes = [1, 64, 840], strides = [1, 1, 1]} : vector<2x64x840xf32> to vector<1x64x840xf32>
      %100 = vector.shape_cast %99 : vector<1x64x840xf32> to vector<64x840xf32>
      %cst_51 = arith.constant dense<0.000000e+00> : vector<9x840xf32>
      %101 = tpu.matmul %98, %100, %cst_51 {dimension_numbers = #tpu.dot_dimension_numbers<[1], [0], [0], [1], [0, 0, 1, 1], [], []>} : vector<9x64xf32>, vector<64x840xf32>, vector<9x840xf32> -> vector<9x840xf32>
      %102 = tpu.concatenate %97, %101, %97 in 1 : vector<9x9xf32>, vector<9x840xf32>, vector<9x9xf32> -> vector<9x858xf32>
      %cst_52 = arith.constant 0.000000e+00 : f32
      %103 = vector.broadcast %cst_52 : f32 to vector<1x840xf32>
      %c0_53 = arith.constant 0 : index
      %c0_54 = arith.constant 0 : index
      %104 = vector.load %arg14[%c0_53, %c0_54] : memref<9x840xf32, #tpu.memory_space<vmem>>, vector<1x840xf32>
      %105 = vector.extract_strided_slice %102 {offsets = [0, 0], sizes = [1, 840], strides = [1, 1]} : vector<9x858xf32> to vector<1x840xf32>
      %106 = arith.mulf %104, %105 : vector<1x840xf32>
      %107 = arith.addf %103, %106 : vector<1x840xf32>
      %c1_55 = arith.constant 1 : index
      %c0_56 = arith.constant 0 : index
      %108 = vector.load %arg14[%c1_55, %c0_56] : memref<9x840xf32, #tpu.memory_space<vmem>>, vector<1x840xf32>
      %109 = vector.extract_strided_slice %102 {offsets = [1, 1], sizes = [1, 840], strides = [1, 1]} : vector<9x858xf32> to vector<1x840xf32>
      %110 = arith.mulf %108, %109 : vector<1x840xf32>
      %111 = arith.addf %107, %110 : vector<1x840xf32>
      %c2_57 = arith.constant 2 : index
      %c0_58 = arith.constant 0 : index
      %112 = vector.load %arg14[%c2_57, %c0_58] : memref<9x840xf32, #tpu.memory_space<vmem>>, vector<1x840xf32>
      %113 = vector.extract_strided_slice %102 {offsets = [2, 2], sizes = [1, 840], strides = [1, 1]} : vector<9x858xf32> to vector<1x840xf32>
      %114 = arith.mulf %112, %113 : vector<1x840xf32>
      %115 = arith.addf %111, %114 : vector<1x840xf32>
      %c3_59 = arith.constant 3 : index
      %c0_60 = arith.constant 0 : index
      %116 = vector.load %arg14[%c3_59, %c0_60] : memref<9x840xf32, #tpu.memory_space<vmem>>, vector<1x840xf32>
      %117 = vector.extract_strided_slice %102 {offsets = [3, 8], sizes = [1, 840], strides = [1, 1]} : vector<9x858xf32> to vector<1x840xf32>
      %118 = arith.mulf %116, %117 : vector<1x840xf32>
      %119 = arith.addf %115, %118 : vector<1x840xf32>
      %c4_61 = arith.constant 4 : index
      %c0_62 = arith.constant 0 : index
      %120 = vector.load %arg14[%c4_61, %c0_62] : memref<9x840xf32, #tpu.memory_space<vmem>>, vector<1x840xf32>
      %121 = vector.extract_strided_slice %102 {offsets = [4, 9], sizes = [1, 840], strides = [1, 1]} : vector<9x858xf32> to vector<1x840xf32>
      %122 = arith.mulf %120, %121 : vector<1x840xf32>
      %123 = arith.addf %119, %122 : vector<1x840xf32>
      %c5_63 = arith.constant 5 : index
      %c0_64 = arith.constant 0 : index
      %124 = vector.load %arg14[%c5_63, %c0_64] : memref<9x840xf32, #tpu.memory_space<vmem>>, vector<1x840xf32>
      %125 = vector.extract_strided_slice %102 {offsets = [5, 10], sizes = [1, 840], strides = [1, 1]} : vector<9x858xf32> to vector<1x840xf32>
      %126 = arith.mulf %124, %125 : vector<1x840xf32>
      %127 = arith.addf %123, %126 : vector<1x840xf32>
      %c6_65 = arith.constant 6 : index
      %c0_66 = arith.constant 0 : index
      %128 = vector.load %arg14[%c6_65, %c0_66] : memref<9x840xf32, #tpu.memory_space<vmem>>, vector<1x840xf32>
      %129 = vector.extract_strided_slice %102 {offsets = [6, 16], sizes = [1, 840], strides = [1, 1]} : vector<9x858xf32> to vector<1x840xf32>
      %130 = arith.mulf %128, %129 : vector<1x840xf32>
      %131 = arith.addf %127, %130 : vector<1x840xf32>
      %c7_67 = arith.constant 7 : index
      %c0_68 = arith.constant 0 : index
      %132 = vector.load %arg14[%c7_67, %c0_68] : memref<9x840xf32, #tpu.memory_space<vmem>>, vector<1x840xf32>
      %133 = vector.extract_strided_slice %102 {offsets = [7, 17], sizes = [1, 840], strides = [1, 1]} : vector<9x858xf32> to vector<1x840xf32>
      %134 = arith.mulf %132, %133 : vector<1x840xf32>
      %135 = arith.addf %131, %134 : vector<1x840xf32>
      %c8_69 = arith.constant 8 : index
      %c0_70 = arith.constant 0 : index
      %136 = vector.load %arg14[%c8_69, %c0_70] : memref<9x840xf32, #tpu.memory_space<vmem>>, vector<1x840xf32>
      %137 = vector.extract_strided_slice %102 {offsets = [8, 18], sizes = [1, 840], strides = [1, 1]} : vector<9x858xf32> to vector<1x840xf32>
      %138 = arith.mulf %136, %137 : vector<1x840xf32>
      %139 = arith.addf %135, %138 : vector<1x840xf32>
      %c0_71 = arith.constant 0 : index
      %c0_72 = arith.constant 0 : index
      %140 = vector.load %arg13[%c0_71, %c0_72] : memref<1x1xf32, #tpu.memory_space<vmem>>, vector<1x1xf32>
      %141 = vector.broadcast %140 : vector<1x1xf32> to vector<1x840xf32>
      %142 = arith.addf %139, %141 : vector<1x840xf32>
      %c0_73 = arith.constant 0 : index
      %c0_74 = arith.constant 0 : index
      %c0_75 = arith.constant 0 : index
      %143 = vector.load %arg15[%c0_73, %c0_74, %c0_75] : memref<2x1x840xf32, #tpu.memory_space<vmem>>, vector<1x1x840xf32>
      %144 = vector.shape_cast %143 : vector<1x1x840xf32> to vector<1x840xf32>
      %145 = vector.shape_cast %142 : vector<1x840xf32> to vector<1x1x840xf32>
      tpu.vector_store %arg15[%c0_73, %c0_74, %c0_75], %145 {strides = array<i32>} : memref<2x1x840xf32, #tpu.memory_space<vmem>>, vector<1x1x840xf32>,
      %c0_76 = arith.constant 0 : index
      %c0_77 = arith.constant 0 : index
      %146 = vector.load %arg12[%c0_76, %c0_77] : memref<9x64xf32, #tpu.memory_space<vmem>>, vector<9x64xf32>
      %147 = vector.extract_strided_slice %96 {offsets = [1, 0, 0], sizes = [1, 64, 840], strides = [1, 1, 1]} : vector<2x64x840xf32> to vector<1x64x840xf32>
      %148 = vector.shape_cast %147 : vector<1x64x840xf32> to vector<64x840xf32>
      %cst_78 = arith.constant dense<0.000000e+00> : vector<9x840xf32>
      %149 = tpu.matmul %146, %148, %cst_78 {dimension_numbers = #tpu.dot_dimension_numbers<[1], [0], [0], [1], [0, 0, 1, 1], [], []>} : vector<9x64xf32>, vector<64x840xf32>, vector<9x840xf32> -> vector<9x840xf32>
      %150 = tpu.concatenate %97, %149, %97 in 1 : vector<9x9xf32>, vector<9x840xf32>, vector<9x9xf32> -> vector<9x858xf32>
      %cst_79 = arith.constant 0.000000e+00 : f32
      %151 = vector.broadcast %cst_79 : f32 to vector<1x840xf32>
      %c0_80 = arith.constant 0 : index
      %c0_81 = arith.constant 0 : index
      %152 = vector.load %arg14[%c0_80, %c0_81] : memref<9x840xf32, #tpu.memory_space<vmem>>, vector<1x840xf32>
      %153 = vector.extract_strided_slice %150 {offsets = [0, 0], sizes = [1, 840], strides = [1, 1]} : vector<9x858xf32> to vector<1x840xf32>
      %154 = arith.mulf %152, %153 : vector<1x840xf32>
      %155 = arith.addf %151, %154 : vector<1x840xf32>
      %c1_82 = arith.constant 1 : index
      %c0_83 = arith.constant 0 : index
      %156 = vector.load %arg14[%c1_82, %c0_83] : memref<9x840xf32, #tpu.memory_space<vmem>>, vector<1x840xf32>
      %157 = vector.extract_strided_slice %150 {offsets = [1, 1], sizes = [1, 840], strides = [1, 1]} : vector<9x858xf32> to vector<1x840xf32>
      %158 = arith.mulf %156, %157 : vector<1x840xf32>
      %159 = arith.addf %155, %158 : vector<1x840xf32>
      %c2_84 = arith.constant 2 : index
      %c0_85 = arith.constant 0 : index
      %160 = vector.load %arg14[%c2_84, %c0_85] : memref<9x840xf32, #tpu.memory_space<vmem>>, vector<1x840xf32>
      %161 = vector.extract_strided_slice %150 {offsets = [2, 2], sizes = [1, 840], strides = [1, 1]} : vector<9x858xf32> to vector<1x840xf32>
      %162 = arith.mulf %160, %161 : vector<1x840xf32>
      %163 = arith.addf %159, %162 : vector<1x840xf32>
      %c3_86 = arith.constant 3 : index
      %c0_87 = arith.constant 0 : index
      %164 = vector.load %arg14[%c3_86, %c0_87] : memref<9x840xf32, #tpu.memory_space<vmem>>, vector<1x840xf32>
      %165 = vector.extract_strided_slice %150 {offsets = [3, 8], sizes = [1, 840], strides = [1, 1]} : vector<9x858xf32> to vector<1x840xf32>
      %166 = arith.mulf %164, %165 : vector<1x840xf32>
      %167 = arith.addf %163, %166 : vector<1x840xf32>
      %c4_88 = arith.constant 4 : index
      %c0_89 = arith.constant 0 : index
      %168 = vector.load %arg14[%c4_88, %c0_89] : memref<9x840xf32, #tpu.memory_space<vmem>>, vector<1x840xf32>
      %169 = vector.extract_strided_slice %150 {offsets = [4, 9], sizes = [1, 840], strides = [1, 1]} : vector<9x858xf32> to vector<1x840xf32>
      %170 = arith.mulf %168, %169 : vector<1x840xf32>
      %171 = arith.addf %167, %170 : vector<1x840xf32>
      %c5_90 = arith.constant 5 : index
      %c0_91 = arith.constant 0 : index
      %172 = vector.load %arg14[%c5_90, %c0_91] : memref<9x840xf32, #tpu.memory_space<vmem>>, vector<1x840xf32>
      %173 = vector.extract_strided_slice %150 {offsets = [5, 10], sizes = [1, 840], strides = [1, 1]} : vector<9x858xf32> to vector<1x840xf32>
      %174 = arith.mulf %172, %173 : vector<1x840xf32>
      %175 = arith.addf %171, %174 : vector<1x840xf32>
      %c6_92 = arith.constant 6 : index
      %c0_93 = arith.constant 0 : index
      %176 = vector.load %arg14[%c6_92, %c0_93] : memref<9x840xf32, #tpu.memory_space<vmem>>, vector<1x840xf32>
      %177 = vector.extract_strided_slice %150 {offsets = [6, 16], sizes = [1, 840], strides = [1, 1]} : vector<9x858xf32> to vector<1x840xf32>
      %178 = arith.mulf %176, %177 : vector<1x840xf32>
      %179 = arith.addf %175, %178 : vector<1x840xf32>
      %c7_94 = arith.constant 7 : index
      %c0_95 = arith.constant 0 : index
      %180 = vector.load %arg14[%c7_94, %c0_95] : memref<9x840xf32, #tpu.memory_space<vmem>>, vector<1x840xf32>
      %181 = vector.extract_strided_slice %150 {offsets = [7, 17], sizes = [1, 840], strides = [1, 1]} : vector<9x858xf32> to vector<1x840xf32>
      %182 = arith.mulf %180, %181 : vector<1x840xf32>
      %183 = arith.addf %179, %182 : vector<1x840xf32>
      %c8_96 = arith.constant 8 : index
      %c0_97 = arith.constant 0 : index
      %184 = vector.load %arg14[%c8_96, %c0_97] : memref<9x840xf32, #tpu.memory_space<vmem>>, vector<1x840xf32>
      %185 = vector.extract_strided_slice %150 {offsets = [8, 18], sizes = [1, 840], strides = [1, 1]} : vector<9x858xf32> to vector<1x840xf32>
      %186 = arith.mulf %184, %185 : vector<1x840xf32>
      %187 = arith.addf %183, %186 : vector<1x840xf32>
      %c0_98 = arith.constant 0 : index
      %c0_99 = arith.constant 0 : index
      %188 = vector.load %arg13[%c0_98, %c0_99] : memref<1x1xf32, #tpu.memory_space<vmem>>, vector<1x1xf32>
      %189 = vector.broadcast %188 : vector<1x1xf32> to vector<1x840xf32>
      %190 = arith.addf %187, %189 : vector<1x840xf32>
      %c1_100 = arith.constant 1 : index
      %c0_101 = arith.constant 0 : index
      %c0_102 = arith.constant 0 : index
      %191 = vector.load %arg15[%c1_100, %c0_101, %c0_102] : memref<2x1x840xf32, #tpu.memory_space<vmem>>, vector<1x1x840xf32>
      %192 = vector.shape_cast %191 : vector<1x1x840xf32> to vector<1x840xf32>
      %193 = vector.shape_cast %190 : vector<1x840xf32> to vector<1x1x840xf32>
      tpu.vector_store %arg15[%c1_100, %c0_101, %c0_102], %193 {strides = array<i32>} : memref<2x1x840xf32, #tpu.memory_space<vmem>>, vector<1x1x840xf32>,
    } else {
    }
    return
  }
  func.func @transform_0(%arg0: i32, %arg1: memref<2xi32, #tpu.memory_space<smem>>) -> (i32, i32, i32) {
    %c0_i32 = arith.constant 0 : i32
    %c0_i32_0 = arith.constant 0 : i32
    %c0_i32_1 = arith.constant 0 : i32
    return %arg0, %c0_i32, %c0_i32_0 : i32, i32, i32
  }
  func.func @transform_1(%arg0: i32, %arg1: memref<2xi32, #tpu.memory_space<smem>>) -> (i32, i32, i32) {
    %0 = arith.index_cast %arg0 : i32 to index
    %1 = memref.load %arg1[%0] : memref<2xi32, #tpu.memory_space<smem>>
    %c0_i32 = arith.constant 0 : i32
    %c0_i32_0 = arith.constant 0 : i32
    %c0_i32_1 = arith.constant 0 : i32
    return %1, %c0_i32, %c0_i32_0 : i32, i32, i32
  }
  func.func @transform_2(%arg0: i32, %arg1: memref<2xi32, #tpu.memory_space<smem>>) -> (i32, i32) {
    %c0_i32 = arith.constant 0 : i32
    %c0_i32_0 = arith.constant 0 : i32
    %c0_i32_1 = arith.constant 0 : i32
    return %c0_i32, %c0_i32_0 : i32, i32
  }
  func.func @transform_3(%arg0: i32, %arg1: memref<2xi32, #tpu.memory_space<smem>>) -> (i32, i32) {
    %c0_i32 = arith.constant 0 : i32
    %c0_i32_0 = arith.constant 0 : i32
    %c0_i32_1 = arith.constant 0 : i32
    return %c0_i32, %c0_i32_0 : i32, i32
  }
  func.func @transform_4(%arg0: i32, %arg1: memref<2xi32, #tpu.memory_space<smem>>) -> (i32, i32) {
    %c0_i32 = arith.constant 0 : i32
    %c0_i32_0 = arith.constant 0 : i32
    %c0_i32_1 = arith.constant 0 : i32
    return %c0_i32, %c0_i32_0 : i32, i32
  }
  func.func @transform_5(%arg0: i32, %arg1: memref<2xi32, #tpu.memory_space<smem>>) -> (i32, i32) {
    %c0_i32 = arith.constant 0 : i32
    %c0_i32_0 = arith.constant 0 : i32
    %c0_i32_1 = arith.constant 0 : i32
    return %c0_i32, %c0_i32_0 : i32, i32
  }
  func.func @transform_6(%arg0: i32, %arg1: memref<2xi32, #tpu.memory_space<smem>>) -> (i32, i32) {
    %c0_i32 = arith.constant 0 : i32
    %c0_i32_0 = arith.constant 0 : i32
    %c0_i32_1 = arith.constant 0 : i32
    return %c0_i32, %c0_i32_0 : i32, i32
  }
  func.func @transform_7(%arg0: i32, %arg1: memref<2xi32, #tpu.memory_space<smem>>) -> (i32, i32) {
    %c0_i32 = arith.constant 0 : i32
    %c0_i32_0 = arith.constant 0 : i32
    %c0_i32_1 = arith.constant 0 : i32
    return %c0_i32, %c0_i32_0 : i32, i32
  }
  func.func @transform_8(%arg0: i32, %arg1: memref<2xi32, #tpu.memory_space<smem>>) -> (i32, i32) {
    %c0_i32 = arith.constant 0 : i32
    %c0_i32_0 = arith.constant 0 : i32
    %c0_i32_1 = arith.constant 0 : i32
    return %c0_i32, %c0_i32_0 : i32, i32
  }
  func.func @transform_9(%arg0: i32, %arg1: memref<2xi32, #tpu.memory_space<smem>>) -> (i32, i32) {
    %c0_i32 = arith.constant 0 : i32
    %c0_i32_0 = arith.constant 0 : i32
    %c0_i32_1 = arith.constant 0 : i32
    return %c0_i32, %c0_i32_0 : i32, i32
  }
  func.func @transform_10(%arg0: i32, %arg1: memref<2xi32, #tpu.memory_space<smem>>) -> (i32, i32) {
    %c0_i32 = arith.constant 0 : i32
    %c0_i32_0 = arith.constant 0 : i32
    %c0_i32_1 = arith.constant 0 : i32
    return %c0_i32, %c0_i32_0 : i32, i32
  }
  func.func @transform_11(%arg0: i32, %arg1: memref<2xi32, #tpu.memory_space<smem>>) -> (i32, i32) {
    %c0_i32 = arith.constant 0 : i32
    %c0_i32_0 = arith.constant 0 : i32
    %c0_i32_1 = arith.constant 0 : i32
    return %c0_i32, %c0_i32_0 : i32, i32
  }
  func.func @transform_12(%arg0: i32, %arg1: memref<2xi32, #tpu.memory_space<smem>>) -> (i32, i32) {
    %c0_i32 = arith.constant 0 : i32
    %c0_i32_0 = arith.constant 0 : i32
    %c0_i32_1 = arith.constant 0 : i32
    return %c0_i32, %c0_i32_0 : i32, i32
  }
  func.func @transform_13(%arg0: i32, %arg1: memref<2xi32, #tpu.memory_space<smem>>) -> (i32, i32, i32) {
    %c0_i32 = arith.constant 0 : i32
    %c0_i32_0 = arith.constant 0 : i32
    %c0_i32_1 = arith.constant 0 : i32
    %c0_i32_2 = arith.constant 0 : i32
    return %c0_i32, %c0_i32_0, %c0_i32_1 : i32, i32, i32
  }
}

</mosaic_0001>

<llo_original>
// kernel: tpu_custom_call.1
$region0: #{tpu_custom_call.1}
  #allocation0 [shape = 'u32[]', space=smem, size = 0x4, offset = 0x4, fixed_abs, tag = 'smem constant byte address 0x4 - core index']
  #allocation1 [shape = 'u32[144,128]{1,0:T(1,128)}', space=vmem, size = 0x12000, scoped, tag = 'internal scratch']
  #allocation2 [shape = 'f32[2,64,840]{2,1,0:T(8,128)}', space=vmem, size = 0x70000, scoped, tag = 'scratch operand']
  #allocation3 [shape = 's32[1]{0}', space=sflag, size = 0x4, scoped, tag = 'scoped memory for tpu_custom_call.1']
  #allocation4 [shape = 'u8[512]{0}', space=smem, size = 0x200, scoped, tag = 'prefetched SMEM operand 0']
  #allocation5 [shape = 'f32[1,1]{1,0:T(1,128)S(1)}', space=vmem, size = 0x200, scoped, tag = 'scoped memory for tpu_custom_call.1']
  %s0 = inlined_call_operand.vmem [shape: s32[2], index: 0, kind: input, shape index: {}]
  %s1 = inlined_call_operand.vmem [shape: f32[2,1,100], index: 1, kind: input, shape index: {}]
  %s2 = inlined_call_operand.vmem [shape: f32[5860,1,100], index: 2, kind: input, shape index: {}]
  %s3 = inlined_call_operand.vmem [shape: f32[100,840], index: 3, kind: input, shape index: {}]
  %s4 = inlined_call_operand.vmem [shape: f32[1,840], index: 4, kind: input, shape index: {}]
  %s5 = inlined_call_operand.vmem [shape: f32[100,840], index: 5, kind: input, shape index: {}]
  %s6 = inlined_call_operand.vmem [shape: f32[1,840], index: 6, kind: input, shape index: {}]
  %s7 = inlined_call_operand.vmem [shape: f32[64,18], index: 7, kind: input, shape index: {}]
  %s8 = inlined_call_operand.vmem [shape: f32[64,1], index: 8, kind: input, shape index: {}]
  %s9 = inlined_call_operand.vmem [shape: f32[64,1], index: 9, kind: input, shape index: {}]
  %s10 = inlined_call_operand.vmem [shape: f32[64,1], index: 10, kind: input, shape index: {}]
  %s11 = inlined_call_operand.vmem [shape: f32[9,64], index: 11, kind: input, shape index: {}]
  %s12 = inlined_call_operand.<no memory space> [shape: f32[1,1], index: 12, kind: input, shape index: {}]
  %s13 = inlined_call_operand.vmem [shape: f32[9,840], index: 13, kind: input, shape index: {}]
  %s14 = inlined_call_operand.hbm [shape: f32[2,1,840], index: 14, kind: output, shape index: {}]
  %s15 = sld [smem:[#allocation0]]
  $region89: #{tpu_custom_call.1} parent=0
    _
  %s17 = ssub.s32 1, %s15
  %s18 = scalar_select 0, %s17, %s15
  %s19 = sshll.u32 %s0, 4
  %s20 = int_to_ptr.vmem [resolvable:$true] %s19
  %22 = dma.vmem_to_smem %s20, 16, [#allocation4], [#allocation3]
  %v23 = vstv %s12
  %24 = vst [vmem:[#allocation5] sm:$0x1] %v23
  %25 = dma.done [#allocation3], 16
  %26 = sfence
  $region1: #{tpu_custom_call.1} parent=0
    #allocation6 [shape = 'u8[7168]{0}', space=vmem, size = 0x1c00, scoped, tag = 'output window, operand 0, single buffered']
    #allocation7 [shape = 's32[2]{0}', space=sflag, size = 0x8, scoped, tag = 'scoped memory for tpu_custom_call.1']
    %27 = vsyncpa [#allocation7], 0
    loop: start=0, step=1, limit=4
    $region2: #{tpu_custom_call.1} parent=1 // loop_pre_header
      _
    $region3: #{tpu_custom_call.1} parent=1 // loop_header
      %s29 = sphi 0, %s33
      %p30 = scmp.ge.s32.totalorder %s29, 4
      %s39 = sphi 0, %s41
      %s42 = sphi 0, %s39
      %s43 = sphi 0, %s42
      %s59 = sphi 0, %s43
      %s67 = sphi 0, %s69
      %s70 = sphi 0, %s67
      %s71 = sphi 0, %s70
      %s87 = sphi 0, %s71
      %s91 = sphi 0, %s91
      %s93 = sphi 0, %s91
      %s94 = sphi 0, %s93
      %s108 = sphi 0, %s94
      %s112 = sphi 0, %s112
      %s114 = sphi 0, %s112
      %s115 = sphi 0, %s114
      %s129 = sphi 0, %s115
      %s133 = sphi 0, %s133
      %s135 = sphi 0, %s133
      %s136 = sphi 0, %s135
      %s150 = sphi 0, %s136
      %s154 = sphi 0, %s154
      %s156 = sphi 0, %s154
      %s157 = sphi 0, %s156
      %s171 = sphi 0, %s157
      %s175 = sphi 0, %s175
      %s177 = sphi 0, %s175
      %s178 = sphi 0, %s177
      %s192 = sphi 0, %s178
      %s196 = sphi 0, %s196
      %s198 = sphi 0, %s196
      %s199 = sphi 0, %s198
      %s213 = sphi 0, %s199
      %s217 = sphi 0, %s217
      %s219 = sphi 0, %s217
      %s220 = sphi 0, %s219
      %s234 = sphi 0, %s220
      %s238 = sphi 0, %s238
      %s240 = sphi 0, %s238
      %s241 = sphi 0, %s240
      %s255 = sphi 0, %s241
      %s259 = sphi 0, %s259
      %s261 = sphi 0, %s259
      %s262 = sphi 0, %s261
      %s276 = sphi 0, %s262
      %s280 = sphi 0, %s280
      %s282 = sphi 0, %s280
      %s283 = sphi 0, %s282
      %s297 = sphi 0, %s283
      %s301 = sphi 0, %s301
      %s303 = sphi 0, %s301
      %s304 = sphi 0, %s303
      %s318 = sphi 0, %s304
      %s322 = sphi 0, %s322
      %s324 = sphi 0, %s322
      %s325 = sphi 0, %s324
      %s339 = sphi 0, %s325
    $region4: #{tpu_custom_call.1} parent=1 // loop_header_branch
      %32 = sbr.rel (%p30) target = $region8
    $region5: #{tpu_custom_call.1} parent=1 // loop_body
      %s34 = ssub.s32 %s29, 1
      %s35 = ssub.s32 %s29, 2
      %s36 = sadd.s32 %s29, 1
      %s37 = ssub.s32 %s29, %s36
      %p38 = scmp.eq.s32.totalorder %s37, 0
      %s40 = sadd.s32 %s39, 1
      %s41 = scalar_select %p38, %s39, %s40
      %p44 = pneg %p38
      %p45 = scmp.eq.s32.totalorder %s29, 1
      %p46 = por %p44, %p45
      %p47 = scmp.ne.s32.totalorder %s39, %s42
      %p48 = scmp.eq.s32.totalorder %s29, 0
      %p49 = por %p47, %p48
      %p50 = scmp.ne.s32.totalorder %s39, %s42
      %p51 = scmp.eq.s32.totalorder %s34, 1
      %p52 = por %p50, %p51
      %p53 = scmp.ne.s32.totalorder %s42, %s43
      %p54 = scmp.eq.s32.totalorder %s34, 0
      %p55 = por %p53, %p54
      %p56 = scmp.ne.s32.totalorder %s42, %s43
      %p57 = scmp.eq.s32.totalorder %s35, 1
      %p58 = por %p56, %p57
      %p60 = scmp.ne.s32.totalorder %s43, %s59
      %p61 = scmp.eq.s32.totalorder %s35, 0
      %p62 = por %p60, %p61
      %s63 = sld [smem:[#allocation4 + %s29]]
      %s64 = sld [smem:[#allocation4 + %s36]]
      %s65 = ssub.s32 %s63, %s64
      %p66 = scmp.eq.s32.totalorder %s65, 0
      %s68 = sadd.s32 %s67, 1
      %s69 = scalar_select %p66, %s67, %s68
      %p72 = pneg %p66
      %p73 = scmp.eq.s32.totalorder %s29, 1
      %p74 = por %p72, %p73
      %p75 = scmp.ne.s32.totalorder %s67, %s70
      %p76 = scmp.eq.s32.totalorder %s29, 0
      %p77 = por %p75, %p76
      %p78 = scmp.ne.s32.totalorder %s67, %s70
      %p79 = scmp.eq.s32.totalorder %s34, 1
      %p80 = por %p78, %p79
      %p81 = scmp.ne.s32.totalorder %s70, %s71
      %p82 = scmp.eq.s32.totalorder %s34, 0
      %p83 = por %p81, %p82
      %p84 = scmp.ne.s32.totalorder %s70, %s71
      %p85 = scmp.eq.s32.totalorder %s35, 1
      %p86 = por %p84, %p85
      %p88 = scmp.ne.s32.totalorder %s71, %s87
      %p89 = scmp.eq.s32.totalorder %s35, 0
      %p90 = por %p88, %p89
      %s92 = sadd.s32 %s91, 1
      %p95 = scmp.eq.s32.totalorder %s29, 1
      %p96 = scmp.ne.s32.totalorder %s91, %s93
      %p97 = scmp.eq.s32.totalorder %s29, 0
      %p98 = por %p96, %p97
      %p99 = scmp.ne.s32.totalorder %s91, %s93
      %p100 = scmp.eq.s32.totalorder %s34, 1
      %p101 = por %p99, %p100
      %p102 = scmp.ne.s32.totalorder %s93, %s94
      %p103 = scmp.eq.s32.totalorder %s34, 0
      %p104 = por %p102, %p103
      %p105 = scmp.ne.s32.totalorder %s93, %s94
      %p106 = scmp.eq.s32.totalorder %s35, 1
      %p107 = por %p105, %p106
      %p109 = scmp.ne.s32.totalorder %s94, %s108
      %p110 = scmp.eq.s32.totalorder %s35, 0
      %p111 = por %p109, %p110
      %s113 = sadd.s32 %s112, 1
      %p116 = scmp.eq.s32.totalorder %s29, 1
      %p117 = scmp.ne.s32.totalorder %s112, %s114
      %p118 = scmp.eq.s32.totalorder %s29, 0
      %p119 = por %p117, %p118
      %p120 = scmp.ne.s32.totalorder %s112, %s114
      %p121 = scmp.eq.s32.totalorder %s34, 1
      %p122 = por %p120, %p121
      %p123 = scmp.ne.s32.totalorder %s114, %s115
      %p124 = scmp.eq.s32.totalorder %s34, 0
      %p125 = por %p123, %p124
      %p126 = scmp.ne.s32.totalorder %s114, %s115
      %p127 = scmp.eq.s32.totalorder %s35, 1
      %p128 = por %p126, %p127
      %p130 = scmp.ne.s32.totalorder %s115, %s129
      %p131 = scmp.eq.s32.totalorder %s35, 0
      %p132 = por %p130, %p131
      %s134 = sadd.s32 %s133, 1
      %p137 = scmp.eq.s32.totalorder %s29, 1
      %p138 = scmp.ne.s32.totalorder %s133, %s135
      %p139 = scmp.eq.s32.totalorder %s29, 0
      %p140 = por %p138, %p139
      %p141 = scmp.ne.s32.totalorder %s133, %s135
      %p142 = scmp.eq.s32.totalorder %s34, 1
      %p143 = por %p141, %p142
      %p144 = scmp.ne.s32.totalorder %s135, %s136
      %p145 = scmp.eq.s32.totalorder %s34, 0
      %p146 = por %p144, %p145
      %p147 = scmp.ne.s32.totalorder %s135, %s136
      %p148 = scmp.eq.s32.totalorder %s35, 1
      %p149 = por %p147, %p148
      %p151 = scmp.ne.s32.totalorder %s136, %s150
      %p152 = scmp.eq.s32.totalorder %s35, 0
      %p153 = por %p151, %p152
      %s155 = sadd.s32 %s154, 1
      %p158 = scmp.eq.s32.totalorder %s29, 1
      %p159 = scmp.ne.s32.totalorder %s154, %s156
      %p160 = scmp.eq.s32.totalorder %s29, 0
      %p161 = por %p159, %p160
      %p162 = scmp.ne.s32.totalorder %s154, %s156
      %p163 = scmp.eq.s32.totalorder %s34, 1
      %p164 = por %p162, %p163
      %p165 = scmp.ne.s32.totalorder %s156, %s157
      %p166 = scmp.eq.s32.totalorder %s34, 0
      %p167 = por %p165, %p166
      %p168 = scmp.ne.s32.totalorder %s156, %s157
      %p169 = scmp.eq.s32.totalorder %s35, 1
      %p170 = por %p168, %p169
      %p172 = scmp.ne.s32.totalorder %s157, %s171
      %p173 = scmp.eq.s32.totalorder %s35, 0
      %p174 = por %p172, %p173
      %s176 = sadd.s32 %s175, 1
      %p179 = scmp.eq.s32.totalorder %s29, 1
      %p180 = scmp.ne.s32.totalorder %s175, %s177
      %p181 = scmp.eq.s32.totalorder %s29, 0
      %p182 = por %p180, %p181
      %p183 = scmp.ne.s32.totalorder %s175, %s177
      %p184 = scmp.eq.s32.totalorder %s34, 1
      %p185 = por %p183, %p184
      %p186 = scmp.ne.s32.totalorder %s177, %s178
      %p187 = scmp.eq.s32.totalorder %s34, 0
      %p188 = por %p186, %p187
      %p189 = scmp.ne.s32.totalorder %s177, %s178
      %p190 = scmp.eq.s32.totalorder %s35, 1
      %p191 = por %p189, %p190
      %p193 = scmp.ne.s32.totalorder %s178, %s192
      %p194 = scmp.eq.s32.totalorder %s35, 0
      %p195 = por %p193, %p194
      %s197 = sadd.s32 %s196, 1
      %p200 = scmp.eq.s32.totalorder %s29, 1
      %p201 = scmp.ne.s32.totalorder %s196, %s198
      %p202 = scmp.eq.s32.totalorder %s29, 0
      %p203 = por %p201, %p202
      %p204 = scmp.ne.s32.totalorder %s196, %s198
      %p205 = scmp.eq.s32.totalorder %s34, 1
      %p206 = por %p204, %p205
      %p207 = scmp.ne.s32.totalorder %s198, %s199
      %p208 = scmp.eq.s32.totalorder %s34, 0
      %p209 = por %p207, %p208
      %p210 = scmp.ne.s32.totalorder %s198, %s199
      %p211 = scmp.eq.s32.totalorder %s35, 1
      %p212 = por %p210, %p211
      %p214 = scmp.ne.s32.totalorder %s199, %s213
      %p215 = scmp.eq.s32.totalorder %s35, 0
      %p216 = por %p214, %p215
      %s218 = sadd.s32 %s217, 1
      %p221 = scmp.eq.s32.totalorder %s29, 1
      %p222 = scmp.ne.s32.totalorder %s217, %s219
      %p223 = scmp.eq.s32.totalorder %s29, 0
      %p224 = por %p222, %p223
      %p225 = scmp.ne.s32.totalorder %s217, %s219
      %p226 = scmp.eq.s32.totalorder %s34, 1
      %p227 = por %p225, %p226
      %p228 = scmp.ne.s32.totalorder %s219, %s220
      %p229 = scmp.eq.s32.totalorder %s34, 0
      %p230 = por %p228, %p229
      %p231 = scmp.ne.s32.totalorder %s219, %s220
      %p232 = scmp.eq.s32.totalorder %s35, 1
      %p233 = por %p231, %p232
      %p235 = scmp.ne.s32.totalorder %s220, %s234
      %p236 = scmp.eq.s32.totalorder %s35, 0
      %p237 = por %p235, %p236
      %s239 = sadd.s32 %s238, 1
      %p242 = scmp.eq.s32.totalorder %s29, 1
      %p243 = scmp.ne.s32.totalorder %s238, %s240
      %p244 = scmp.eq.s32.totalorder %s29, 0
      %p245 = por %p243, %p244
      %p246 = scmp.ne.s32.totalorder %s238, %s240
      %p247 = scmp.eq.s32.totalorder %s34, 1
      %p248 = por %p246, %p247
      %p249 = scmp.ne.s32.totalorder %s240, %s241
      %p250 = scmp.eq.s32.totalorder %s34, 0
      %p251 = por %p249, %p250
      %p252 = scmp.ne.s32.totalorder %s240, %s241
      %p253 = scmp.eq.s32.totalorder %s35, 1
      %p254 = por %p252, %p253
      %p256 = scmp.ne.s32.totalorder %s241, %s255
      %p257 = scmp.eq.s32.totalorder %s35, 0
      %p258 = por %p256, %p257
      %s260 = sadd.s32 %s259, 1
      %p263 = scmp.eq.s32.totalorder %s29, 1
      %p264 = scmp.ne.s32.totalorder %s259, %s261
      %p265 = scmp.eq.s32.totalorder %s29, 0
      %p266 = por %p264, %p265
      %p267 = scmp.ne.s32.totalorder %s259, %s261
      %p268 = scmp.eq.s32.totalorder %s34, 1
      %p269 = por %p267, %p268
      %p270 = scmp.ne.s32.totalorder %s261, %s262
      %p271 = scmp.eq.s32.totalorder %s34, 0
      %p272 = por %p270, %p271
      %p273 = scmp.ne.s32.totalorder %s261, %s262
      %p274 = scmp.eq.s32.totalorder %s35, 1
      %p275 = por %p273, %p274
      %p277 = scmp.ne.s32.totalorder %s262, %s276
      %p278 = scmp.eq.s32.totalorder %s35, 0
      %p279 = por %p277, %p278
      %s281 = sadd.s32 %s280, 1
      %p284 = scmp.eq.s32.totalorder %s29, 1
      %p285 = scmp.ne.s32.totalorder %s280, %s282
      %p286 = scmp.eq.s32.totalorder %s29, 0
      %p287 = por %p285, %p286
      %p288 = scmp.ne.s32.totalorder %s280, %s282
      %p289 = scmp.eq.s32.totalorder %s34, 1
      %p290 = por %p288, %p289
      %p291 = scmp.ne.s32.totalorder %s282, %s283
      %p292 = scmp.eq.s32.totalorder %s34, 0
      %p293 = por %p291, %p292
      %p294 = scmp.ne.s32.totalorder %s282, %s283
      %p295 = scmp.eq.s32.totalorder %s35, 1
      %p296 = por %p294, %p295
      %p298 = scmp.ne.s32.totalorder %s283, %s297
      %p299 = scmp.eq.s32.totalorder %s35, 0
      %p300 = por %p298, %p299
      %s302 = sadd.s32 %s301, 1
      %p305 = scmp.eq.s32.totalorder %s29, 1
      %p306 = scmp.ne.s32.totalorder %s301, %s303
      %p307 = scmp.eq.s32.totalorder %s29, 0
      %p308 = por %p306, %p307
      %p309 = scmp.ne.s32.totalorder %s301, %s303
      %p310 = scmp.eq.s32.totalorder %s34, 1
      %p311 = por %p309, %p310
      %p312 = scmp.ne.s32.totalorder %s303, %s304
      %p313 = scmp.eq.s32.totalorder %s34, 0
      %p314 = por %p312, %p313
      %p315 = scmp.ne.s32.totalorder %s303, %s304
      %p316 = scmp.eq.s32.totalorder %s35, 1
      %p317 = por %p315, %p316
      %p319 = scmp.ne.s32.totalorder %s304, %s318
      %p320 = scmp.eq.s32.totalorder %s35, 0
      %p321 = por %p319, %p320
      %s323 = sadd.s32 %s322, 1
      %p326 = scmp.eq.s32.totalorder %s29, 1
      %p327 = scmp.ne.s32.totalorder %s322, %s324
      %p328 = scmp.eq.s32.totalorder %s29, 0
      %p329 = por %p327, %p328
      %p330 = scmp.ne.s32.totalorder %s322, %s324
      %p331 = scmp.eq.s32.totalorder %s34, 1
      %p332 = por %p330, %p331
      %p333 = scmp.ne.s32.totalorder %s324, %s325
      %p334 = scmp.eq.s32.totalorder %s34, 0
      %p335 = por %p333, %p334
      %p336 = scmp.ne.s32.totalorder %s324, %s325
      %p337 = scmp.eq.s32.totalorder %s35, 1
      %p338 = por %p336, %p337
      %p340 = scmp.ne.s32.totalorder %s325, %s339
      %p341 = scmp.eq.s32.totalorder %s35, 0
      %p342 = por %p340, %p341
      %p343 = scmp.le.s32.totalorder 1, %s29
      %p344 = scmp.lt.s32.totalorder %s29, 3
      %p345 = pnand %p343, %p344
      %p346 = pneg %p345
      // Predicated region
      $region9: #{tpu_custom_call.1} parent=5 // pred_check
        _
      $region10: #{tpu_custom_call.1} parent=5 // pred_check_branch
        %348 = sbr.rel (%p345) target = $region12
      $region11: #{tpu_custom_call.1} parent=5 // pred_region
        %s349 = ssub.s32 %s29, 1
        // Predicated region
        $region13: #{tpu_custom_call.1} parent=11 // pred_check
          %p350 = pneg %p104
        $region14: #{tpu_custom_call.1} parent=11 // pred_check_branch
          %352 = sbr.rel (%p350) target = $region16
        $region15: #{tpu_custom_call.1} parent=11 // pred_region
          _
        $region16: #{tpu_custom_call.1} parent=11 // pred_fallthru
          _
        // Predicated region
        $region17: #{tpu_custom_call.1} parent=11 // pred_check
          %p353 = pneg %p125
        $region18: #{tpu_custom_call.1} parent=11 // pred_check_branch
          %355 = sbr.rel (%p353) target = $region20
        $region19: #{tpu_custom_call.1} parent=11 // pred_region
          _
        $region20: #{tpu_custom_call.1} parent=11 // pred_fallthru
          _
        // Predicated region
        $region21: #{tpu_custom_call.1} parent=11 // pred_check
          %p356 = pneg %p146
        $region22: #{tpu_custom_call.1} parent=11 // pred_check_branch
          %358 = sbr.rel (%p356) target = $region24
        $region23: #{tpu_custom_call.1} parent=11 // pred_region
          _
        $region24: #{tpu_custom_call.1} parent=11 // pred_fallthru
          _
        // Predicated region
        $region25: #{tpu_custom_call.1} parent=11 // pred_check
          %p359 = pneg %p167
        $region26: #{tpu_custom_call.1} parent=11 // pred_check_branch
          %361 = sbr.rel (%p359) target = $region28
        $region27: #{tpu_custom_call.1} parent=11 // pred_region
          _
        $region28: #{tpu_custom_call.1} parent=11 // pred_fallthru
          _
        // Predicated region
        $region29: #{tpu_custom_call.1} parent=11 // pred_check
          %p362 = pneg %p188
        $region30: #{tpu_custom_call.1} parent=11 // pred_check_branch
          %364 = sbr.rel (%p362) target = $region32
        $region31: #{tpu_custom_call.1} parent=11 // pred_region
          _
        $region32: #{tpu_custom_call.1} parent=11 // pred_fallthru
          _
        // Predicated region
        $region33: #{tpu_custom_call.1} parent=11 // pred_check
          %p365 = pneg %p209
        $region34: #{tpu_custom_call.1} parent=11 // pred_check_branch
          %367 = sbr.rel (%p365) target = $region36
        $region35: #{tpu_custom_call.1} parent=11 // pred_region
          _
        $region36: #{tpu_custom_call.1} parent=11 // pred_fallthru
          _
        // Predicated region
        $region37: #{tpu_custom_call.1} parent=11 // pred_check
          %p368 = pneg %p230
        $region38: #{tpu_custom_call.1} parent=11 // pred_check_branch
          %370 = sbr.rel (%p368) target = $region40
        $region39: #{tpu_custom_call.1} parent=11 // pred_region
          _
        $region40: #{tpu_custom_call.1} parent=11 // pred_fallthru
          _
        // Predicated region
        $region41: #{tpu_custom_call.1} parent=11 // pred_check
          %p371 = pneg %p251
        $region42: #{tpu_custom_call.1} parent=11 // pred_check_branch
          %373 = sbr.rel (%p371) target = $region44
        $region43: #{tpu_custom_call.1} parent=11 // pred_region
          _
        $region44: #{tpu_custom_call.1} parent=11 // pred_fallthru
          _
        // Predicated region
        $region45: #{tpu_custom_call.1} parent=11 // pred_check
          %p374 = pneg %p272
        $region46: #{tpu_custom_call.1} parent=11 // pred_check_branch
          %376 = sbr.rel (%p374) target = $region48
        $region47: #{tpu_custom_call.1} parent=11 // pred_region
          _
        $region48: #{tpu_custom_call.1} parent=11 // pred_fallthru
          _
        // Predicated region
        $region49: #{tpu_custom_call.1} parent=11 // pred_check
          %p377 = pneg %p293
        $region50: #{tpu_custom_call.1} parent=11 // pred_check_branch
          %379 = sbr.rel (%p377) target = $region52
        $region51: #{tpu_custom_call.1} parent=11 // pred_region
          _
        $region52: #{tpu_custom_call.1} parent=11 // pred_fallthru
          _
        // Predicated region
        $region53: #{tpu_custom_call.1} parent=11 // pred_check
          %p380 = pneg %p314
        $region54: #{tpu_custom_call.1} parent=11 // pred_check_branch
          %382 = sbr.rel (%p380) target = $region56
        $region55: #{tpu_custom_call.1} parent=11 // pred_region
          _
        $region56: #{tpu_custom_call.1} parent=11 // pred_fallthru
          _
      $region12: #{tpu_custom_call.1} parent=5 // pred_fallthru
        _
      %p383 = scmp.lt.s32.totalorder %s29, 2
      // Predicated region
      $region57: #{tpu_custom_call.1} parent=5 // pred_check
        %p384 = pneg %p383
      $region58: #{tpu_custom_call.1} parent=5 // pred_check_branch
        %386 = sbr.rel (%p384) target = $region60
      $region59: #{tpu_custom_call.1} parent=5 // pred_region
        // Predicated region
        $region61: #{tpu_custom_call.1} parent=59 // pred_check
          %p387 = pneg %p49
        $region62: #{tpu_custom_call.1} parent=59 // pred_check_branch
          %389 = sbr.rel (%p387) target = $region64
        $region63: #{tpu_custom_call.1} parent=59 // pred_region
          %p390 = scmp.lt.s32.totalorder %s29, 1
          %s391 = scalar_select %p390, %s29, 1
          %s392 = scalar_lea.vmem %s1, %s391
        $region64: #{tpu_custom_call.1} parent=59 // pred_fallthru
          _
        // Predicated region
        $region65: #{tpu_custom_call.1} parent=59 // pred_check
          %p393 = pneg %p77
        $region66: #{tpu_custom_call.1} parent=59 // pred_check_branch
          %395 = sbr.rel (%p393) target = $region68
        $region67: #{tpu_custom_call.1} parent=59 // pred_region
          %s396 = sld [smem:[#allocation4 + %s29]]
          %p397 = scmp.lt.s32.totalorder %s396, 5859
          %s398 = scalar_select %p397, %s396, 5859
          %s399 = scalar_lea.vmem %s2, %s398
          %s400 = sld [smem:[#allocation4 + %s29]]
        $region68: #{tpu_custom_call.1} parent=59 // pred_fallthru
          _
      $region60: #{tpu_custom_call.1} parent=5 // pred_fallthru
        _
      %p401 = scmp.le.s32.totalorder 1, %s29
      %p402 = scmp.lt.s32.totalorder %s29, 3
      %p403 = pnand %p401, %p402
      %p404 = pneg %p403
      // Predicated region
      $region69: #{tpu_custom_call.1} parent=5 // pred_check
        _
      $region70: #{tpu_custom_call.1} parent=5 // pred_check_branch
        %406 = sbr.rel (%p403) target = $region72
      $region71: #{tpu_custom_call.1} parent=5 // pred_region
        %s407 = ssub.s32 %s29, 1
        %p408 = scmp.lt.s32.totalorder %s34, 1
        %s409 = scalar_select %p408, %s34, 1
        %s410 = scalar_lea.vmem %s1, %s409
        %p411 = pneg %p55
        %p412 = pneg %p52
        %s413 = sld [smem:[#allocation4 + %s34]]
        %p414 = scmp.lt.s32.totalorder %s413, 5859
        %s415 = scalar_select %p414, %s413, 5859
        %s416 = scalar_lea.vmem %s2, %s415
        %p417 = pneg %p83
        %p418 = pneg %p80
        %p419 = pneg %p104
        %p420 = pneg %p101
        %p421 = pneg %p125
        %p422 = pneg %p122
        %p423 = pneg %p146
        %p424 = pneg %p143
        %p425 = pneg %p167
        %p426 = pneg %p164
        %p427 = pneg %p188
        %p428 = pneg %p185
        %p429 = pneg %p209
        %p430 = pneg %p206
        %p431 = pneg %p230
        %p432 = pneg %p227
        %p433 = pneg %p251
        %p434 = pneg %p248
        %p435 = pneg %p272
        %p436 = pneg %p269
        %p437 = pneg %p293
        %p438 = pneg %p290
        %p439 = pneg %p314
        %p440 = pneg %p311
        %p441 = pneg %p335
        %p442 = pneg %p332
        %p443 = scmp.lt.s32.totalorder %s34, 1
        %s444 = scalar_select %p443, %s34, 1
        %s445 = scalar_lea.vmem %s1, %s444
        %s446 = sld [smem:[#allocation4 + %s34]]
        %p447 = scmp.lt.s32.totalorder %s446, 5859
        %s448 = scalar_select %p447, %s446, 5859
        %s449 = scalar_lea.vmem %s2, %s448
        %s450 = sld [smem:[#allocation4 + %s34]]
        %v451 = vld [vmem:[%s445] sm:$0x1]
        %v452 = vld [vmem:[%s3] sm:$0xff]
        %v453 = vld [vmem:[%s3 + $0x8] sm:$0xff]
        %v454 = vld [vmem:[%s3 + $0x10] sm:$0xff]
        %v455 = vld [vmem:[%s3 + $0x18] sm:$0xff]
        %v456 = vld [vmem:[%s3 + $0x20] sm:$0xff]
        %v457 = vld [vmem:[%s3 + $0x28] sm:$0xff]
        %v458 = vld [vmem:[%s3 + $0x30] sm:$0xff]
        %v459 = vld [vmem:[%s3 + $0x38] sm:$0xff]
        %v460 = vld [vmem:[%s3 + $0x40] sm:$0xff]
        %v461 = vld [vmem:[%s3 + $0x48] sm:$0xff]
        %v462 = vld [vmem:[%s3 + $0x50] sm:$0xff]
        %v463 = vld [vmem:[%s3 + $0x58] sm:$0xff]
        %v464 = vld [vmem:[%s3 + $0x60] sm:$0xff]
        %v465 = vld [vmem:[%s3 + $0x68] sm:$0xff]
        %v466 = vld [vmem:[%s3 + $0x70] sm:$0xff]
        %v467 = vld [vmem:[%s3 + $0x78] sm:$0xff]
        %v468 = vld [vmem:[%s3 + $0x80] sm:$0xff]
        %v469 = vld [vmem:[%s3 + $0x88] sm:$0xff]
        %v470 = vld [vmem:[%s3 + $0x90] sm:$0xff]
        %v471 = vld [vmem:[%s3 + $0x98] sm:$0xff]
        %v472 = vld [vmem:[%s3 + $0xa0] sm:$0xff]
        %v473 = vld [vmem:[%s3 + $0xa8] sm:$0xff]
        %v474 = vld [vmem:[%s3 + $0xb0] sm:$0xff]
        %v475 = vld [vmem:[%s3 + $0xb8] sm:$0xff]
        %v476 = vld [vmem:[%s3 + $0xc0] sm:$0xff]
        %v477 = vld [vmem:[%s3 + $0xc8] sm:$0xff]
        %v478 = vld [vmem:[%s3 + $0xd0] sm:$0xff]
        %v479 = vld [vmem:[%s3 + $0xd8] sm:$0xff]
        %v480 = vld [vmem:[%s3 + $0xe0] sm:$0xff]
        %v481 = vld [vmem:[%s3 + $0xe8] sm:$0xff]
        %v482 = vld [vmem:[%s3 + $0xf0] sm:$0xff]
        %v483 = vld [vmem:[%s3 + $0xf8] sm:$0xff]
        %v484 = vld [vmem:[%s3 + $0x100] sm:$0xff]
        %v485 = vld [vmem:[%s3 + $0x108] sm:$0xff]
        %v486 = vld [vmem:[%s3 + $0x110] sm:$0xff]
        %v487 = vld [vmem:[%s3 + $0x118] sm:$0xff]
        %v488 = vld [vmem:[%s3 + $0x120] sm:$0xff]
        %v489 = vld [vmem:[%s3 + $0x128] sm:$0xff]
        %v490 = vld [vmem:[%s3 + $0x130] sm:$0xff]
        %v491 = vld [vmem:[%s3 + $0x138] sm:$0xff]
        %v492 = vld [vmem:[%s3 + $0x140] sm:$0xff]
        %v493 = vld [vmem:[%s3 + $0x148] sm:$0xff]
        %v494 = vld [vmem:[%s3 + $0x150] sm:$0xff]
        %v495 = vld [vmem:[%s3 + $0x158] sm:$0xff]
        %v496 = vld [vmem:[%s3 + $0x160] sm:$0xff]
        %v497 = vld [vmem:[%s3 + $0x168] sm:$0xff]
        %v498 = vld [vmem:[%s3 + $0x170] sm:$0xff]
        %v499 = vld [vmem:[%s3 + $0x178] sm:$0xff]
        %v500 = vld [vmem:[%s3 + $0x180] sm:$0xff]
        %v501 = vld [vmem:[%s3 + $0x188] sm:$0xff]
        %v502 = vld [vmem:[%s3 + $0x190] sm:$0xff]
        %v503 = vld [vmem:[%s3 + $0x198] sm:$0xff]
        %v504 = vld [vmem:[%s3 + $0x1a0] sm:$0xff]
        %v505 = vld [vmem:[%s3 + $0x1a8] sm:$0xff]
        %v506 = vld [vmem:[%s3 + $0x1b0] sm:$0xff]
        %v507 = vld [vmem:[%s3 + $0x1b8] sm:$0xff]
        %v508 = vld [vmem:[%s3 + $0x1c0] sm:$0xff]
        %v509 = vld [vmem:[%s3 + $0x1c8] sm:$0xff]
        %v510 = vld [vmem:[%s3 + $0x1d0] sm:$0xff]
        %v511 = vld [vmem:[%s3 + $0x1d8] sm:$0xff]
        %v512 = vld [vmem:[%s3 + $0x1e0] sm:$0xff]
        %v513 = vld [vmem:[%s3 + $0x1e8] sm:$0xff]
        %v514 = vld [vmem:[%s3 + $0x1f0] sm:$0xff]
        %v515 = vld [vmem:[%s3 + $0x1f8] sm:$0xff]
        %v516 = vld [vmem:[%s3 + $0x200] sm:$0xff]
        %v517 = vld [vmem:[%s3 + $0x208] sm:$0xff]
        %v518 = vld [vmem:[%s3 + $0x210] sm:$0xff]
        %v519 = vld [vmem:[%s3 + $0x218] sm:$0xff]
        %v520 = vld [vmem:[%s3 + $0x220] sm:$0xff]
        %v521 = vld [vmem:[%s3 + $0x228] sm:$0xff]
        %v522 = vld [vmem:[%s3 + $0x230] sm:$0xff]
        %v523 = vld [vmem:[%s3 + $0x238] sm:$0xff]
        %v524 = vld [vmem:[%s3 + $0x240] sm:$0xff]
        %v525 = vld [vmem:[%s3 + $0x248] sm:$0xff]
        %v526 = vld [vmem:[%s3 + $0x250] sm:$0xff]
        %v527 = vld [vmem:[%s3 + $0x258] sm:$0xff]
        %v528 = vld [vmem:[%s3 + $0x260] sm:$0xff]
        %v529 = vld [vmem:[%s3 + $0x268] sm:$0xff]
        %v530 = vld [vmem:[%s3 + $0x270] sm:$0xff]
        %v531 = vld [vmem:[%s3 + $0x278] sm:$0xff]
        %v532 = vld [vmem:[%s3 + $0x280] sm:$0xff]
        %v533 = vld [vmem:[%s3 + $0x288] sm:$0xff]
        %v534 = vld [vmem:[%s3 + $0x290] sm:$0xff]
        %v535 = vld [vmem:[%s3 + $0x298] sm:$0xff]
        %v536 = vld [vmem:[%s3 + $0x2a0] sm:$0xf]
        %v537 = vld [vmem:[%s3 + $0x2a8] sm:$0xf]
        %v538 = vld [vmem:[%s3 + $0x2b0] sm:$0xf]
        %v539 = vld [vmem:[%s3 + $0x2b8] sm:$0xf]
        %v540 = vld [vmem:[%s3 + $0x2c0] sm:$0xf]
        %v541 = vld [vmem:[%s3 + $0x2c8] sm:$0xf]
        %v542 = vld [vmem:[%s3 + $0x2d0] sm:$0xf]
        %v543 = vld [vmem:[%s4] sm:$0x7f]
        %v545 = vlaneseq
        %v546 = vshrl.u32 %v545, 7
        %v547 = vsub.s32 0, %v546
        %v548 = vrot.slane %v543, %v547
        %v549 = vlaneseq
        %v550 = vshrl.u32 %v549, 7
        %v551 = vsub.s32 1, %v550
        %v552 = vrot.slane %v543, %v551
        %v553 = vlaneseq
        %v554 = vshrl.u32 %v553, 7
        %v555 = vsub.s32 2, %v554
        %v556 = vrot.slane %v543, %v555
        %v557 = vlaneseq
        %v558 = vshrl.u32 %v557, 7
        %v559 = vsub.s32 3, %v558
        %v560 = vrot.slane %v543, %v559
        %v561 = vlaneseq
        %v562 = vshrl.u32 %v561, 7
        %v563 = vsub.s32 4, %v562
        %v564 = vrot.slane %v543, %v563
        %v565 = vlaneseq
        %v566 = vshrl.u32 %v565, 7
        %v567 = vsub.s32 5, %v566
        %v568 = vrot.slane %v543, %v567
        %v569 = vlaneseq
        %v570 = vshrl.u32 %v569, 7
        %v571 = vsub.s32 6, %v570
        %v572 = vrot.slane %v543, %v571
        %vm580 = vcmask 818176
        %v582 = vsel %vm580, %v451, 0
        %vm584 = vcmask 1043456
        %v586 = vsel %vm584, %v536, 0
        %v589 = vsel %vm584, %v537, 0
        %v592 = vsel %vm584, %v538, 0
        %v595 = vsel %vm584, %v539, 0
        %v598 = vsel %vm584, %v540, 0
        %v601 = vsel %vm584, %v541, 0
        %v604 = vsel %vm584, %v542, 0
        %606 = vmatprep.subr.mxu0 0.0
        %607 = vmatpush1.msra.mxu0 0.0
        %608 = vmatprep.subr.mxu0 0.0
        %609 = vmatpush1.msra.mxu0 0.0
        %610 = vmatprep.subr.mxu0 0.0
        %611 = vmatpush1.msra.mxu0 0.0
        %612 = vmatprep.subr.mxu0 %v589
        %613 = vmatpush1.msra.mxu0 %v586
        %614 = vmatprep.subr.mxu0 %v530
        %615 = vmatpush1.msra.mxu0 %v529
        %616 = vmatprep.subr.mxu0 %v523
        %617 = vmatpush1.msra.mxu0 %v522
        %618 = vmatprep.subr.mxu0 %v516
        %619 = vmatpush1.msra.mxu0 %v515
        %620 = vmatprep.subr.mxu0 %v509
        %621 = vmatpush1.msra.mxu0 %v508
        %622 = vmatprep.subr.mxu0 %v502
        %623 = vmatpush1.msra.mxu0 %v501
        %624 = vmatprep.subr.mxu0 %v495
        %625 = vmatpush1.msra.mxu0 %v494
        %626 = vmatprep.subr.mxu0 %v488
        %627 = vmatpush1.msra.mxu0 %v487
        %628 = vmatprep.subr.mxu0 %v481
        %629 = vmatpush1.msra.mxu0 %v480
        %630 = vmatprep.subr.mxu0 %v474
        %631 = vmatpush1.msra.mxu0 %v473
        %632 = vmatprep.subr.mxu0 %v467
        %633 = vmatpush1.msra.mxu0 %v466
        %634 = vmatprep.subr.mxu0 %v460
        %635 = vmatpush1.msra.mxu0 %v459
        %636 = vmatprep.subr.mxu0 %v453
        %637 = vmatpush1.msra.mxu0 %v452
        %638 = vmatprep.subr.mxu0 0.0
        %639 = vmatpush2.msra.mxu0 0.0
        %640 = vmatprep.subr.mxu0 0.0
        %641 = vmatpush2.msra.mxu0 0.0
        %642 = vmatprep.subr.mxu0 0.0
        %643 = vmatpush2.msra.mxu0 0.0
        %644 = vmatprep.subr.mxu0 0.0
        %645 = vmatpush2.msra.mxu0 0.0
        %646 = vmatprep.subr.mxu0 0.0
        %647 = vmatpush2.msra.mxu0 0.0
        %648 = vmatprep.subr.mxu0 0.0
        %649 = vmatpush2.msra.mxu0 0.0
        %650 = vmatprep.subr.mxu0 0.0
        %651 = vmatpush2.msra.mxu0 0.0
        %652 = vmatprep.subr.mxu0 0.0
        %653 = vmatpush2.msra.mxu0 0.0
        %654 = vmatprep.subr.mxu0 0.0
        %655 = vmatpush2.msra.mxu0 0.0
        %656 = vmatprep.subr.mxu0 0.0
        %657 = vmatpush2.msra.mxu0 0.0
        %658 = vmatprep.subr.mxu0 0.0
        %659 = vmatpush2.msra.mxu0 0.0
        %660 = vmatprep.subr.mxu0 0.0
        %661 = vmatpush2.msra.mxu0 0.0
        %662 = vmatprep.subr.mxu0 0.0
        %663 = vmatpush2.msra.mxu0 0.0
        %664 = vmatprep.subr.mxu0 0.0
        %665 = vmatpush2.msra.mxu0 0.0
        %666 = vmatprep.subr.mxu0 0.0
        %667 = vmatpush2.msra.mxu0 0.0
        %668 = vmatprep.subr.mxu0 0.0
        %669 = vmatpush2.msra.mxu0 0.0
        %670 = vmatprep.mubr.f32.mxu0 0.0
        %671 = vmatmul.mubr.f32.gmra.mxu0 %v582
        %v672 = vpop.f32.mrf.mxu0
        %v673 = vadd.f32 %v548, %v672
        %v674 = vpop.f32.mrf.mxu0
        %v675 = vadd.f32 %v552, %v674
        %676 = vdwg.mxu0
        %677 = vmatprep.subr.mxu0 0.0
        %678 = vmatpush1.msra.mxu0 0.0
        %679 = vmatprep.subr.mxu0 0.0
        %680 = vmatpush1.msra.mxu0 0.0
        %681 = vmatprep.subr.mxu0 0.0
        %682 = vmatpush1.msra.mxu0 0.0
        %683 = vmatprep.subr.mxu0 %v595
        %684 = vmatpush1.msra.mxu0 %v592
        %685 = vmatprep.subr.mxu0 %v532
        %686 = vmatpush1.msra.mxu0 %v531
        %687 = vmatprep.subr.mxu0 %v525
        %688 = vmatpush1.msra.mxu0 %v524
        %689 = vmatprep.subr.mxu0 %v518
        %690 = vmatpush1.msra.mxu0 %v517
        %691 = vmatprep.subr.mxu0 %v511
        %692 = vmatpush1.msra.mxu0 %v510
        %693 = vmatprep.subr.mxu0 %v504
        %694 = vmatpush1.msra.mxu0 %v503
        %695 = vmatprep.subr.mxu0 %v497
        %696 = vmatpush1.msra.mxu0 %v496
        %697 = vmatprep.subr.mxu0 %v490
        %698 = vmatpush1.msra.mxu0 %v489
        %699 = vmatprep.subr.mxu0 %v483
        %700 = vmatpush1.msra.mxu0 %v482
        %701 = vmatprep.subr.mxu0 %v476
        %702 = vmatpush1.msra.mxu0 %v475
        %703 = vmatprep.subr.mxu0 %v469
        %704 = vmatpush1.msra.mxu0 %v468
        %705 = vmatprep.subr.mxu0 %v462
        %706 = vmatpush1.msra.mxu0 %v461
        %707 = vmatprep.subr.mxu0 %v455
        %708 = vmatpush1.msra.mxu0 %v454
        %709 = vmatprep.subr.mxu0 0.0
        %710 = vmatpush2.msra.mxu0 0.0
        %711 = vmatprep.subr.mxu0 0.0
        %712 = vmatpush2.msra.mxu0 0.0
        %713 = vmatprep.subr.mxu0 0.0
        %714 = vmatpush2.msra.mxu0 0.0
        %715 = vmatprep.subr.mxu0 0.0
        %716 = vmatpush2.msra.mxu0 0.0
        %717 = vmatprep.subr.mxu0 0.0
        %718 = vmatpush2.msra.mxu0 0.0
        %719 = vmatprep.subr.mxu0 0.0
        %720 = vmatpush2.msra.mxu0 0.0
        %721 = vmatprep.subr.mxu0 0.0
        %722 = vmatpush2.msra.mxu0 0.0
        %723 = vmatprep.subr.mxu0 0.0
        %724 = vmatpush2.msra.mxu0 0.0
        %725 = vmatprep.subr.mxu0 0.0
        %726 = vmatpush2.msra.mxu0 0.0
        %727 = vmatprep.subr.mxu0 0.0
        %728 = vmatpush2.msra.mxu0 0.0
        %729 = vmatprep.subr.mxu0 0.0
        %730 = vmatpush2.msra.mxu0 0.0
        %731 = vmatprep.subr.mxu0 0.0
        %732 = vmatpush2.msra.mxu0 0.0
        %733 = vmatprep.subr.mxu0 0.0
        %734 = vmatpush2.msra.mxu0 0.0
        %735 = vmatprep.subr.mxu0 0.0
        %736 = vmatpush2.msra.mxu0 0.0
        %737 = vmatprep.subr.mxu0 0.0
        %738 = vmatpush2.msra.mxu0 0.0
        %739 = vmatprep.subr.mxu0 0.0
        %740 = vmatpush2.msra.mxu0 0.0
        %741 = vmatprep.mubr.f32.mxu0 0.0
        %742 = vmatmul.mubr.f32.gmra.mxu0 %v582
        %v743 = vpop.f32.mrf.mxu0
        %v744 = vadd.f32 %v556, %v743
        %v745 = vpop.f32.mrf.mxu0
        %v746 = vadd.f32 %v560, %v745
        %747 = vdwg.mxu0
        %748 = vmatprep.subr.mxu0 0.0
        %749 = vmatpush1.msra.mxu0 0.0
        %750 = vmatprep.subr.mxu0 0.0
        %751 = vmatpush1.msra.mxu0 0.0
        %752 = vmatprep.subr.mxu0 0.0
        %753 = vmatpush1.msra.mxu0 0.0
        %754 = vmatprep.subr.mxu0 %v601
        %755 = vmatpush1.msra.mxu0 %v598
        %756 = vmatprep.subr.mxu0 %v534
        %757 = vmatpush1.msra.mxu0 %v533
        %758 = vmatprep.subr.mxu0 %v527
        %759 = vmatpush1.msra.mxu0 %v526
        %760 = vmatprep.subr.mxu0 %v520
        %761 = vmatpush1.msra.mxu0 %v519
        %762 = vmatprep.subr.mxu0 %v513
        %763 = vmatpush1.msra.mxu0 %v512
        %764 = vmatprep.subr.mxu0 %v506
        %765 = vmatpush1.msra.mxu0 %v505
        %766 = vmatprep.subr.mxu0 %v499
        %767 = vmatpush1.msra.mxu0 %v498
        %768 = vmatprep.subr.mxu0 %v492
        %769 = vmatpush1.msra.mxu0 %v491
        %770 = vmatprep.subr.mxu0 %v485
        %771 = vmatpush1.msra.mxu0 %v484
        %772 = vmatprep.subr.mxu0 %v478
        %773 = vmatpush1.msra.mxu0 %v477
        %774 = vmatprep.subr.mxu0 %v471
        %775 = vmatpush1.msra.mxu0 %v470
        %776 = vmatprep.subr.mxu0 %v464
        %777 = vmatpush1.msra.mxu0 %v463
        %778 = vmatprep.subr.mxu0 %v457
        %779 = vmatpush1.msra.mxu0 %v456
        %780 = vmatprep.subr.mxu0 0.0
        %781 = vmatpush2.msra.mxu0 0.0
        %782 = vmatprep.subr.mxu0 0.0
        %783 = vmatpush2.msra.mxu0 0.0
        %784 = vmatprep.subr.mxu0 0.0
        %785 = vmatpush2.msra.mxu0 0.0
        %786 = vmatprep.subr.mxu0 0.0
        %787 = vmatpush2.msra.mxu0 0.0
        %788 = vmatprep.subr.mxu0 0.0
        %789 = vmatpush2.msra.mxu0 0.0
        %790 = vmatprep.subr.mxu0 0.0
        %791 = vmatpush2.msra.mxu0 0.0
        %792 = vmatprep.subr.mxu0 0.0
        %793 = vmatpush2.msra.mxu0 0.0
        %794 = vmatprep.subr.mxu0 0.0
        %795 = vmatpush2.msra.mxu0 0.0
        %796 = vmatprep.subr.mxu0 0.0
        %797 = vmatpush2.msra.mxu0 0.0
        %798 = vmatprep.subr.mxu0 0.0
        %799 = vmatpush2.msra.mxu0 0.0
        %800 = vmatprep.subr.mxu0 0.0
        %801 = vmatpush2.msra.mxu0 0.0
        %802 = vmatprep.subr.mxu0 0.0
        %803 = vmatpush2.msra.mxu0 0.0
        %804 = vmatprep.subr.mxu0 0.0
        %805 = vmatpush2.msra.mxu0 0.0
        %806 = vmatprep.subr.mxu0 0.0
        %807 = vmatpush2.msra.mxu0 0.0
        %808 = vmatprep.subr.mxu0 0.0
        %809 = vmatpush2.msra.mxu0 0.0
        %810 = vmatprep.subr.mxu0 0.0
        %811 = vmatpush2.msra.mxu0 0.0
        %812 = vmatprep.mubr.f32.mxu0 0.0
        %813 = vmatmul.mubr.f32.gmra.mxu0 %v582
        %v814 = vpop.f32.mrf.mxu0
        %v815 = vadd.f32 %v564, %v814
        %v816 = vpop.f32.mrf.mxu0
        %v817 = vadd.f32 %v568, %v816
        %818 = vdwg.mxu0
        %819 = vmatprep.subr.mxu0 0.0
        %820 = vmatpush1.msra.mxu0 0.0
        %821 = vmatprep.subr.mxu0 0.0
        %822 = vmatpush1.msra.mxu0 0.0
        %823 = vmatprep.subr.mxu0 0.0
        %824 = vmatpush1.msra.mxu0 0.0
        %825 = vmatprep.subr.mxu0 0.0
        %826 = vmatpush1.msra.mxu0 %v604
        %827 = vmatprep.subr.mxu0 0.0
        %828 = vmatpush1.msra.mxu0 %v535
        %829 = vmatprep.subr.mxu0 0.0
        %830 = vmatpush1.msra.mxu0 %v528
        %831 = vmatprep.subr.mxu0 0.0
        %832 = vmatpush1.msra.mxu0 %v521
        %833 = vmatprep.subr.mxu0 0.0
        %834 = vmatpush1.msra.mxu0 %v514
        %835 = vmatprep.subr.mxu0 0.0
        %836 = vmatpush1.msra.mxu0 %v507
        %837 = vmatprep.subr.mxu0 0.0
        %838 = vmatpush1.msra.mxu0 %v500
        %839 = vmatprep.subr.mxu0 0.0
        %840 = vmatpush1.msra.mxu0 %v493
        %841 = vmatprep.subr.mxu0 0.0
        %842 = vmatpush1.msra.mxu0 %v486
        %843 = vmatprep.subr.mxu0 0.0
        %844 = vmatpush1.msra.mxu0 %v479
        %845 = vmatprep.subr.mxu0 0.0
        %846 = vmatpush1.msra.mxu0 %v472
        %847 = vmatprep.subr.mxu0 0.0
        %848 = vmatpush1.msra.mxu0 %v465
        %849 = vmatprep.subr.mxu0 0.0
        %850 = vmatpush1.msra.mxu0 %v458
        %851 = vmatprep.subr.mxu0 0.0
        %852 = vmatpush2.msra.mxu0 0.0
        %853 = vmatprep.subr.mxu0 0.0
        %854 = vmatpush2.msra.mxu0 0.0
        %855 = vmatprep.subr.mxu0 0.0
        %856 = vmatpush2.msra.mxu0 0.0
        %857 = vmatprep.subr.mxu0 0.0
        %858 = vmatpush2.msra.mxu0 0.0
        %859 = vmatprep.subr.mxu0 0.0
        %860 = vmatpush2.msra.mxu0 0.0
        %861 = vmatprep.subr.mxu0 0.0
        %862 = vmatpush2.msra.mxu0 0.0
        %863 = vmatprep.subr.mxu0 0.0
        %864 = vmatpush2.msra.mxu0 0.0
        %865 = vmatprep.subr.mxu0 0.0
        %866 = vmatpush2.msra.mxu0 0.0
        %867 = vmatprep.subr.mxu0 0.0
        %868 = vmatpush2.msra.mxu0 0.0
        %869 = vmatprep.subr.mxu0 0.0
        %870 = vmatpush2.msra.mxu0 0.0
        %871 = vmatprep.subr.mxu0 0.0
        %872 = vmatpush2.msra.mxu0 0.0
        %873 = vmatprep.subr.mxu0 0.0
        %874 = vmatpush2.msra.mxu0 0.0
        %875 = vmatprep.subr.mxu0 0.0
        %876 = vmatpush2.msra.mxu0 0.0
        %877 = vmatprep.subr.mxu0 0.0
        %878 = vmatpush2.msra.mxu0 0.0
        %879 = vmatprep.subr.mxu0 0.0
        %880 = vmatpush2.msra.mxu0 0.0
        %881 = vmatprep.subr.mxu0 0.0
        %882 = vmatpush2.msra.mxu0 0.0
        %883 = vmatprep.mubr.f32.mxu0 0.0
        %884 = vmatmul.mubr.f32.gmra.mxu0 %v582
        %v885 = vpop.f32.mrf.mxu0
        %v886 = vadd.f32 %v572, %v885
        %v887 = vpop.f32.mrf.mxu0
        %888 = vdwg.mxu0
        %v889 = vld [vmem:[%s449] sm:$0x1]
        %v890 = vld [vmem:[%s5] sm:$0xff]
        %v891 = vld [vmem:[%s5 + $0x8] sm:$0xff]
        %v892 = vld [vmem:[%s5 + $0x10] sm:$0xff]
        %v893 = vld [vmem:[%s5 + $0x18] sm:$0xff]
        %v894 = vld [vmem:[%s5 + $0x20] sm:$0xff]
        %v895 = vld [vmem:[%s5 + $0x28] sm:$0xff]
        %v896 = vld [vmem:[%s5 + $0x30] sm:$0xff]
        %v897 = vld [vmem:[%s5 + $0x38] sm:$0xff]
        %v898 = vld [vmem:[%s5 + $0x40] sm:$0xff]
        %v899 = vld [vmem:[%s5 + $0x48] sm:$0xff]
        %v900 = vld [vmem:[%s5 + $0x50] sm:$0xff]
        %v901 = vld [vmem:[%s5 + $0x58] sm:$0xff]
        %v902 = vld [vmem:[%s5 + $0x60] sm:$0xff]
        %v903 = vld [vmem:[%s5 + $0x68] sm:$0xff]
        %v904 = vld [vmem:[%s5 + $0x70] sm:$0xff]
        %v905 = vld [vmem:[%s5 + $0x78] sm:$0xff]
        %v906 = vld [vmem:[%s5 + $0x80] sm:$0xff]
        %v907 = vld [vmem:[%s5 + $0x88] sm:$0xff]
        %v908 = vld [vmem:[%s5 + $0x90] sm:$0xff]
        %v909 = vld [vmem:[%s5 + $0x98] sm:$0xff]
        %v910 = vld [vmem:[%s5 + $0xa0] sm:$0xff]
        %v911 = vld [vmem:[%s5 + $0xa8] sm:$0xff]
        %v912 = vld [vmem:[%s5 + $0xb0] sm:$0xff]
        %v913 = vld [vmem:[%s5 + $0xb8] sm:$0xff]
        %v914 = vld [vmem:[%s5 + $0xc0] sm:$0xff]
        %v915 = vld [vmem:[%s5 + $0xc8] sm:$0xff]
        %v916 = vld [vmem:[%s5 + $0xd0] sm:$0xff]
        %v917 = vld [vmem:[%s5 + $0xd8] sm:$0xff]
        %v918 = vld [vmem:[%s5 + $0xe0] sm:$0xff]
        %v919 = vld [vmem:[%s5 + $0xe8] sm:$0xff]
        %v920 = vld [vmem:[%s5 + $0xf0] sm:$0xff]
        %v921 = vld [vmem:[%s5 + $0xf8] sm:$0xff]
        %v922 = vld [vmem:[%s5 + $0x100] sm:$0xff]
        %v923 = vld [vmem:[%s5 + $0x108] sm:$0xff]
        %v924 = vld [vmem:[%s5 + $0x110] sm:$0xff]
        %v925 = vld [vmem:[%s5 + $0x118] sm:$0xff]
        %v926 = vld [vmem:[%s5 + $0x120] sm:$0xff]
        %v927 = vld [vmem:[%s5 + $0x128] sm:$0xff]
        %v928 = vld [vmem:[%s5 + $0x130] sm:$0xff]
        %v929 = vld [vmem:[%s5 + $0x138] sm:$0xff]
        %v930 = vld [vmem:[%s5 + $0x140] sm:$0xff]
        %v931 = vld [vmem:[%s5 + $0x148] sm:$0xff]
        %v932 = vld [vmem:[%s5 + $0x150] sm:$0xff]
        %v933 = vld [vmem:[%s5 + $0x158] sm:$0xff]
        %v934 = vld [vmem:[%s5 + $0x160] sm:$0xff]
        %v935 = vld [vmem:[%s5 + $0x168] sm:$0xff]
        %v936 = vld [vmem:[%s5 + $0x170] sm:$0xff]
        %v937 = vld [vmem:[%s5 + $0x178] sm:$0xff]
        %v938 = vld [vmem:[%s5 + $0x180] sm:$0xff]
        %v939 = vld [vmem:[%s5 + $0x188] sm:$0xff]
        %v940 = vld [vmem:[%s5 + $0x190] sm:$0xff]
        %v941 = vld [vmem:[%s5 + $0x198] sm:$0xff]
        %v942 = vld [vmem:[%s5 + $0x1a0] sm:$0xff]
        %v943 = vld [vmem:[%s5 + $0x1a8] sm:$0xff]
        %v944 = vld [vmem:[%s5 + $0x1b0] sm:$0xff]
        %v945 = vld [vmem:[%s5 + $0x1b8] sm:$0xff]
        %v946 = vld [vmem:[%s5 + $0x1c0] sm:$0xff]
        %v947 = vld [vmem:[%s5 + $0x1c8] sm:$0xff]
        %v948 = vld [vmem:[%s5 + $0x1d0] sm:$0xff]
        %v949 = vld [vmem:[%s5 + $0x1d8] sm:$0xff]
        %v950 = vld [vmem:[%s5 + $0x1e0] sm:$0xff]
        %v951 = vld [vmem:[%s5 + $0x1e8] sm:$0xff]
        %v952 = vld [vmem:[%s5 + $0x1f0] sm:$0xff]
        %v953 = vld [vmem:[%s5 + $0x1f8] sm:$0xff]
        %v954 = vld [vmem:[%s5 + $0x200] sm:$0xff]
        %v955 = vld [vmem:[%s5 + $0x208] sm:$0xff]
        %v956 = vld [vmem:[%s5 + $0x210] sm:$0xff]
        %v957 = vld [vmem:[%s5 + $0x218] sm:$0xff]
        %v958 = vld [vmem:[%s5 + $0x220] sm:$0xff]
        %v959 = vld [vmem:[%s5 + $0x228] sm:$0xff]
        %v960 = vld [vmem:[%s5 + $0x230] sm:$0xff]
        %v961 = vld [vmem:[%s5 + $0x238] sm:$0xff]
        %v962 = vld [vmem:[%s5 + $0x240] sm:$0xff]
        %v963 = vld [vmem:[%s5 + $0x248] sm:$0xff]
        %v964 = vld [vmem:[%s5 + $0x250] sm:$0xff]
        %v965 = vld [vmem:[%s5 + $0x258] sm:$0xff]
        %v966 = vld [vmem:[%s5 + $0x260] sm:$0xff]
        %v967 = vld [vmem:[%s5 + $0x268] sm:$0xff]
        %v968 = vld [vmem:[%s5 + $0x270] sm:$0xff]
        %v969 = vld [vmem:[%s5 + $0x278] sm:$0xff]
        %v970 = vld [vmem:[%s5 + $0x280] sm:$0xff]
        %v971 = vld [vmem:[%s5 + $0x288] sm:$0xff]
        %v972 = vld [vmem:[%s5 + $0x290] sm:$0xff]
        %v973 = vld [vmem:[%s5 + $0x298] sm:$0xff]
        %v974 = vld [vmem:[%s5 + $0x2a0] sm:$0xf]
        %v975 = vld [vmem:[%s5 + $0x2a8] sm:$0xf]
        %v976 = vld [vmem:[%s5 + $0x2b0] sm:$0xf]
        %v977 = vld [vmem:[%s5 + $0x2b8] sm:$0xf]
        %v978 = vld [vmem:[%s5 + $0x2c0] sm:$0xf]
        %v979 = vld [vmem:[%s5 + $0x2c8] sm:$0xf]
        %v980 = vld [vmem:[%s5 + $0x2d0] sm:$0xf]
        %v981 = vld [vmem:[%s6] sm:$0x7f]
        %v983 = vlaneseq
        %v984 = vshrl.u32 %v983, 7
        %v985 = vsub.s32 0, %v984
        %v986 = vrot.slane %v981, %v985
        %v987 = vlaneseq
        %v988 = vshrl.u32 %v987, 7
        %v989 = vsub.s32 1, %v988
        %v990 = vrot.slane %v981, %v989
        %v991 = vlaneseq
        %v992 = vshrl.u32 %v991, 7
        %v993 = vsub.s32 2, %v992
        %v994 = vrot.slane %v981, %v993
        %v995 = vlaneseq
        %v996 = vshrl.u32 %v995, 7
        %v997 = vsub.s32 3, %v996
        %v998 = vrot.slane %v981, %v997
        %v999 = vlaneseq
        %v1000 = vshrl.u32 %v999, 7
        %v1001 = vsub.s32 4, %v1000
        %v1002 = vrot.slane %v981, %v1001
        %v1003 = vlaneseq
        %v1004 = vshrl.u32 %v1003, 7
        %v1005 = vsub.s32 5, %v1004
        %v1006 = vrot.slane %v981, %v1005
        %v1007 = vlaneseq
        %v1008 = vshrl.u32 %v1007, 7
        %v1009 = vsub.s32 6, %v1008
        %v1010 = vrot.slane %v981, %v1009
        %v1019 = vsel %vm580, %v889, 0
        %v1022 = vsel %vm584, %v974, 0
        %v1025 = vsel %vm584, %v975, 0
        %v1028 = vsel %vm584, %v976, 0
        %v1031 = vsel %vm584, %v977, 0
        %v1034 = vsel %vm584, %v978, 0
        %v1037 = vsel %vm584, %v979, 0
        %v1040 = vsel %vm584, %v980, 0
        %1042 = vmatprep.subr.mxu0 0.0
        %1043 = vmatpush1.msra.mxu0 0.0
        %1044 = vmatprep.subr.mxu0 0.0
        %1045 = vmatpush1.msra.mxu0 0.0
        %1046 = vmatprep.subr.mxu0 0.0
        %1047 = vmatpush1.msra.mxu0 0.0
        %1048 = vmatprep.subr.mxu0 %v1025
        %1049 = vmatpush1.msra.mxu0 %v1022
        %1050 = vmatprep.subr.mxu0 %v968
        %1051 = vmatpush1.msra.mxu0 %v967
        %1052 = vmatprep.subr.mxu0 %v961
        %1053 = vmatpush1.msra.mxu0 %v960
        %1054 = vmatprep.subr.mxu0 %v954
        %1055 = vmatpush1.msra.mxu0 %v953
        %1056 = vmatprep.subr.mxu0 %v947
        %1057 = vmatpush1.msra.mxu0 %v946
        %1058 = vmatprep.subr.mxu0 %v940
        %1059 = vmatpush1.msra.mxu0 %v939
        %1060 = vmatprep.subr.mxu0 %v933
        %1061 = vmatpush1.msra.mxu0 %v932
        %1062 = vmatprep.subr.mxu0 %v926
        %1063 = vmatpush1.msra.mxu0 %v925
        %1064 = vmatprep.subr.mxu0 %v919
        %1065 = vmatpush1.msra.mxu0 %v918
        %1066 = vmatprep.subr.mxu0 %v912
        %1067 = vmatpush1.msra.mxu0 %v911
        %1068 = vmatprep.subr.mxu0 %v905
        %1069 = vmatpush1.msra.mxu0 %v904
        %1070 = vmatprep.subr.mxu0 %v898
        %1071 = vmatpush1.msra.mxu0 %v897
        %1072 = vmatprep.subr.mxu0 %v891
        %1073 = vmatpush1.msra.mxu0 %v890
        %1074 = vmatprep.subr.mxu0 0.0
        %1075 = vmatpush2.msra.mxu0 0.0
        %1076 = vmatprep.subr.mxu0 0.0
        %1077 = vmatpush2.msra.mxu0 0.0
        %1078 = vmatprep.subr.mxu0 0.0
        %1079 = vmatpush2.msra.mxu0 0.0
        %1080 = vmatprep.subr.mxu0 0.0
        %1081 = vmatpush2.msra.mxu0 0.0
        %1082 = vmatprep.subr.mxu0 0.0
        %1083 = vmatpush2.msra.mxu0 0.0
        %1084 = vmatprep.subr.mxu0 0.0
        %1085 = vmatpush2.msra.mxu0 0.0
        %1086 = vmatprep.subr.mxu0 0.0
        %1087 = vmatpush2.msra.mxu0 0.0
        %1088 = vmatprep.subr.mxu0 0.0
        %1089 = vmatpush2.msra.mxu0 0.0
        %1090 = vmatprep.subr.mxu0 0.0
        %1091 = vmatpush2.msra.mxu0 0.0
        %1092 = vmatprep.subr.mxu0 0.0
        %1093 = vmatpush2.msra.mxu0 0.0
        %1094 = vmatprep.subr.mxu0 0.0
        %1095 = vmatpush2.msra.mxu0 0.0
        %1096 = vmatprep.subr.mxu0 0.0
        %1097 = vmatpush2.msra.mxu0 0.0
        %1098 = vmatprep.subr.mxu0 0.0
        %1099 = vmatpush2.msra.mxu0 0.0
        %1100 = vmatprep.subr.mxu0 0.0
        %1101 = vmatpush2.msra.mxu0 0.0
        %1102 = vmatprep.subr.mxu0 0.0
        %1103 = vmatpush2.msra.mxu0 0.0
        %1104 = vmatprep.subr.mxu0 0.0
        %1105 = vmatpush2.msra.mxu0 0.0
        %1106 = vmatprep.mubr.f32.mxu0 0.0
        %1107 = vmatmul.mubr.f32.gmra.mxu0 %v1019
        %v1108 = vpop.f32.mrf.mxu0
        %v1109 = vadd.f32 %v986, %v1108
        %v1110 = vpop.f32.mrf.mxu0
        %v1111 = vadd.f32 %v990, %v1110
        %1112 = vdwg.mxu0
        %1113 = vmatprep.subr.mxu0 0.0
        %1114 = vmatpush1.msra.mxu0 0.0
        %1115 = vmatprep.subr.mxu0 0.0
        %1116 = vmatpush1.msra.mxu0 0.0
        %1117 = vmatprep.subr.mxu0 0.0
        %1118 = vmatpush1.msra.mxu0 0.0
        %1119 = vmatprep.subr.mxu0 %v1031
        %1120 = vmatpush1.msra.mxu0 %v1028
        %1121 = vmatprep.subr.mxu0 %v970
        %1122 = vmatpush1.msra.mxu0 %v969
        %1123 = vmatprep.subr.mxu0 %v963
        %1124 = vmatpush1.msra.mxu0 %v962
        %1125 = vmatprep.subr.mxu0 %v956
        %1126 = vmatpush1.msra.mxu0 %v955
        %1127 = vmatprep.subr.mxu0 %v949
        %1128 = vmatpush1.msra.mxu0 %v948
        %1129 = vmatprep.subr.mxu0 %v942
        %1130 = vmatpush1.msra.mxu0 %v941
        %1131 = vmatprep.subr.mxu0 %v935
        %1132 = vmatpush1.msra.mxu0 %v934
        %1133 = vmatprep.subr.mxu0 %v928
        %1134 = vmatpush1.msra.mxu0 %v927
        %1135 = vmatprep.subr.mxu0 %v921
        %1136 = vmatpush1.msra.mxu0 %v920
        %1137 = vmatprep.subr.mxu0 %v914
        %1138 = vmatpush1.msra.mxu0 %v913
        %1139 = vmatprep.subr.mxu0 %v907
        %1140 = vmatpush1.msra.mxu0 %v906
        %1141 = vmatprep.subr.mxu0 %v900
        %1142 = vmatpush1.msra.mxu0 %v899
        %1143 = vmatprep.subr.mxu0 %v893
        %1144 = vmatpush1.msra.mxu0 %v892
        %1145 = vmatprep.subr.mxu0 0.0
        %1146 = vmatpush2.msra.mxu0 0.0
        %1147 = vmatprep.subr.mxu0 0.0
        %1148 = vmatpush2.msra.mxu0 0.0
        %1149 = vmatprep.subr.mxu0 0.0
        %1150 = vmatpush2.msra.mxu0 0.0
        %1151 = vmatprep.subr.mxu0 0.0
        %1152 = vmatpush2.msra.mxu0 0.0
        %1153 = vmatprep.subr.mxu0 0.0
        %1154 = vmatpush2.msra.mxu0 0.0
        %1155 = vmatprep.subr.mxu0 0.0
        %1156 = vmatpush2.msra.mxu0 0.0
        %1157 = vmatprep.subr.mxu0 0.0
        %1158 = vmatpush2.msra.mxu0 0.0
        %1159 = vmatprep.subr.mxu0 0.0
        %1160 = vmatpush2.msra.mxu0 0.0
        %1161 = vmatprep.subr.mxu0 0.0
        %1162 = vmatpush2.msra.mxu0 0.0
        %1163 = vmatprep.subr.mxu0 0.0
        %1164 = vmatpush2.msra.mxu0 0.0
        %1165 = vmatprep.subr.mxu0 0.0
        %1166 = vmatpush2.msra.mxu0 0.0
        %1167 = vmatprep.subr.mxu0 0.0
        %1168 = vmatpush2.msra.mxu0 0.0
        %1169 = vmatprep.subr.mxu0 0.0
        %1170 = vmatpush2.msra.mxu0 0.0
        %1171 = vmatprep.subr.mxu0 0.0
        %1172 = vmatpush2.msra.mxu0 0.0
        %1173 = vmatprep.subr.mxu0 0.0
        %1174 = vmatpush2.msra.mxu0 0.0
        %1175 = vmatprep.subr.mxu0 0.0
        %1176 = vmatpush2.msra.mxu0 0.0
        %1177 = vmatprep.mubr.f32.mxu0 0.0
        %1178 = vmatmul.mubr.f32.gmra.mxu0 %v1019
        %v1179 = vpop.f32.mrf.mxu0
        %v1180 = vadd.f32 %v994, %v1179
        %v1181 = vpop.f32.mrf.mxu0
        %v1182 = vadd.f32 %v998, %v1181
        %1183 = vdwg.mxu0
        %1184 = vmatprep.subr.mxu0 0.0
        %1185 = vmatpush1.msra.mxu0 0.0
        %1186 = vmatprep.subr.mxu0 0.0
        %1187 = vmatpush1.msra.mxu0 0.0
        %1188 = vmatprep.subr.mxu0 0.0
        %1189 = vmatpush1.msra.mxu0 0.0
        %1190 = vmatprep.subr.mxu0 %v1037
        %1191 = vmatpush1.msra.mxu0 %v1034
        %1192 = vmatprep.subr.mxu0 %v972
        %1193 = vmatpush1.msra.mxu0 %v971
        %1194 = vmatprep.subr.mxu0 %v965
        %1195 = vmatpush1.msra.mxu0 %v964
        %1196 = vmatprep.subr.mxu0 %v958
        %1197 = vmatpush1.msra.mxu0 %v957
        %1198 = vmatprep.subr.mxu0 %v951
        %1199 = vmatpush1.msra.mxu0 %v950
        %1200 = vmatprep.subr.mxu0 %v944
        %1201 = vmatpush1.msra.mxu0 %v943
        %1202 = vmatprep.subr.mxu0 %v937
        %1203 = vmatpush1.msra.mxu0 %v936
        %1204 = vmatprep.subr.mxu0 %v930
        %1205 = vmatpush1.msra.mxu0 %v929
        %1206 = vmatprep.subr.mxu0 %v923
        %1207 = vmatpush1.msra.mxu0 %v922
        %1208 = vmatprep.subr.mxu0 %v916
        %1209 = vmatpush1.msra.mxu0 %v915
        %1210 = vmatprep.subr.mxu0 %v909
        %1211 = vmatpush1.msra.mxu0 %v908
        %1212 = vmatprep.subr.mxu0 %v902
        %1213 = vmatpush1.msra.mxu0 %v901
        %1214 = vmatprep.subr.mxu0 %v895
        %1215 = vmatpush1.msra.mxu0 %v894
        %1216 = vmatprep.subr.mxu0 0.0
        %1217 = vmatpush2.msra.mxu0 0.0
        %1218 = vmatprep.subr.mxu0 0.0
        %1219 = vmatpush2.msra.mxu0 0.0
        %1220 = vmatprep.subr.mxu0 0.0
        %1221 = vmatpush2.msra.mxu0 0.0
        %1222 = vmatprep.subr.mxu0 0.0
        %1223 = vmatpush2.msra.mxu0 0.0
        %1224 = vmatprep.subr.mxu0 0.0
        %1225 = vmatpush2.msra.mxu0 0.0
        %1226 = vmatprep.subr.mxu0 0.0
        %1227 = vmatpush2.msra.mxu0 0.0
        %1228 = vmatprep.subr.mxu0 0.0
        %1229 = vmatpush2.msra.mxu0 0.0
        %1230 = vmatprep.subr.mxu0 0.0
        %1231 = vmatpush2.msra.mxu0 0.0
        %1232 = vmatprep.subr.mxu0 0.0
        %1233 = vmatpush2.msra.mxu0 0.0
        %1234 = vmatprep.subr.mxu0 0.0
        %1235 = vmatpush2.msra.mxu0 0.0
        %1236 = vmatprep.subr.mxu0 0.0
        %1237 = vmatpush2.msra.mxu0 0.0
        %1238 = vmatprep.subr.mxu0 0.0
        %1239 = vmatpush2.msra.mxu0 0.0
        %1240 = vmatprep.subr.mxu0 0.0
        %1241 = vmatpush2.msra.mxu0 0.0
        %1242 = vmatprep.subr.mxu0 0.0
        %1243 = vmatpush2.msra.mxu0 0.0
        %1244 = vmatprep.subr.mxu0 0.0
        %1245 = vmatpush2.msra.mxu0 0.0
        %1246 = vmatprep.subr.mxu0 0.0
        %1247 = vmatpush2.msra.mxu0 0.0
        %1248 = vmatprep.mubr.f32.mxu0 0.0
        %1249 = vmatmul.mubr.f32.gmra.mxu0 %v1019
        %v1250 = vpop.f32.mrf.mxu0
        %v1251 = vadd.f32 %v1002, %v1250
        %v1252 = vpop.f32.mrf.mxu0
        %v1253 = vadd.f32 %v1006, %v1252
        %1254 = vdwg.mxu0
        %1255 = vmatprep.subr.mxu0 0.0
        %1256 = vmatpush1.msra.mxu0 0.0
        %1257 = vmatprep.subr.mxu0 0.0
        %1258 = vmatpush1.msra.mxu0 0.0
        %1259 = vmatprep.subr.mxu0 0.0
        %1260 = vmatpush1.msra.mxu0 0.0
        %1261 = vmatprep.subr.mxu0 0.0
        %1262 = vmatpush1.msra.mxu0 %v1040
        %1263 = vmatprep.subr.mxu0 0.0
        %1264 = vmatpush1.msra.mxu0 %v973
        %1265 = vmatprep.subr.mxu0 0.0
        %1266 = vmatpush1.msra.mxu0 %v966
        %1267 = vmatprep.subr.mxu0 0.0
        %1268 = vmatpush1.msra.mxu0 %v959
        %1269 = vmatprep.subr.mxu0 0.0
        %1270 = vmatpush1.msra.mxu0 %v952
        %1271 = vmatprep.subr.mxu0 0.0
        %1272 = vmatpush1.msra.mxu0 %v945
        %1273 = vmatprep.subr.mxu0 0.0
        %1274 = vmatpush1.msra.mxu0 %v938
        %1275 = vmatprep.subr.mxu0 0.0
        %1276 = vmatpush1.msra.mxu0 %v931
        %1277 = vmatprep.subr.mxu0 0.0
        %1278 = vmatpush1.msra.mxu0 %v924
        %1279 = vmatprep.subr.mxu0 0.0
        %1280 = vmatpush1.msra.mxu0 %v917
        %1281 = vmatprep.subr.mxu0 0.0
        %1282 = vmatpush1.msra.mxu0 %v910
        %1283 = vmatprep.subr.mxu0 0.0
        %1284 = vmatpush1.msra.mxu0 %v903
        %1285 = vmatprep.subr.mxu0 0.0
        %1286 = vmatpush1.msra.mxu0 %v896
        %1287 = vmatprep.subr.mxu0 0.0
        %1288 = vmatpush2.msra.mxu0 0.0
        %1289 = vmatprep.subr.mxu0 0.0
        %1290 = vmatpush2.msra.mxu0 0.0
        %1291 = vmatprep.subr.mxu0 0.0
        %1292 = vmatpush2.msra.mxu0 0.0
        %1293 = vmatprep.subr.mxu0 0.0
        %1294 = vmatpush2.msra.mxu0 0.0
        %1295 = vmatprep.subr.mxu0 0.0
        %1296 = vmatpush2.msra.mxu0 0.0
        %1297 = vmatprep.subr.mxu0 0.0
        %1298 = vmatpush2.msra.mxu0 0.0
        %1299 = vmatprep.subr.mxu0 0.0
        %1300 = vmatpush2.msra.mxu0 0.0
        %1301 = vmatprep.subr.mxu0 0.0
        %1302 = vmatpush2.msra.mxu0 0.0
        %1303 = vmatprep.subr.mxu0 0.0
        %1304 = vmatpush2.msra.mxu0 0.0
        %1305 = vmatprep.subr.mxu0 0.0
        %1306 = vmatpush2.msra.mxu0 0.0
        %1307 = vmatprep.subr.mxu0 0.0
        %1308 = vmatpush2.msra.mxu0 0.0
        %1309 = vmatprep.subr.mxu0 0.0
        %1310 = vmatpush2.msra.mxu0 0.0
        %1311 = vmatprep.subr.mxu0 0.0
        %1312 = vmatpush2.msra.mxu0 0.0
        %1313 = vmatprep.subr.mxu0 0.0
        %1314 = vmatpush2.msra.mxu0 0.0
        %1315 = vmatprep.subr.mxu0 0.0
        %1316 = vmatpush2.msra.mxu0 0.0
        %1317 = vmatprep.subr.mxu0 0.0
        %1318 = vmatpush2.msra.mxu0 0.0
        %1319 = vmatprep.mubr.f32.mxu0 0.0
        %1320 = vmatmul.mubr.f32.gmra.mxu0 %v1019
        %v1321 = vpop.f32.mrf.mxu0
        %v1322 = vadd.f32 %v1010, %v1321
        %v1323 = vpop.f32.mrf.mxu0
        %1324 = vdwg.mxu0
        %v1332 = vrot.slane %v1109, 7
        %v1333 = vrot.slane %v1111, 7
        %v1334 = vrot.slane %v1180, 7
        %v1335 = vrot.slane %v1182, 7
        %v1336 = vrot.slane %v1251, 7
        %v1337 = vrot.slane %v1253, 7
        %v1338 = vrot.slane %v1322, 7
        %vm1346 = vcmask 1040384
        %v1347 = vsel %vm1346, %v673, %v1332
        %v1348 = vsel %vm1346, %v675, %v1333
        %v1349 = vsel %vm1346, %v744, %v1334
        %v1350 = vsel %vm1346, %v746, %v1335
        %v1351 = vsel %vm1346, %v815, %v1336
        %v1352 = vsel %vm1346, %v817, %v1337
        %v1353 = vsel %vm1346, %v886, %v1338
        %1361 = vrot.lane.b32.xlu0 %v1347, 9
        %v1362 = vpop.permute.xlu0 %1361
        %1363 = vrot.lane.b32.xlu0 %v1348, 9
        %v1364 = vpop.permute.xlu0 %1363
        %1365 = vrot.lane.b32.xlu0 %v1349, 9
        %v1366 = vpop.permute.xlu0 %1365
        %1367 = vrot.lane.b32.xlu0 %v1350, 9
        %v1368 = vpop.permute.xlu0 %1367
        %1369 = vrot.lane.b32.xlu0 %v1351, 9
        %v1370 = vpop.permute.xlu0 %1369
        %1371 = vrot.lane.b32.xlu0 %v1352, 9
        %v1372 = vpop.permute.xlu0 %1371
        %1373 = vrot.lane.b32.xlu0 %v1353, 9
        %v1374 = vpop.permute.xlu0 %1373
        %vm1375 = vcmask 72704
        %v1376 = vsel %vm1375, %v1362, %v1364
        %v1377 = vsel %vm1375, %v1364, %v1366
        %v1378 = vsel %vm1375, %v1366, %v1368
        %v1379 = vsel %vm1375, %v1368, %v1370
        %v1380 = vsel %vm1375, %v1370, %v1372
        %v1381 = vsel %vm1375, %v1372, %v1374
        %v1389 = vsel %vm1375, 0.0, %v1362
        %vm1390 = vcmask 662528
        %v1391 = vsel %vm1390, %v1381, 0.0
        %v1392 = vld [vmem:[%s13] ss:$8 sm:$0xf]
        %v1393 = vld [vmem:[%s13] ss:$8 sm:$0x70]
        %v1394 = vor.u32 %v1392, %v1393
        %v1396 = vlaneseq
        %v1397 = vshrl.u32 %v1396, 7
        %v1398 = vsub.s32 0, %v1397
        %v1399 = vrot.slane %v1394, %v1398
        %v1400 = vlaneseq
        %v1401 = vshrl.u32 %v1400, 7
        %v1402 = vsub.s32 1, %v1401
        %v1403 = vrot.slane %v1394, %v1402
        %v1404 = vlaneseq
        %v1405 = vshrl.u32 %v1404, 7
        %v1406 = vsub.s32 2, %v1405
        %v1407 = vrot.slane %v1394, %v1406
        %v1408 = vlaneseq
        %v1409 = vshrl.u32 %v1408, 7
        %v1410 = vsub.s32 3, %v1409
        %v1411 = vrot.slane %v1394, %v1410
        %v1412 = vlaneseq
        %v1413 = vshrl.u32 %v1412, 7
        %v1414 = vsub.s32 4, %v1413
        %v1415 = vrot.slane %v1394, %v1414
        %v1416 = vlaneseq
        %v1417 = vshrl.u32 %v1416, 7
        %v1418 = vsub.s32 5, %v1417
        %v1419 = vrot.slane %v1394, %v1418
        %v1420 = vlaneseq
        %v1421 = vshrl.u32 %v1420, 7
        %v1422 = vsub.s32 6, %v1421
        %v1423 = vrot.slane %v1394, %v1422
        %v1431 = vmul.f32 %v1389, %v1399
        %v1432 = vmul.f32 %v1376, %v1403
        %v1433 = vmul.f32 %v1377, %v1407
        %v1434 = vmul.f32 %v1378, %v1411
        %v1435 = vmul.f32 %v1379, %v1415
        %v1436 = vmul.f32 %v1380, %v1419
        %v1437 = vmul.f32 %v1391, %v1423
        %s1438 = scalar_lea.vmem %s13, 1
        %v1439 = vld [vmem:[%s1438] ss:$8 sm:$0xf]
        %v1440 = vld [vmem:[%s1438] ss:$8 sm:$0x70]
        %v1441 = vor.u32 %v1439, %v1440
        %v1443 = vlaneseq
        %v1444 = vshrl.u32 %v1443, 7
        %v1445 = vsub.s32 0, %v1444
        %v1446 = vrot.slane %v1441, %v1445
        %v1447 = vlaneseq
        %v1448 = vshrl.u32 %v1447, 7
        %v1449 = vsub.s32 1, %v1448
        %v1450 = vrot.slane %v1441, %v1449
        %v1451 = vlaneseq
        %v1452 = vshrl.u32 %v1451, 7
        %v1453 = vsub.s32 2, %v1452
        %v1454 = vrot.slane %v1441, %v1453
        %v1455 = vlaneseq
        %v1456 = vshrl.u32 %v1455, 7
        %v1457 = vsub.s32 3, %v1456
        %v1458 = vrot.slane %v1441, %v1457
        %v1459 = vlaneseq
        %v1460 = vshrl.u32 %v1459, 7
        %v1461 = vsub.s32 4, %v1460
        %v1462 = vrot.slane %v1441, %v1461
        %v1463 = vlaneseq
        %v1464 = vshrl.u32 %v1463, 7
        %v1465 = vsub.s32 5, %v1464
        %v1466 = vrot.slane %v1441, %v1465
        %v1467 = vlaneseq
        %v1468 = vshrl.u32 %v1467, 7
        %v1469 = vsub.s32 6, %v1468
        %v1470 = vrot.slane %v1441, %v1469
        %1471 = vrot.lane.b32.xlu0 %v1446, 1
        %v1472 = vpop.permute.xlu0 %1471
        %1473 = vrot.lane.b32.xlu0 %v1450, 1
        %v1474 = vpop.permute.xlu0 %1473
        %1475 = vrot.lane.b32.xlu0 %v1454, 1
        %v1476 = vpop.permute.xlu0 %1475
        %1477 = vrot.lane.b32.xlu0 %v1458, 1
        %v1478 = vpop.permute.xlu0 %1477
        %1479 = vrot.lane.b32.xlu0 %v1462, 1
        %v1480 = vpop.permute.xlu0 %1479
        %1481 = vrot.lane.b32.xlu0 %v1466, 1
        %v1482 = vpop.permute.xlu0 %1481
        %1483 = vrot.lane.b32.xlu0 %v1470, 1
        %v1484 = vpop.permute.xlu0 %1483
        %vm1485 = vcmask 7168
        %v1486 = vsel %vm1485, %v1472, %v1474
        %v1487 = vsel %vm1485, %v1474, %v1476
        %v1488 = vsel %vm1485, %v1476, %v1478
        %v1489 = vsel %vm1485, %v1478, %v1480
        %v1490 = vsel %vm1485, %v1480, %v1482
        %v1491 = vsel %vm1485, %v1482, %v1484
        %v1499 = vmul.f32 %v1389, %v1472
        %v1500 = vmul.f32 %v1376, %v1486
        %v1501 = vmul.f32 %v1377, %v1487
        %v1502 = vmul.f32 %v1378, %v1488
        %v1503 = vmul.f32 %v1379, %v1489
        %v1504 = vmul.f32 %v1380, %v1490
        %v1505 = vmul.f32 %v1391, %v1491
        %s1506 = scalar_lea.vmem %s13, 2
        %v1507 = vld [vmem:[%s1506] ss:$8 sm:$0xf]
        %v1508 = vld [vmem:[%s1506] ss:$8 sm:$0x70]
        %v1509 = vor.u32 %v1507, %v1508
        %v1511 = vlaneseq
        %v1512 = vshrl.u32 %v1511, 7
        %v1513 = vsub.s32 0, %v1512
        %v1514 = vrot.slane %v1509, %v1513
        %v1515 = vlaneseq
        %v1516 = vshrl.u32 %v1515, 7
        %v1517 = vsub.s32 1, %v1516
        %v1518 = vrot.slane %v1509, %v1517
        %v1519 = vlaneseq
        %v1520 = vshrl.u32 %v1519, 7
        %v1521 = vsub.s32 2, %v1520
        %v1522 = vrot.slane %v1509, %v1521
        %v1523 = vlaneseq
        %v1524 = vshrl.u32 %v1523, 7
        %v1525 = vsub.s32 3, %v1524
        %v1526 = vrot.slane %v1509, %v1525
        %v1527 = vlaneseq
        %v1528 = vshrl.u32 %v1527, 7
        %v1529 = vsub.s32 4, %v1528
        %v1530 = vrot.slane %v1509, %v1529
        %v1531 = vlaneseq
        %v1532 = vshrl.u32 %v1531, 7
        %v1533 = vsub.s32 5, %v1532
        %v1534 = vrot.slane %v1509, %v1533
        %v1535 = vlaneseq
        %v1536 = vshrl.u32 %v1535, 7
        %v1537 = vsub.s32 6, %v1536
        %v1538 = vrot.slane %v1509, %v1537
        %1539 = vrot.lane.b32.xlu0 %v1514, 2
        %v1540 = vpop.permute.xlu0 %1539
        %1541 = vrot.lane.b32.xlu0 %v1518, 2
        %v1542 = vpop.permute.xlu0 %1541
        %1543 = vrot.lane.b32.xlu0 %v1522, 2
        %v1544 = vpop.permute.xlu0 %1543
        %1545 = vrot.lane.b32.xlu0 %v1526, 2
        %v1546 = vpop.permute.xlu0 %1545
        %1547 = vrot.lane.b32.xlu0 %v1530, 2
        %v1548 = vpop.permute.xlu0 %1547
        %1549 = vrot.lane.b32.xlu0 %v1534, 2
        %v1550 = vpop.permute.xlu0 %1549
        %1551 = vrot.lane.b32.xlu0 %v1538, 2
        %v1552 = vpop.permute.xlu0 %1551
        %vm1553 = vcmask 15360
        %v1554 = vsel %vm1553, %v1540, %v1542
        %v1555 = vsel %vm1553, %v1542, %v1544
        %v1556 = vsel %vm1553, %v1544, %v1546
        %v1557 = vsel %vm1553, %v1546, %v1548
        %v1558 = vsel %vm1553, %v1548, %v1550
        %v1559 = vsel %vm1553, %v1550, %v1552
        %v1567 = vmul.f32 %v1389, %v1540
        %v1568 = vmul.f32 %v1376, %v1554
        %v1569 = vmul.f32 %v1377, %v1555
        %v1570 = vmul.f32 %v1378, %v1556
        %v1571 = vmul.f32 %v1379, %v1557
        %v1572 = vmul.f32 %v1380, %v1558
        %v1573 = vmul.f32 %v1391, %v1559
        %s1574 = scalar_lea.vmem %s13, 3
        %v1575 = vld [vmem:[%s1574] ss:$8 sm:$0xf]
        %v1576 = vld [vmem:[%s1574] ss:$8 sm:$0x70]
        %v1577 = vor.u32 %v1575, %v1576
        %v1579 = vlaneseq
        %v1580 = vshrl.u32 %v1579, 7
        %v1581 = vsub.s32 0, %v1580
        %v1582 = vrot.slane %v1577, %v1581
        %v1583 = vlaneseq
        %v1584 = vshrl.u32 %v1583, 7
        %v1585 = vsub.s32 1, %v1584
        %v1586 = vrot.slane %v1577, %v1585
        %v1587 = vlaneseq
        %v1588 = vshrl.u32 %v1587, 7
        %v1589 = vsub.s32 2, %v1588
        %v1590 = vrot.slane %v1577, %v1589
        %v1591 = vlaneseq
        %v1592 = vshrl.u32 %v1591, 7
        %v1593 = vsub.s32 3, %v1592
        %v1594 = vrot.slane %v1577, %v1593
        %v1595 = vlaneseq
        %v1596 = vshrl.u32 %v1595, 7
        %v1597 = vsub.s32 4, %v1596
        %v1598 = vrot.slane %v1577, %v1597
        %v1599 = vlaneseq
        %v1600 = vshrl.u32 %v1599, 7
        %v1601 = vsub.s32 5, %v1600
        %v1602 = vrot.slane %v1577, %v1601
        %v1603 = vlaneseq
        %v1604 = vshrl.u32 %v1603, 7
        %v1605 = vsub.s32 6, %v1604
        %v1606 = vrot.slane %v1577, %v1605
        %1607 = vrot.lane.b32.xlu0 %v1582, 8
        %v1608 = vpop.permute.xlu0 %1607
        %1609 = vrot.lane.b32.xlu0 %v1586, 8
        %v1610 = vpop.permute.xlu0 %1609
        %1611 = vrot.lane.b32.xlu0 %v1590, 8
        %v1612 = vpop.permute.xlu0 %1611
        %1613 = vrot.lane.b32.xlu0 %v1594, 8
        %v1614 = vpop.permute.xlu0 %1613
        %1615 = vrot.lane.b32.xlu0 %v1598, 8
        %v1616 = vpop.permute.xlu0 %1615
        %1617 = vrot.lane.b32.xlu0 %v1602, 8
        %v1618 = vpop.permute.xlu0 %1617
        %1619 = vrot.lane.b32.xlu0 %v1606, 8
        %v1620 = vpop.permute.xlu0 %1619
        %vm1621 = vcmask 64512
        %v1622 = vsel %vm1621, %v1608, %v1610
        %v1623 = vsel %vm1621, %v1610, %v1612
        %v1624 = vsel %vm1621, %v1612, %v1614
        %v1625 = vsel %vm1621, %v1614, %v1616
        %v1626 = vsel %vm1621, %v1616, %v1618
        %v1627 = vsel %vm1621, %v1618, %v1620
        %v1635 = vmul.f32 %v1389, %v1608
        %v1636 = vmul.f32 %v1376, %v1622
        %v1637 = vmul.f32 %v1377, %v1623
        %v1638 = vmul.f32 %v1378, %v1624
        %v1639 = vmul.f32 %v1379, %v1625
        %v1640 = vmul.f32 %v1380, %v1626
        %v1641 = vmul.f32 %v1391, %v1627
        %s1642 = scalar_lea.vmem %s13, 4
        %v1643 = vld [vmem:[%s1642] ss:$8 sm:$0xf]
        %v1644 = vld [vmem:[%s1642] ss:$8 sm:$0x70]
        %v1645 = vor.u32 %v1643, %v1644
        %v1647 = vlaneseq
        %v1648 = vshrl.u32 %v1647, 7
        %v1649 = vsub.s32 0, %v1648
        %v1650 = vrot.slane %v1645, %v1649
        %v1651 = vlaneseq
        %v1652 = vshrl.u32 %v1651, 7
        %v1653 = vsub.s32 1, %v1652
        %v1654 = vrot.slane %v1645, %v1653
        %v1655 = vlaneseq
        %v1656 = vshrl.u32 %v1655, 7
        %v1657 = vsub.s32 2, %v1656
        %v1658 = vrot.slane %v1645, %v1657
        %v1659 = vlaneseq
        %v1660 = vshrl.u32 %v1659, 7
        %v1661 = vsub.s32 3, %v1660
        %v1662 = vrot.slane %v1645, %v1661
        %v1663 = vlaneseq
        %v1664 = vshrl.u32 %v1663, 7
        %v1665 = vsub.s32 4, %v1664
        %v1666 = vrot.slane %v1645, %v1665
        %v1667 = vlaneseq
        %v1668 = vshrl.u32 %v1667, 7
        %v1669 = vsub.s32 5, %v1668
        %v1670 = vrot.slane %v1645, %v1669
        %v1671 = vlaneseq
        %v1672 = vshrl.u32 %v1671, 7
        %v1673 = vsub.s32 6, %v1672
        %v1674 = vrot.slane %v1645, %v1673
        %1675 = vrot.lane.b32.xlu0 %v1650, 9
        %v1676 = vpop.permute.xlu0 %1675
        %1677 = vrot.lane.b32.xlu0 %v1654, 9
        %v1678 = vpop.permute.xlu0 %1677
        %1679 = vrot.lane.b32.xlu0 %v1658, 9
        %v1680 = vpop.permute.xlu0 %1679
        %1681 = vrot.lane.b32.xlu0 %v1662, 9
        %v1682 = vpop.permute.xlu0 %1681
        %1683 = vrot.lane.b32.xlu0 %v1666, 9
        %v1684 = vpop.permute.xlu0 %1683
        %1685 = vrot.lane.b32.xlu0 %v1670, 9
        %v1686 = vpop.permute.xlu0 %1685
        %1687 = vrot.lane.b32.xlu0 %v1674, 9
        %v1688 = vpop.permute.xlu0 %1687
        %v1689 = vsel %vm1375, %v1676, %v1678
        %v1690 = vsel %vm1375, %v1678, %v1680
        %v1691 = vsel %vm1375, %v1680, %v1682
        %v1692 = vsel %vm1375, %v1682, %v1684
        %v1693 = vsel %vm1375, %v1684, %v1686
        %v1694 = vsel %vm1375, %v1686, %v1688
        %v1702 = vmul.f32 %v1389, %v1676
        %v1703 = vmul.f32 %v1376, %v1689
        %v1704 = vmul.f32 %v1377, %v1690
        %v1705 = vmul.f32 %v1378, %v1691
        %v1706 = vmul.f32 %v1379, %v1692
        %v1707 = vmul.f32 %v1380, %v1693
        %v1708 = vmul.f32 %v1391, %v1694
        %s1709 = scalar_lea.vmem %s13, 5
        %v1710 = vld [vmem:[%s1709] ss:$8 sm:$0xf]
        %v1711 = vld [vmem:[%s1709] ss:$8 sm:$0x70]
        %v1712 = vor.u32 %v1710, %v1711
        %v1714 = vlaneseq
        %v1715 = vshrl.u32 %v1714, 7
        %v1716 = vsub.s32 0, %v1715
        %v1717 = vrot.slane %v1712, %v1716
        %v1718 = vlaneseq
        %v1719 = vshrl.u32 %v1718, 7
        %v1720 = vsub.s32 1, %v1719
        %v1721 = vrot.slane %v1712, %v1720
        %v1722 = vlaneseq
        %v1723 = vshrl.u32 %v1722, 7
        %v1724 = vsub.s32 2, %v1723
        %v1725 = vrot.slane %v1712, %v1724
        %v1726 = vlaneseq
        %v1727 = vshrl.u32 %v1726, 7
        %v1728 = vsub.s32 3, %v1727
        %v1729 = vrot.slane %v1712, %v1728
        %v1730 = vlaneseq
        %v1731 = vshrl.u32 %v1730, 7
        %v1732 = vsub.s32 4, %v1731
        %v1733 = vrot.slane %v1712, %v1732
        %v1734 = vlaneseq
        %v1735 = vshrl.u32 %v1734, 7
        %v1736 = vsub.s32 5, %v1735
        %v1737 = vrot.slane %v1712, %v1736
        %v1738 = vlaneseq
        %v1739 = vshrl.u32 %v1738, 7
        %v1740 = vsub.s32 6, %v1739
        %v1741 = vrot.slane %v1712, %v1740
        %1742 = vrot.lane.b32.xlu0 %v1717, 10
        %v1743 = vpop.permute.xlu0 %1742
        %1744 = vrot.lane.b32.xlu0 %v1721, 10
        %v1745 = vpop.permute.xlu0 %1744
        %1746 = vrot.lane.b32.xlu0 %v1725, 10
        %v1747 = vpop.permute.xlu0 %1746
        %1748 = vrot.lane.b32.xlu0 %v1729, 10
        %v1749 = vpop.permute.xlu0 %1748
        %1750 = vrot.lane.b32.xlu0 %v1733, 10
        %v1751 = vpop.permute.xlu0 %1750
        %1752 = vrot.lane.b32.xlu0 %v1737, 10
        %v1753 = vpop.permute.xlu0 %1752
        %1754 = vrot.lane.b32.xlu0 %v1741, 10
        %v1755 = vpop.permute.xlu0 %1754
        %vm1756 = vcmask 80896
        %v1757 = vsel %vm1756, %v1743, %v1745
        %v1758 = vsel %vm1756, %v1745, %v1747
        %v1759 = vsel %vm1756, %v1747, %v1749
        %v1760 = vsel %vm1756, %v1749, %v1751
        %v1761 = vsel %vm1756, %v1751, %v1753
        %v1762 = vsel %vm1756, %v1753, %v1755
        %v1770 = vmul.f32 %v1389, %v1743
        %v1771 = vmul.f32 %v1376, %v1757
        %v1772 = vmul.f32 %v1377, %v1758
        %v1773 = vmul.f32 %v1378, %v1759
        %v1774 = vmul.f32 %v1379, %v1760
        %v1775 = vmul.f32 %v1380, %v1761
        %v1776 = vmul.f32 %v1391, %v1762
        %s1777 = scalar_lea.vmem %s13, 6
        %v1778 = vld [vmem:[%s1777] ss:$8 sm:$0xf]
        %v1779 = vld [vmem:[%s1777] ss:$8 sm:$0x70]
        %v1780 = vor.u32 %v1778, %v1779
        %v1782 = vlaneseq
        %v1783 = vshrl.u32 %v1782, 7
        %v1784 = vsub.s32 0, %v1783
        %v1785 = vrot.slane %v1780, %v1784
        %v1786 = vlaneseq
        %v1787 = vshrl.u32 %v1786, 7
        %v1788 = vsub.s32 1, %v1787
        %v1789 = vrot.slane %v1780, %v1788
        %v1790 = vlaneseq
        %v1791 = vshrl.u32 %v1790, 7
        %v1792 = vsub.s32 2, %v1791
        %v1793 = vrot.slane %v1780, %v1792
        %v1794 = vlaneseq
        %v1795 = vshrl.u32 %v1794, 7
        %v1796 = vsub.s32 3, %v1795
        %v1797 = vrot.slane %v1780, %v1796
        %v1798 = vlaneseq
        %v1799 = vshrl.u32 %v1798, 7
        %v1800 = vsub.s32 4, %v1799
        %v1801 = vrot.slane %v1780, %v1800
        %v1802 = vlaneseq
        %v1803 = vshrl.u32 %v1802, 7
        %v1804 = vsub.s32 5, %v1803
        %v1805 = vrot.slane %v1780, %v1804
        %v1806 = vlaneseq
        %v1807 = vshrl.u32 %v1806, 7
        %v1808 = vsub.s32 6, %v1807
        %v1809 = vrot.slane %v1780, %v1808
        %1810 = vrot.lane.b32.xlu0 %v1785, 16
        %v1811 = vpop.permute.xlu0 %1810
        %1812 = vrot.lane.b32.xlu0 %v1789, 16
        %v1813 = vpop.permute.xlu0 %1812
        %1814 = vrot.lane.b32.xlu0 %v1793, 16
        %v1815 = vpop.permute.xlu0 %1814
        %1816 = vrot.lane.b32.xlu0 %v1797, 16
        %v1817 = vpop.permute.xlu0 %1816
        %1818 = vrot.lane.b32.xlu0 %v1801, 16
        %v1819 = vpop.permute.xlu0 %1818
        %1820 = vrot.lane.b32.xlu0 %v1805, 16
        %v1821 = vpop.permute.xlu0 %1820
        %1822 = vrot.lane.b32.xlu0 %v1809, 16
        %v1823 = vpop.permute.xlu0 %1822
        %vm1824 = vcmask 130048
        %v1825 = vsel %vm1824, %v1811, %v1813
        %v1826 = vsel %vm1824, %v1813, %v1815
        %v1827 = vsel %vm1824, %v1815, %v1817
        %v1828 = vsel %vm1824, %v1817, %v1819
        %v1829 = vsel %vm1824, %v1819, %v1821
        %v1830 = vsel %vm1824, %v1821, %v1823
        %v1838 = vmul.f32 %v1389, %v1811
        %v1839 = vmul.f32 %v1376, %v1825
        %v1840 = vmul.f32 %v1377, %v1826
        %v1841 = vmul.f32 %v1378, %v1827
        %v1842 = vmul.f32 %v1379, %v1828
        %v1843 = vmul.f32 %v1380, %v1829
        %v1844 = vmul.f32 %v1391, %v1830
        %s1845 = scalar_lea.vmem %s13, 7
        %v1846 = vld [vmem:[%s1845] ss:$8 sm:$0xf]
        %v1847 = vld [vmem:[%s1845] ss:$8 sm:$0x70]
        %v1848 = vor.u32 %v1846, %v1847
        %v1850 = vlaneseq
        %v1851 = vshrl.u32 %v1850, 7
        %v1852 = vsub.s32 0, %v1851
        %v1853 = vrot.slane %v1848, %v1852
        %v1854 = vlaneseq
        %v1855 = vshrl.u32 %v1854, 7
        %v1856 = vsub.s32 1, %v1855
        %v1857 = vrot.slane %v1848, %v1856
        %v1858 = vlaneseq
        %v1859 = vshrl.u32 %v1858, 7
        %v1860 = vsub.s32 2, %v1859
        %v1861 = vrot.slane %v1848, %v1860
        %v1862 = vlaneseq
        %v1863 = vshrl.u32 %v1862, 7
        %v1864 = vsub.s32 3, %v1863
        %v1865 = vrot.slane %v1848, %v1864
        %v1866 = vlaneseq
        %v1867 = vshrl.u32 %v1866, 7
        %v1868 = vsub.s32 4, %v1867
        %v1869 = vrot.slane %v1848, %v1868
        %v1870 = vlaneseq
        %v1871 = vshrl.u32 %v1870, 7
        %v1872 = vsub.s32 5, %v1871
        %v1873 = vrot.slane %v1848, %v1872
        %v1874 = vlaneseq
        %v1875 = vshrl.u32 %v1874, 7
        %v1876 = vsub.s32 6, %v1875
        %v1877 = vrot.slane %v1848, %v1876
        %1878 = vrot.lane.b32.xlu0 %v1853, 17
        %v1879 = vpop.permute.xlu0 %1878
        %1880 = vrot.lane.b32.xlu0 %v1857, 17
        %v1881 = vpop.permute.xlu0 %1880
        %1882 = vrot.lane.b32.xlu0 %v1861, 17
        %v1883 = vpop.permute.xlu0 %1882
        %1884 = vrot.lane.b32.xlu0 %v1865, 17
        %v1885 = vpop.permute.xlu0 %1884
        %1886 = vrot.lane.b32.xlu0 %v1869, 17
        %v1887 = vpop.permute.xlu0 %1886
        %1888 = vrot.lane.b32.xlu0 %v1873, 17
        %v1889 = vpop.permute.xlu0 %1888
        %1890 = vrot.lane.b32.xlu0 %v1877, 17
        %v1891 = vpop.permute.xlu0 %1890
        %vm1892 = vcmask 138240
        %v1893 = vsel %vm1892, %v1879, %v1881
        %v1894 = vsel %vm1892, %v1881, %v1883
        %v1895 = vsel %vm1892, %v1883, %v1885
        %v1896 = vsel %vm1892, %v1885, %v1887
        %v1897 = vsel %vm1892, %v1887, %v1889
        %v1898 = vsel %vm1892, %v1889, %v1891
        %v1906 = vmul.f32 %v1389, %v1879
        %v1907 = vmul.f32 %v1376, %v1893
        %v1908 = vmul.f32 %v1377, %v1894
        %v1909 = vmul.f32 %v1378, %v1895
        %v1910 = vmul.f32 %v1379, %v1896
        %v1911 = vmul.f32 %v1380, %v1897
        %v1912 = vmul.f32 %v1391, %v1898
        %s1913 = scalar_lea.vmem %s13, 56
        %v1914 = vld [vmem:[%s1913] ss:$8 sm:$0xf]
        %v1915 = vld [vmem:[%s1913] ss:$8 sm:$0x70]
        %v1916 = vor.u32 %v1914, %v1915
        %v1918 = vlaneseq
        %v1919 = vshrl.u32 %v1918, 7
        %v1920 = vsub.s32 0, %v1919
        %v1921 = vrot.slane %v1916, %v1920
        %v1922 = vlaneseq
        %v1923 = vshrl.u32 %v1922, 7
        %v1924 = vsub.s32 1, %v1923
        %v1925 = vrot.slane %v1916, %v1924
        %v1926 = vlaneseq
        %v1927 = vshrl.u32 %v1926, 7
        %v1928 = vsub.s32 2, %v1927
        %v1929 = vrot.slane %v1916, %v1928
        %v1930 = vlaneseq
        %v1931 = vshrl.u32 %v1930, 7
        %v1932 = vsub.s32 3, %v1931
        %v1933 = vrot.slane %v1916, %v1932
        %v1934 = vlaneseq
        %v1935 = vshrl.u32 %v1934, 7
        %v1936 = vsub.s32 4, %v1935
        %v1937 = vrot.slane %v1916, %v1936
        %v1938 = vlaneseq
        %v1939 = vshrl.u32 %v1938, 7
        %v1940 = vsub.s32 5, %v1939
        %v1941 = vrot.slane %v1916, %v1940
        %v1942 = vlaneseq
        %v1943 = vshrl.u32 %v1942, 7
        %v1944 = vsub.s32 6, %v1943
        %v1945 = vrot.slane %v1916, %v1944
        %1946 = vrot.lane.b32.xlu0 %v1921, 18
        %v1947 = vpop.permute.xlu0 %1946
        %1948 = vrot.lane.b32.xlu0 %v1925, 18
        %v1949 = vpop.permute.xlu0 %1948
        %1950 = vrot.lane.b32.xlu0 %v1929, 18
        %v1951 = vpop.permute.xlu0 %1950
        %1952 = vrot.lane.b32.xlu0 %v1933, 18
        %v1953 = vpop.permute.xlu0 %1952
        %1954 = vrot.lane.b32.xlu0 %v1937, 18
        %v1955 = vpop.permute.xlu0 %1954
        %1956 = vrot.lane.b32.xlu0 %v1941, 18
        %v1957 = vpop.permute.xlu0 %1956
        %1958 = vrot.lane.b32.xlu0 %v1945, 18
        %v1959 = vpop.permute.xlu0 %1958
        %vm1960 = vcmask 146432
        %v1961 = vsel %vm1960, %v1947, %v1949
        %v1962 = vsel %vm1960, %v1949, %v1951
        %v1963 = vsel %vm1960, %v1951, %v1953
        %v1964 = vsel %vm1960, %v1953, %v1955
        %v1965 = vsel %vm1960, %v1955, %v1957
        %v1966 = vsel %vm1960, %v1957, %v1959
        %v1974 = vmul.f32 %v1389, %v1947
        %v1975 = vmul.f32 %v1376, %v1961
        %v1976 = vmul.f32 %v1377, %v1962
        %v1977 = vmul.f32 %v1378, %v1963
        %v1978 = vmul.f32 %v1379, %v1964
        %v1979 = vmul.f32 %v1380, %v1965
        %v1980 = vmul.f32 %v1391, %v1966
        %v1988 = vrot.slane %v1499, 6
        %v1989 = vrot.slane %v1500, 6
        %v1990 = vrot.slane %v1501, 6
        %v1991 = vrot.slane %v1502, 6
        %v1992 = vrot.slane %v1503, 6
        %v1993 = vrot.slane %v1504, 6
        %v1994 = vrot.slane %v1505, 6
        %1995 = vrot.lane.b32.xlu0 %v1988, 127
        %v1996 = vpop.permute.xlu0 %1995
        %1997 = vrot.lane.b32.xlu0 %v1989, 127
        %v1998 = vpop.permute.xlu0 %1997
        %1999 = vrot.lane.b32.xlu0 %v1990, 127
        %v2000 = vpop.permute.xlu0 %1999
        %2001 = vrot.lane.b32.xlu0 %v1991, 127
        %v2002 = vpop.permute.xlu0 %2001
        %2003 = vrot.lane.b32.xlu0 %v1992, 127
        %v2004 = vpop.permute.xlu0 %2003
        %2005 = vrot.lane.b32.xlu0 %v1993, 127
        %v2006 = vpop.permute.xlu0 %2005
        %2007 = vrot.lane.b32.xlu0 %v1994, 127
        %v2008 = vpop.permute.xlu0 %2007
        %vm2009 = vcmask 1039360
        %v2010 = vsel %vm2009, %v1996, %v1998
        %v2011 = vsel %vm2009, %v1998, %v2000
        %v2012 = vsel %vm2009, %v2000, %v2002
        %v2013 = vsel %vm2009, %v2002, %v2004
        %v2014 = vsel %vm2009, %v2004, %v2006
        %v2015 = vsel %vm2009, %v2006, %v2008
        %v2030 = vrot.slane %v1567, 4
        %v2031 = vrot.slane %v1568, 4
        %v2032 = vrot.slane %v1569, 4
        %v2033 = vrot.slane %v1570, 4
        %v2034 = vrot.slane %v1571, 4
        %v2035 = vrot.slane %v1572, 4
        %v2036 = vrot.slane %v1573, 4
        %2037 = vrot.lane.b32.xlu0 %v2030, 126
        %v2038 = vpop.permute.xlu0 %2037
        %2039 = vrot.lane.b32.xlu0 %v2031, 126
        %v2040 = vpop.permute.xlu0 %2039
        %2041 = vrot.lane.b32.xlu0 %v2032, 126
        %v2042 = vpop.permute.xlu0 %2041
        %2043 = vrot.lane.b32.xlu0 %v2033, 126
        %v2044 = vpop.permute.xlu0 %2043
        %2045 = vrot.lane.b32.xlu0 %v2034, 126
        %v2046 = vpop.permute.xlu0 %2045
        %2047 = vrot.lane.b32.xlu0 %v2035, 126
        %v2048 = vpop.permute.xlu0 %2047
        %2049 = vrot.lane.b32.xlu0 %v2036, 126
        %v2050 = vpop.permute.xlu0 %2049
        %vm2051 = vcmask 1031168
        %v2052 = vsel %vm2051, %v2038, %v2040
        %v2053 = vsel %vm2051, %v2040, %v2042
        %v2054 = vsel %vm2051, %v2042, %v2044
        %v2055 = vsel %vm2051, %v2044, %v2046
        %v2056 = vsel %vm2051, %v2046, %v2048
        %v2057 = vsel %vm2051, %v2048, %v2050
        %v2072 = vrot.slane %v1635, 2
        %v2073 = vrot.slane %v1636, 2
        %v2074 = vrot.slane %v1637, 2
        %v2075 = vrot.slane %v1638, 2
        %v2076 = vrot.slane %v1639, 2
        %v2077 = vrot.slane %v1640, 2
        %v2078 = vrot.slane %v1641, 2
        %2079 = vrot.lane.b32.xlu0 %v2072, 120
        %v2080 = vpop.permute.xlu0 %2079
        %2081 = vrot.lane.b32.xlu0 %v2073, 120
        %v2082 = vpop.permute.xlu0 %2081
        %2083 = vrot.lane.b32.xlu0 %v2074, 120
        %v2084 = vpop.permute.xlu0 %2083
        %2085 = vrot.lane.b32.xlu0 %v2075, 120
        %v2086 = vpop.permute.xlu0 %2085
        %2087 = vrot.lane.b32.xlu0 %v2076, 120
        %v2088 = vpop.permute.xlu0 %2087
        %2089 = vrot.lane.b32.xlu0 %v2077, 120
        %v2090 = vpop.permute.xlu0 %2089
        %2091 = vrot.lane.b32.xlu0 %v2078, 120
        %v2092 = vpop.permute.xlu0 %2091
        %vm2093 = vcmask 982016
        %v2094 = vsel %vm2093, %v2080, %v2082
        %v2095 = vsel %vm2093, %v2082, %v2084
        %v2096 = vsel %vm2093, %v2084, %v2086
        %v2097 = vsel %vm2093, %v2086, %v2088
        %v2098 = vsel %vm2093, %v2088, %v2090
        %v2099 = vsel %vm2093, %v2090, %v2092
        %2114 = vrot.lane.b32.xlu0 %v1702, 119
        %v2115 = vpop.permute.xlu0 %2114
        %2116 = vrot.lane.b32.xlu0 %v1703, 119
        %v2117 = vpop.permute.xlu0 %2116
        %2118 = vrot.lane.b32.xlu0 %v1704, 119
        %v2119 = vpop.permute.xlu0 %2118
        %2120 = vrot.lane.b32.xlu0 %v1705, 119
        %v2121 = vpop.permute.xlu0 %2120
        %2122 = vrot.lane.b32.xlu0 %v1706, 119
        %v2123 = vpop.permute.xlu0 %2122
        %2124 = vrot.lane.b32.xlu0 %v1707, 119
        %v2125 = vpop.permute.xlu0 %2124
        %2126 = vrot.lane.b32.xlu0 %v1708, 119
        %v2127 = vpop.permute.xlu0 %2126
        %vm2128 = vcmask 973824
        %v2129 = vsel %vm2128, %v2115, %v2117
        %v2130 = vsel %vm2128, %v2117, %v2119
        %v2131 = vsel %vm2128, %v2119, %v2121
        %v2132 = vsel %vm2128, %v2121, %v2123
        %v2133 = vsel %vm2128, %v2123, %v2125
        %v2134 = vsel %vm2128, %v2125, %v2127
        %v2149 = vrot.slane %v1770, 6
        %v2150 = vrot.slane %v1771, 6
        %v2151 = vrot.slane %v1772, 6
        %v2152 = vrot.slane %v1773, 6
        %v2153 = vrot.slane %v1774, 6
        %v2154 = vrot.slane %v1775, 6
        %v2155 = vrot.slane %v1776, 6
        %2156 = vrot.lane.b32.xlu0 %v2149, 118
        %v2157 = vpop.permute.xlu0 %2156
        %2158 = vrot.lane.b32.xlu0 %v2150, 118
        %v2159 = vpop.permute.xlu0 %2158
        %2160 = vrot.lane.b32.xlu0 %v2151, 118
        %v2161 = vpop.permute.xlu0 %2160
        %2162 = vrot.lane.b32.xlu0 %v2152, 118
        %v2163 = vpop.permute.xlu0 %2162
        %2164 = vrot.lane.b32.xlu0 %v2153, 118
        %v2165 = vpop.permute.xlu0 %2164
        %2166 = vrot.lane.b32.xlu0 %v2154, 118
        %v2167 = vpop.permute.xlu0 %2166
        %2168 = vrot.lane.b32.xlu0 %v2155, 118
        %v2169 = vpop.permute.xlu0 %2168
        %vm2170 = vcmask 965632
        %v2171 = vsel %vm2170, %v2157, %v2159
        %v2172 = vsel %vm2170, %v2159, %v2161
        %v2173 = vsel %vm2170, %v2161, %v2163
        %v2174 = vsel %vm2170, %v2163, %v2165
        %v2175 = vsel %vm2170, %v2165, %v2167
        %v2176 = vsel %vm2170, %v2167, %v2169
        %v2191 = vrot.slane %v1838, 4
        %v2192 = vrot.slane %v1839, 4
        %v2193 = vrot.slane %v1840, 4
        %v2194 = vrot.slane %v1841, 4
        %v2195 = vrot.slane %v1842, 4
        %v2196 = vrot.slane %v1843, 4
        %v2197 = vrot.slane %v1844, 4
        %2198 = vrot.lane.b32.xlu0 %v2191, 112
        %v2199 = vpop.permute.xlu0 %2198
        %2200 = vrot.lane.b32.xlu0 %v2192, 112
        %v2201 = vpop.permute.xlu0 %2200
        %2202 = vrot.lane.b32.xlu0 %v2193, 112
        %v2203 = vpop.permute.xlu0 %2202
        %2204 = vrot.lane.b32.xlu0 %v2194, 112
        %v2205 = vpop.permute.xlu0 %2204
        %2206 = vrot.lane.b32.xlu0 %v2195, 112
        %v2207 = vpop.permute.xlu0 %2206
        %2208 = vrot.lane.b32.xlu0 %v2196, 112
        %v2209 = vpop.permute.xlu0 %2208
        %2210 = vrot.lane.b32.xlu0 %v2197, 112
        %v2211 = vpop.permute.xlu0 %2210
        %vm2212 = vcmask 916480
        %v2213 = vsel %vm2212, %v2199, %v2201
        %v2214 = vsel %vm2212, %v2201, %v2203
        %v2215 = vsel %vm2212, %v2203, %v2205
        %v2216 = vsel %vm2212, %v2205, %v2207
        %v2217 = vsel %vm2212, %v2207, %v2209
        %v2218 = vsel %vm2212, %v2209, %v2211
        %v2233 = vrot.slane %v1906, 2
        %v2234 = vrot.slane %v1907, 2
        %v2235 = vrot.slane %v1908, 2
        %v2236 = vrot.slane %v1909, 2
        %v2237 = vrot.slane %v1910, 2
        %v2238 = vrot.slane %v1911, 2
        %v2239 = vrot.slane %v1912, 2
        %2240 = vrot.lane.b32.xlu0 %v2233, 111
        %v2241 = vpop.permute.xlu0 %2240
        %2242 = vrot.lane.b32.xlu0 %v2234, 111
        %v2243 = vpop.permute.xlu0 %2242
        %2244 = vrot.lane.b32.xlu0 %v2235, 111
        %v2245 = vpop.permute.xlu0 %2244
        %2246 = vrot.lane.b32.xlu0 %v2236, 111
        %v2247 = vpop.permute.xlu0 %2246
        %2248 = vrot.lane.b32.xlu0 %v2237, 111
        %v2249 = vpop.permute.xlu0 %2248
        %2250 = vrot.lane.b32.xlu0 %v2238, 111
        %v2251 = vpop.permute.xlu0 %2250
        %2252 = vrot.lane.b32.xlu0 %v2239, 111
        %v2253 = vpop.permute.xlu0 %2252
        %vm2254 = vcmask 908288
        %v2255 = vsel %vm2254, %v2241, %v2243
        %v2256 = vsel %vm2254, %v2243, %v2245
        %v2257 = vsel %vm2254, %v2245, %v2247
        %v2258 = vsel %vm2254, %v2247, %v2249
        %v2259 = vsel %vm2254, %v2249, %v2251
        %v2260 = vsel %vm2254, %v2251, %v2253
        %2275 = vrot.lane.b32.xlu0 %v1974, 110
        %v2276 = vpop.permute.xlu0 %2275
        %2277 = vrot.lane.b32.xlu0 %v1975, 110
        %v2278 = vpop.permute.xlu0 %2277
        %2279 = vrot.lane.b32.xlu0 %v1976, 110
        %v2280 = vpop.permute.xlu0 %2279
        %2281 = vrot.lane.b32.xlu0 %v1977, 110
        %v2282 = vpop.permute.xlu0 %2281
        %2283 = vrot.lane.b32.xlu0 %v1978, 110
        %v2284 = vpop.permute.xlu0 %2283
        %2285 = vrot.lane.b32.xlu0 %v1979, 110
        %v2286 = vpop.permute.xlu0 %2285
        %2287 = vrot.lane.b32.xlu0 %v1980, 110
        %v2288 = vpop.permute.xlu0 %2287
        %vm2289 = vcmask 900096
        %v2290 = vsel %vm2289, %v2276, %v2278
        %v2291 = vsel %vm2289, %v2278, %v2280
        %v2292 = vsel %vm2289, %v2280, %v2282
        %v2293 = vsel %vm2289, %v2282, %v2284
        %v2294 = vsel %vm2289, %v2284, %v2286
        %v2295 = vsel %vm2289, %v2286, %v2288
        %vm2296 = vcmask 1041408
        %v2297 = vsel %vm2296, %v1431, %v2010
        %v2298 = vsel %vm2296, %v1432, %v2011
        %v2299 = vsel %vm2296, %v1433, %v2012
        %v2300 = vsel %vm2296, %v1434, %v2013
        %v2301 = vsel %vm2296, %v1435, %v2014
        %v2302 = vsel %vm2296, %v1436, %v2015
        %v2303 = vsel %vm2296, %v1437, %v2008
        %v2304 = vsel %vm584, %v2297, %v2052
        %v2305 = vsel %vm584, %v2298, %v2053
        %v2306 = vsel %vm584, %v2299, %v2054
        %v2307 = vsel %vm584, %v2300, %v2055
        %v2308 = vsel %vm584, %v2301, %v2056
        %v2309 = vsel %vm584, %v2302, %v2057
        %v2310 = vsel %vm584, %v2303, %v2050
        %vm2311 = vcmask 1045504
        %v2312 = vsel %vm2311, %v2304, %v2094
        %v2313 = vsel %vm2311, %v2305, %v2095
        %v2314 = vsel %vm2311, %v2306, %v2096
        %v2315 = vsel %vm2311, %v2307, %v2097
        %v2316 = vsel %vm2311, %v2308, %v2098
        %v2317 = vsel %vm2311, %v2309, %v2099
        %v2318 = vsel %vm2311, %v2310, %v2092
        %v2319 = vsel %vm2296, %v2129, %v2171
        %v2320 = vsel %vm2296, %v2130, %v2172
        %v2321 = vsel %vm2296, %v2131, %v2173
        %v2322 = vsel %vm2296, %v2132, %v2174
        %v2323 = vsel %vm2296, %v2133, %v2175
        %v2324 = vsel %vm2296, %v2134, %v2176
        %v2325 = vsel %vm2296, %v2127, %v2169
        %v2326 = vsel %vm584, %v2319, %v2213
        %v2327 = vsel %vm584, %v2320, %v2214
        %v2328 = vsel %vm584, %v2321, %v2215
        %v2329 = vsel %vm584, %v2322, %v2216
        %v2330 = vsel %vm584, %v2323, %v2217
        %v2331 = vsel %vm584, %v2324, %v2218
        %v2332 = vsel %vm584, %v2325, %v2211
        %v2333 = vsel %vm2311, %v2326, %v2255
        %v2334 = vsel %vm2311, %v2327, %v2256
        %v2335 = vsel %vm2311, %v2328, %v2257
        %v2336 = vsel %vm2311, %v2329, %v2258
        %v2337 = vsel %vm2311, %v2330, %v2259
        %v2338 = vsel %vm2311, %v2331, %v2260
        %v2339 = vsel %vm2311, %v2332, %v2253
        %v2340 = vld [vmem:[%s7] sm:$0xff]
        %v2341 = vld [vmem:[%s7 + $0x8] sm:$0xff]
        %v2342 = vld [vmem:[%s7 + $0x10] sm:$0xff]
        %v2343 = vld [vmem:[%s7 + $0x18] sm:$0xff]
        %v2344 = vld [vmem:[%s7 + $0x20] sm:$0xff]
        %v2345 = vld [vmem:[%s7 + $0x28] sm:$0xff]
        %v2346 = vld [vmem:[%s7 + $0x30] sm:$0xff]
        %v2347 = vld [vmem:[%s7 + $0x38] sm:$0xff]
        %v2348 = vld [vmem:[%s8] sm:$0xff]
        %v2349 = vld [vmem:[%s8 + $0x8] sm:$0xff]
        %v2350 = vld [vmem:[%s8 + $0x10] sm:$0xff]
        %v2351 = vld [vmem:[%s8 + $0x18] sm:$0xff]
        %v2352 = vld [vmem:[%s8 + $0x20] sm:$0xff]
        %v2353 = vld [vmem:[%s8 + $0x28] sm:$0xff]
        %v2354 = vld [vmem:[%s8 + $0x30] sm:$0xff]
        %v2355 = vld [vmem:[%s8 + $0x38] sm:$0xff]
        %2357 = vset.pattern.permute.xlu0 0
        %2358 = vperm.xlu0 %2357, %v2348
        %v2359 = vpop.permute.xlu0 %2358
        %2362 = vset.pattern.permute.xlu0 0
        %2363 = vperm.xlu0 %2362, %v2349
        %v2364 = vpop.permute.xlu0 %2363
        %2367 = vset.pattern.permute.xlu0 0
        %2368 = vperm.xlu0 %2367, %v2350
        %v2369 = vpop.permute.xlu0 %2368
        %2372 = vset.pattern.permute.xlu0 0
        %2373 = vperm.xlu0 %2372, %v2351
        %v2374 = vpop.permute.xlu0 %2373
        %2377 = vset.pattern.permute.xlu0 0
        %2378 = vperm.xlu0 %2377, %v2352
        %v2379 = vpop.permute.xlu0 %2378
        %2382 = vset.pattern.permute.xlu0 0
        %2383 = vperm.xlu0 %2382, %v2353
        %v2384 = vpop.permute.xlu0 %2383
        %2387 = vset.pattern.permute.xlu0 0
        %2388 = vperm.xlu0 %2387, %v2354
        %v2389 = vpop.permute.xlu0 %2388
        %2392 = vset.pattern.permute.xlu0 0
        %2393 = vperm.xlu0 %2392, %v2355
        %v2394 = vpop.permute.xlu0 %2393
        %v2397 = vsel %vm1960, %v2340, 0
        %v2400 = vsel %vm1960, %v2341, 0
        %v2403 = vsel %vm1960, %v2342, 0
        %v2406 = vsel %vm1960, %v2343, 0
        %v2409 = vsel %vm1960, %v2344, 0
        %v2412 = vsel %vm1960, %v2345, 0
        %v2415 = vsel %vm1960, %v2346, 0
        %v2418 = vsel %vm1960, %v2347, 0
        %v2420 = vsel %vm2296, %v2290, 0
        %v2422 = vsel %vm2296, %v2291, 0
        %v2424 = vsel %vm2296, %v2292, 0
        %v2426 = vsel %vm2296, %v2293, 0
        %v2428 = vsel %vm2296, %v2294, 0
        %v2430 = vsel %vm2296, %v2295, 0
        %v2432 = vsel %vm2296, %v2288, 0
        %2434 = vmatprep.subr.mxu0 0.0
        %2435 = vmatpush1.msra.mxu0 0.0
        %2436 = vmatprep.subr.mxu0 0.0
        %2437 = vmatpush1.msra.mxu0 0.0
        %2438 = vmatprep.subr.mxu0 0.0
        %2439 = vmatpush1.msra.mxu0 0.0
        %2440 = vmatprep.subr.mxu0 0.0
        %2441 = vmatpush1.msra.mxu0 0.0
        %2442 = vmatprep.subr.mxu0 0.0
        %2443 = vmatpush1.msra.mxu0 0.0
        %2444 = vmatprep.subr.mxu0 0.0
        %2445 = vmatpush1.msra.mxu0 0.0
        %2446 = vmatprep.subr.mxu0 0.0
        %2447 = vmatpush1.msra.mxu0 0.0
        %2448 = vmatprep.subr.mxu0 0.0
        %2449 = vmatpush1.msra.mxu0 0.0
        %2450 = vmatprep.subr.mxu0 0.0
        %2451 = vmatpush1.msra.mxu0 0.0
        %2452 = vmatprep.subr.mxu0 0.0
        %2453 = vmatpush1.msra.mxu0 0.0
        %2454 = vmatprep.subr.mxu0 0.0
        %2455 = vmatpush1.msra.mxu0 0.0
        %2456 = vmatprep.subr.mxu0 0.0
        %2457 = vmatpush1.msra.mxu0 0.0
        %2458 = vmatprep.subr.mxu0 0.0
        %2459 = vmatpush1.msra.mxu0 0.0
        %2460 = vmatprep.subr.mxu0 %v2422
        %2461 = vmatpush1.msra.mxu0 %v2420
        %2462 = vmatprep.subr.mxu0 %v2334
        %2463 = vmatpush1.msra.mxu0 %v2333
        %2464 = vmatprep.subr.mxu0 %v2313
        %2465 = vmatpush1.msra.mxu0 %v2312
        %2466 = vmatprep.subr.mxu0 0.0
        %2467 = vmatpush2.msra.mxu0 0.0
        %2468 = vmatprep.subr.mxu0 0.0
        %2469 = vmatpush2.msra.mxu0 0.0
        %2470 = vmatprep.subr.mxu0 0.0
        %2471 = vmatpush2.msra.mxu0 0.0
        %2472 = vmatprep.subr.mxu0 0.0
        %2473 = vmatpush2.msra.mxu0 0.0
        %2474 = vmatprep.subr.mxu0 0.0
        %2475 = vmatpush2.msra.mxu0 0.0
        %2476 = vmatprep.subr.mxu0 0.0
        %2477 = vmatpush2.msra.mxu0 0.0
        %2478 = vmatprep.subr.mxu0 0.0
        %2479 = vmatpush2.msra.mxu0 0.0
        %2480 = vmatprep.subr.mxu0 0.0
        %2481 = vmatpush2.msra.mxu0 0.0
        %2482 = vmatprep.subr.mxu0 0.0
        %2483 = vmatpush2.msra.mxu0 0.0
        %2484 = vmatprep.subr.mxu0 0.0
        %2485 = vmatpush2.msra.mxu0 0.0
        %2486 = vmatprep.subr.mxu0 0.0
        %2487 = vmatpush2.msra.mxu0 0.0
        %2488 = vmatprep.subr.mxu0 0.0
        %2489 = vmatpush2.msra.mxu0 0.0
        %2490 = vmatprep.subr.mxu0 0.0
        %2491 = vmatpush2.msra.mxu0 0.0
        %2492 = vmatprep.subr.mxu0 0.0
        %2493 = vmatpush2.msra.mxu0 0.0
        %2494 = vmatprep.subr.mxu0 0.0
        %2495 = vmatpush2.msra.mxu0 0.0
        %2496 = vmatprep.subr.mxu0 0.0
        %2497 = vmatpush2.msra.mxu0 0.0
        %2498 = vmatprep.mubr.f32.mxu0 0.0
        %2499 = vmatmul.mubr.f32.gmra.mxu0 %v2397
        %v2500 = vpop.f32.mrf.mxu0
        %v2501 = vadd.f32 %v2359, %v2500
        %v2502 = vpop.f32.mrf.mxu0
        %v2503 = vadd.f32 %v2359, %v2502
        %2504 = vmatprep.mubr.f32.mxu0 0.0
        %2505 = vmatmul.mubr.f32.gmra.mxu0 %v2400
        %v2506 = vpop.f32.mrf.mxu0
        %v2507 = vadd.f32 %v2364, %v2506
        %v2508 = vpop.f32.mrf.mxu0
        %v2509 = vadd.f32 %v2364, %v2508
        %2510 = vmatprep.mubr.f32.mxu0 0.0
        %2511 = vmatmul.mubr.f32.gmra.mxu0 %v2403
        %v2512 = vpop.f32.mrf.mxu0
        %v2513 = vadd.f32 %v2369, %v2512
        %v2514 = vpop.f32.mrf.mxu0
        %v2515 = vadd.f32 %v2369, %v2514
        %2516 = vmatprep.mubr.f32.mxu0 0.0
        %2517 = vmatmul.mubr.f32.gmra.mxu0 %v2406
        %v2518 = vpop.f32.mrf.mxu0
        %v2519 = vadd.f32 %v2374, %v2518
        %v2520 = vpop.f32.mrf.mxu0
        %v2521 = vadd.f32 %v2374, %v2520
        %2522 = vmatprep.mubr.f32.mxu0 0.0
        %2523 = vmatmul.mubr.f32.gmra.mxu0 %v2409
        %v2524 = vpop.f32.mrf.mxu0
        %v2525 = vadd.f32 %v2379, %v2524
        %v2526 = vpop.f32.mrf.mxu0
        %v2527 = vadd.f32 %v2379, %v2526
        %2528 = vmatprep.mubr.f32.mxu0 0.0
        %2529 = vmatmul.mubr.f32.gmra.mxu0 %v2412
        %v2530 = vpop.f32.mrf.mxu0
        %v2531 = vadd.f32 %v2384, %v2530
        %v2532 = vpop.f32.mrf.mxu0
        %v2533 = vadd.f32 %v2384, %v2532
        %2534 = vmatprep.mubr.f32.mxu0 0.0
        %2535 = vmatmul.mubr.f32.gmra.mxu0 %v2415
        %v2536 = vpop.f32.mrf.mxu0
        %v2537 = vadd.f32 %v2389, %v2536
        %v2538 = vpop.f32.mrf.mxu0
        %v2539 = vadd.f32 %v2389, %v2538
        %2540 = vmatprep.mubr.f32.mxu0 0.0
        %2541 = vmatmul.mubr.f32.gmra.mxu0 %v2418
        %v2542 = vpop.f32.mrf.mxu0
        %v2543 = vadd.f32 %v2394, %v2542
        %v2544 = vpop.f32.mrf.mxu0
        %v2545 = vadd.f32 %v2394, %v2544
        %2546 = vdwg.mxu0
        %2547 = vmatprep.subr.mxu0 0.0
        %2548 = vmatpush1.msra.mxu0 0.0
        %2549 = vmatprep.subr.mxu0 0.0
        %2550 = vmatpush1.msra.mxu0 0.0
        %2551 = vmatprep.subr.mxu0 0.0
        %2552 = vmatpush1.msra.mxu0 0.0
        %2553 = vmatprep.subr.mxu0 0.0
        %2554 = vmatpush1.msra.mxu0 0.0
        %2555 = vmatprep.subr.mxu0 0.0
        %2556 = vmatpush1.msra.mxu0 0.0
        %2557 = vmatprep.subr.mxu0 0.0
        %2558 = vmatpush1.msra.mxu0 0.0
        %2559 = vmatprep.subr.mxu0 0.0
        %2560 = vmatpush1.msra.mxu0 0.0
        %2561 = vmatprep.subr.mxu0 0.0
        %2562 = vmatpush1.msra.mxu0 0.0
        %2563 = vmatprep.subr.mxu0 0.0
        %2564 = vmatpush1.msra.mxu0 0.0
        %2565 = vmatprep.subr.mxu0 0.0
        %2566 = vmatpush1.msra.mxu0 0.0
        %2567 = vmatprep.subr.mxu0 0.0
        %2568 = vmatpush1.msra.mxu0 0.0
        %2569 = vmatprep.subr.mxu0 0.0
        %2570 = vmatpush1.msra.mxu0 0.0
        %2571 = vmatprep.subr.mxu0 0.0
        %2572 = vmatpush1.msra.mxu0 0.0
        %2573 = vmatprep.subr.mxu0 %v2426
        %2574 = vmatpush1.msra.mxu0 %v2424
        %2575 = vmatprep.subr.mxu0 %v2336
        %2576 = vmatpush1.msra.mxu0 %v2335
        %2577 = vmatprep.subr.mxu0 %v2315
        %2578 = vmatpush1.msra.mxu0 %v2314
        %2579 = vmatprep.subr.mxu0 0.0
        %2580 = vmatpush2.msra.mxu0 0.0
        %2581 = vmatprep.subr.mxu0 0.0
        %2582 = vmatpush2.msra.mxu0 0.0
        %2583 = vmatprep.subr.mxu0 0.0
        %2584 = vmatpush2.msra.mxu0 0.0
        %2585 = vmatprep.subr.mxu0 0.0
        %2586 = vmatpush2.msra.mxu0 0.0
        %2587 = vmatprep.subr.mxu0 0.0
        %2588 = vmatpush2.msra.mxu0 0.0
        %2589 = vmatprep.subr.mxu0 0.0
        %2590 = vmatpush2.msra.mxu0 0.0
        %2591 = vmatprep.subr.mxu0 0.0
        %2592 = vmatpush2.msra.mxu0 0.0
        %2593 = vmatprep.subr.mxu0 0.0
        %2594 = vmatpush2.msra.mxu0 0.0
        %2595 = vmatprep.subr.mxu0 0.0
        %2596 = vmatpush2.msra.mxu0 0.0
        %2597 = vmatprep.subr.mxu0 0.0
        %2598 = vmatpush2.msra.mxu0 0.0
        %2599 = vmatprep.subr.mxu0 0.0
        %2600 = vmatpush2.msra.mxu0 0.0
        %2601 = vmatprep.subr.mxu0 0.0
        %2602 = vmatpush2.msra.mxu0 0.0
        %2603 = vmatprep.subr.mxu0 0.0
        %2604 = vmatpush2.msra.mxu0 0.0
        %2605 = vmatprep.subr.mxu0 0.0
        %2606 = vmatpush2.msra.mxu0 0.0
        %2607 = vmatprep.subr.mxu0 0.0
        %2608 = vmatpush2.msra.mxu0 0.0
        %2609 = vmatprep.subr.mxu0 0.0
        %2610 = vmatpush2.msra.mxu0 0.0
        %2611 = vmatprep.mubr.f32.mxu0 0.0
        %2612 = vmatmul.mubr.f32.gmra.mxu0 %v2397
        %v2613 = vpop.f32.mrf.mxu0
        %v2614 = vadd.f32 %v2359, %v2613
        %v2615 = vpop.f32.mrf.mxu0
        %v2616 = vadd.f32 %v2359, %v2615
        %2617 = vmatprep.mubr.f32.mxu0 0.0
        %2618 = vmatmul.mubr.f32.gmra.mxu0 %v2400
        %v2619 = vpop.f32.mrf.mxu0
        %v2620 = vadd.f32 %v2364, %v2619
        %v2621 = vpop.f32.mrf.mxu0
        %v2622 = vadd.f32 %v2364, %v2621
        %2623 = vmatprep.mubr.f32.mxu0 0.0
        %2624 = vmatmul.mubr.f32.gmra.mxu0 %v2403
        %v2625 = vpop.f32.mrf.mxu0
        %v2626 = vadd.f32 %v2369, %v2625
        %v2627 = vpop.f32.mrf.mxu0
        %v2628 = vadd.f32 %v2369, %v2627
        %2629 = vmatprep.mubr.f32.mxu0 0.0
        %2630 = vmatmul.mubr.f32.gmra.mxu0 %v2406
        %v2631 = vpop.f32.mrf.mxu0
        %v2632 = vadd.f32 %v2374, %v2631
        %v2633 = vpop.f32.mrf.mxu0
        %v2634 = vadd.f32 %v2374, %v2633
        %2635 = vmatprep.mubr.f32.mxu0 0.0
        %2636 = vmatmul.mubr.f32.gmra.mxu0 %v2409
        %v2637 = vpop.f32.mrf.mxu0
        %v2638 = vadd.f32 %v2379, %v2637
        %v2639 = vpop.f32.mrf.mxu0
        %v2640 = vadd.f32 %v2379, %v2639
        %2641 = vmatprep.mubr.f32.mxu0 0.0
        %2642 = vmatmul.mubr.f32.gmra.mxu0 %v2412
        %v2643 = vpop.f32.mrf.mxu0
        %v2644 = vadd.f32 %v2384, %v2643
        %v2645 = vpop.f32.mrf.mxu0
        %v2646 = vadd.f32 %v2384, %v2645
        %2647 = vmatprep.mubr.f32.mxu0 0.0
        %2648 = vmatmul.mubr.f32.gmra.mxu0 %v2415
        %v2649 = vpop.f32.mrf.mxu0
        %v2650 = vadd.f32 %v2389, %v2649
        %v2651 = vpop.f32.mrf.mxu0
        %v2652 = vadd.f32 %v2389, %v2651
        %2653 = vmatprep.mubr.f32.mxu0 0.0
        %2654 = vmatmul.mubr.f32.gmra.mxu0 %v2418
        %v2655 = vpop.f32.mrf.mxu0
        %v2656 = vadd.f32 %v2394, %v2655
        %v2657 = vpop.f32.mrf.mxu0
        %v2658 = vadd.f32 %v2394, %v2657
        %2659 = vdwg.mxu0
        %2660 = vmatprep.subr.mxu0 0.0
        %2661 = vmatpush1.msra.mxu0 0.0
        %2662 = vmatprep.subr.mxu0 0.0
        %2663 = vmatpush1.msra.mxu0 0.0
        %2664 = vmatprep.subr.mxu0 0.0
        %2665 = vmatpush1.msra.mxu0 0.0
        %2666 = vmatprep.subr.mxu0 0.0
        %2667 = vmatpush1.msra.mxu0 0.0
        %2668 = vmatprep.subr.mxu0 0.0
        %2669 = vmatpush1.msra.mxu0 0.0
        %2670 = vmatprep.subr.mxu0 0.0
        %2671 = vmatpush1.msra.mxu0 0.0
        %2672 = vmatprep.subr.mxu0 0.0
        %2673 = vmatpush1.msra.mxu0 0.0
        %2674 = vmatprep.subr.mxu0 0.0
        %2675 = vmatpush1.msra.mxu0 0.0
        %2676 = vmatprep.subr.mxu0 0.0
        %2677 = vmatpush1.msra.mxu0 0.0
        %2678 = vmatprep.subr.mxu0 0.0
        %2679 = vmatpush1.msra.mxu0 0.0
        %2680 = vmatprep.subr.mxu0 0.0
        %2681 = vmatpush1.msra.mxu0 0.0
        %2682 = vmatprep.subr.mxu0 0.0
        %2683 = vmatpush1.msra.mxu0 0.0
        %2684 = vmatprep.subr.mxu0 0.0
        %2685 = vmatpush1.msra.mxu0 0.0
        %2686 = vmatprep.subr.mxu0 %v2430
        %2687 = vmatpush1.msra.mxu0 %v2428
        %2688 = vmatprep.subr.mxu0 %v2338
        %2689 = vmatpush1.msra.mxu0 %v2337
        %2690 = vmatprep.subr.mxu0 %v2317
        %2691 = vmatpush1.msra.mxu0 %v2316
        %2692 = vmatprep.subr.mxu0 0.0
        %2693 = vmatpush2.msra.mxu0 0.0
        %2694 = vmatprep.subr.mxu0 0.0
        %2695 = vmatpush2.msra.mxu0 0.0
        %2696 = vmatprep.subr.mxu0 0.0
        %2697 = vmatpush2.msra.mxu0 0.0
        %2698 = vmatprep.subr.mxu0 0.0
        %2699 = vmatpush2.msra.mxu0 0.0
        %2700 = vmatprep.subr.mxu0 0.0
        %2701 = vmatpush2.msra.mxu0 0.0
        %2702 = vmatprep.subr.mxu0 0.0
        %2703 = vmatpush2.msra.mxu0 0.0
        %2704 = vmatprep.subr.mxu0 0.0
        %2705 = vmatpush2.msra.mxu0 0.0
        %2706 = vmatprep.subr.mxu0 0.0
        %2707 = vmatpush2.msra.mxu0 0.0
        %2708 = vmatprep.subr.mxu0 0.0
        %2709 = vmatpush2.msra.mxu0 0.0
        %2710 = vmatprep.subr.mxu0 0.0
        %2711 = vmatpush2.msra.mxu0 0.0
        %2712 = vmatprep.subr.mxu0 0.0
        %2713 = vmatpush2.msra.mxu0 0.0
        %2714 = vmatprep.subr.mxu0 0.0
        %2715 = vmatpush2.msra.mxu0 0.0
        %2716 = vmatprep.subr.mxu0 0.0
        %2717 = vmatpush2.msra.mxu0 0.0
        %2718 = vmatprep.subr.mxu0 0.0
        %2719 = vmatpush2.msra.mxu0 0.0
        %2720 = vmatprep.subr.mxu0 0.0
        %2721 = vmatpush2.msra.mxu0 0.0
        %2722 = vmatprep.subr.mxu0 0.0
        %2723 = vmatpush2.msra.mxu0 0.0
        %2724 = vmatprep.mubr.f32.mxu0 0.0
        %2725 = vmatmul.mubr.f32.gmra.mxu0 %v2397
        %v2726 = vpop.f32.mrf.mxu0
        %v2727 = vadd.f32 %v2359, %v2726
        %v2728 = vpop.f32.mrf.mxu0
        %v2729 = vadd.f32 %v2359, %v2728
        %2730 = vmatprep.mubr.f32.mxu0 0.0
        %2731 = vmatmul.mubr.f32.gmra.mxu0 %v2400
        %v2732 = vpop.f32.mrf.mxu0
        %v2733 = vadd.f32 %v2364, %v2732
        %v2734 = vpop.f32.mrf.mxu0
        %v2735 = vadd.f32 %v2364, %v2734
        %2736 = vmatprep.mubr.f32.mxu0 0.0
        %2737 = vmatmul.mubr.f32.gmra.mxu0 %v2403
        %v2738 = vpop.f32.mrf.mxu0
        %v2739 = vadd.f32 %v2369, %v2738
        %v2740 = vpop.f32.mrf.mxu0
        %v2741 = vadd.f32 %v2369, %v2740
        %2742 = vmatprep.mubr.f32.mxu0 0.0
        %2743 = vmatmul.mubr.f32.gmra.mxu0 %v2406
        %v2744 = vpop.f32.mrf.mxu0
        %v2745 = vadd.f32 %v2374, %v2744
        %v2746 = vpop.f32.mrf.mxu0
        %v2747 = vadd.f32 %v2374, %v2746
        %2748 = vmatprep.mubr.f32.mxu0 0.0
        %2749 = vmatmul.mubr.f32.gmra.mxu0 %v2409
        %v2750 = vpop.f32.mrf.mxu0
        %v2751 = vadd.f32 %v2379, %v2750
        %v2752 = vpop.f32.mrf.mxu0
        %v2753 = vadd.f32 %v2379, %v2752
        %2754 = vmatprep.mubr.f32.mxu0 0.0
        %2755 = vmatmul.mubr.f32.gmra.mxu0 %v2412
        %v2756 = vpop.f32.mrf.mxu0
        %v2757 = vadd.f32 %v2384, %v2756
        %v2758 = vpop.f32.mrf.mxu0
        %v2759 = vadd.f32 %v2384, %v2758
        %2760 = vmatprep.mubr.f32.mxu0 0.0
        %2761 = vmatmul.mubr.f32.gmra.mxu0 %v2415
        %v2762 = vpop.f32.mrf.mxu0
        %v2763 = vadd.f32 %v2389, %v2762
        %v2764 = vpop.f32.mrf.mxu0
        %v2765 = vadd.f32 %v2389, %v2764
        %2766 = vmatprep.mubr.f32.mxu0 0.0
        %2767 = vmatmul.mubr.f32.gmra.mxu0 %v2418
        %v2768 = vpop.f32.mrf.mxu0
        %v2769 = vadd.f32 %v2394, %v2768
        %v2770 = vpop.f32.mrf.mxu0
        %v2771 = vadd.f32 %v2394, %v2770
        %2772 = vdwg.mxu0
        %2773 = vmatprep.subr.mxu0 0.0
        %2774 = vmatpush1.msra.mxu0 0.0
        %2775 = vmatprep.subr.mxu0 0.0
        %2776 = vmatpush1.msra.mxu0 0.0
        %2777 = vmatprep.subr.mxu0 0.0
        %2778 = vmatpush1.msra.mxu0 0.0
        %2779 = vmatprep.subr.mxu0 0.0
        %2780 = vmatpush1.msra.mxu0 0.0
        %2781 = vmatprep.subr.mxu0 0.0
        %2782 = vmatpush1.msra.mxu0 0.0
        %2783 = vmatprep.subr.mxu0 0.0
        %2784 = vmatpush1.msra.mxu0 0.0
        %2785 = vmatprep.subr.mxu0 0.0
        %2786 = vmatpush1.msra.mxu0 0.0
        %2787 = vmatprep.subr.mxu0 0.0
        %2788 = vmatpush1.msra.mxu0 0.0
        %2789 = vmatprep.subr.mxu0 0.0
        %2790 = vmatpush1.msra.mxu0 0.0
        %2791 = vmatprep.subr.mxu0 0.0
        %2792 = vmatpush1.msra.mxu0 0.0
        %2793 = vmatprep.subr.mxu0 0.0
        %2794 = vmatpush1.msra.mxu0 0.0
        %2795 = vmatprep.subr.mxu0 0.0
        %2796 = vmatpush1.msra.mxu0 0.0
        %2797 = vmatprep.subr.mxu0 0.0
        %2798 = vmatpush1.msra.mxu0 0.0
        %2799 = vmatprep.subr.mxu0 0.0
        %2800 = vmatpush1.msra.mxu0 %v2432
        %2801 = vmatprep.subr.mxu0 0.0
        %2802 = vmatpush1.msra.mxu0 %v2339
        %2803 = vmatprep.subr.mxu0 0.0
        %2804 = vmatpush1.msra.mxu0 %v2318
        %2805 = vmatprep.subr.mxu0 0.0
        %2806 = vmatpush2.msra.mxu0 0.0
        %2807 = vmatprep.subr.mxu0 0.0
        %2808 = vmatpush2.msra.mxu0 0.0
        %2809 = vmatprep.subr.mxu0 0.0
        %2810 = vmatpush2.msra.mxu0 0.0
        %2811 = vmatprep.subr.mxu0 0.0
        %2812 = vmatpush2.msra.mxu0 0.0
        %2813 = vmatprep.subr.mxu0 0.0
        %2814 = vmatpush2.msra.mxu0 0.0
        %2815 = vmatprep.subr.mxu0 0.0
        %2816 = vmatpush2.msra.mxu0 0.0
        %2817 = vmatprep.subr.mxu0 0.0
        %2818 = vmatpush2.msra.mxu0 0.0
        %2819 = vmatprep.subr.mxu0 0.0
        %2820 = vmatpush2.msra.mxu0 0.0
        %2821 = vmatprep.subr.mxu0 0.0
        %2822 = vmatpush2.msra.mxu0 0.0
        %2823 = vmatprep.subr.mxu0 0.0
        %2824 = vmatpush2.msra.mxu0 0.0
        %2825 = vmatprep.subr.mxu0 0.0
        %2826 = vmatpush2.msra.mxu0 0.0
        %2827 = vmatprep.subr.mxu0 0.0
        %2828 = vmatpush2.msra.mxu0 0.0
        %2829 = vmatprep.subr.mxu0 0.0
        %2830 = vmatpush2.msra.mxu0 0.0
        %2831 = vmatprep.subr.mxu0 0.0
        %2832 = vmatpush2.msra.mxu0 0.0
        %2833 = vmatprep.subr.mxu0 0.0
        %2834 = vmatpush2.msra.mxu0 0.0
        %2835 = vmatprep.subr.mxu0 0.0
        %2836 = vmatpush2.msra.mxu0 0.0
        %2837 = vmatprep.mubr.f32.mxu0 0.0
        %2838 = vmatmul.mubr.f32.gmra.mxu0 %v2397
        %v2839 = vpop.f32.mrf.mxu0
        %v2840 = vadd.f32 %v2359, %v2839
        %v2841 = vpop.f32.mrf.mxu0
        %2842 = vmatprep.mubr.f32.mxu0 0.0
        %2843 = vmatmul.mubr.f32.gmra.mxu0 %v2400
        %v2844 = vpop.f32.mrf.mxu0
        %v2845 = vadd.f32 %v2364, %v2844
        %v2846 = vpop.f32.mrf.mxu0
        %2847 = vmatprep.mubr.f32.mxu0 0.0
        %2848 = vmatmul.mubr.f32.gmra.mxu0 %v2403
        %v2849 = vpop.f32.mrf.mxu0
        %v2850 = vadd.f32 %v2369, %v2849
        %v2851 = vpop.f32.mrf.mxu0
        %2852 = vmatprep.mubr.f32.mxu0 0.0
        %2853 = vmatmul.mubr.f32.gmra.mxu0 %v2406
        %v2854 = vpop.f32.mrf.mxu0
        %v2855 = vadd.f32 %v2374, %v2854
        %v2856 = vpop.f32.mrf.mxu0
        %2857 = vmatprep.mubr.f32.mxu0 0.0
        %2858 = vmatmul.mubr.f32.gmra.mxu0 %v2409
        %v2859 = vpop.f32.mrf.mxu0
        %v2860 = vadd.f32 %v2379, %v2859
        %v2861 = vpop.f32.mrf.mxu0
        %2862 = vmatprep.mubr.f32.mxu0 0.0
        %2863 = vmatmul.mubr.f32.gmra.mxu0 %v2412
        %v2864 = vpop.f32.mrf.mxu0
        %v2865 = vadd.f32 %v2384, %v2864
        %v2866 = vpop.f32.mrf.mxu0
        %2867 = vmatprep.mubr.f32.mxu0 0.0
        %2868 = vmatmul.mubr.f32.gmra.mxu0 %v2415
        %v2869 = vpop.f32.mrf.mxu0
        %v2870 = vadd.f32 %v2389, %v2869
        %v2871 = vpop.f32.mrf.mxu0
        %2872 = vmatprep.mubr.f32.mxu0 0.0
        %2873 = vmatmul.mubr.f32.gmra.mxu0 %v2418
        %v2874 = vpop.f32.mrf.mxu0
        %v2875 = vadd.f32 %v2394, %v2874
        %v2876 = vpop.f32.mrf.mxu0
        %2877 = vdwg.mxu0
        %s2878 = smul.u32 %s34, 56
        %s2879 = smul.addr %s2878, 8
        %s2880 = scalar_lea.vmem [#allocation2], %s2879
        %2881 = vst [vmem:[%s2880] sm:$0xff] %v2501
        %2882 = vst [vmem:[%s2880 + $0x8] sm:$0xff] %v2503
        %2883 = vst [vmem:[%s2880 + $0x10] sm:$0xff] %v2614
        %2884 = vst [vmem:[%s2880 + $0x18] sm:$0xff] %v2616
        %2885 = vst [vmem:[%s2880 + $0x20] sm:$0xff] %v2727
        %2886 = vst [vmem:[%s2880 + $0x28] sm:$0xff] %v2729
        %vm2887 = vcmask 588800
        %2888 = vst.msk [vmem:[%s2880 + $0x30] sm:$0xff] %vm2887, %v2840
        %2889 = vst [vmem:[%s2880 + $0x38] sm:$0xff] %v2507
        %2890 = vst [vmem:[%s2880 + $0x40] sm:$0xff] %v2509
        %2891 = vst [vmem:[%s2880 + $0x48] sm:$0xff] %v2620
        %2892 = vst [vmem:[%s2880 + $0x50] sm:$0xff] %v2622
        %2893 = vst [vmem:[%s2880 + $0x58] sm:$0xff] %v2733
        %2894 = vst [vmem:[%s2880 + $0x60] sm:$0xff] %v2735
        %2895 = vst.msk [vmem:[%s2880 + $0x68] sm:$0xff] %vm2887, %v2845
        %2896 = vst [vmem:[%s2880 + $0x70] sm:$0xff] %v2513
        %2897 = vst [vmem:[%s2880 + $0x78] sm:$0xff] %v2515
        %2898 = vst [vmem:[%s2880 + $0x80] sm:$0xff] %v2626
        %2899 = vst [vmem:[%s2880 + $0x88] sm:$0xff] %v2628
        %2900 = vst [vmem:[%s2880 + $0x90] sm:$0xff] %v2739
        %2901 = vst [vmem:[%s2880 + $0x98] sm:$0xff] %v2741
        %2902 = vst.msk [vmem:[%s2880 + $0xa0] sm:$0xff] %vm2887, %v2850
        %2903 = vst [vmem:[%s2880 + $0xa8] sm:$0xff] %v2519
        %2904 = vst [vmem:[%s2880 + $0xb0] sm:$0xff] %v2521
        %2905 = vst [vmem:[%s2880 + $0xb8] sm:$0xff] %v2632
        %2906 = vst [vmem:[%s2880 + $0xc0] sm:$0xff] %v2634
        %2907 = vst [vmem:[%s2880 + $0xc8] sm:$0xff] %v2745
        %2908 = vst [vmem:[%s2880 + $0xd0] sm:$0xff] %v2747
        %2909 = vst.msk [vmem:[%s2880 + $0xd8] sm:$0xff] %vm2887, %v2855
        %2910 = vst [vmem:[%s2880 + $0xe0] sm:$0xff] %v2525
        %2911 = vst [vmem:[%s2880 + $0xe8] sm:$0xff] %v2527
        %2912 = vst [vmem:[%s2880 + $0xf0] sm:$0xff] %v2638
        %2913 = vst [vmem:[%s2880 + $0xf8] sm:$0xff] %v2640
        %2914 = vst [vmem:[%s2880 + $0x100] sm:$0xff] %v2751
        %2915 = vst [vmem:[%s2880 + $0x108] sm:$0xff] %v2753
        %2916 = vst.msk [vmem:[%s2880 + $0x110] sm:$0xff] %vm2887, %v2860
        %2917 = vst [vmem:[%s2880 + $0x118] sm:$0xff] %v2531
        %2918 = vst [vmem:[%s2880 + $0x120] sm:$0xff] %v2533
        %2919 = vst [vmem:[%s2880 + $0x128] sm:$0xff] %v2644
        %2920 = vst [vmem:[%s2880 + $0x130] sm:$0xff] %v2646
        %2921 = vst [vmem:[%s2880 + $0x138] sm:$0xff] %v2757
        %2922 = vst [vmem:[%s2880 + $0x140] sm:$0xff] %v2759
        %2923 = vst.msk [vmem:[%s2880 + $0x148] sm:$0xff] %vm2887, %v2865
        %2924 = vst [vmem:[%s2880 + $0x150] sm:$0xff] %v2537
        %2925 = vst [vmem:[%s2880 + $0x158] sm:$0xff] %v2539
        %2926 = vst [vmem:[%s2880 + $0x160] sm:$0xff] %v2650
        %2927 = vst [vmem:[%s2880 + $0x168] sm:$0xff] %v2652
        %2928 = vst [vmem:[%s2880 + $0x170] sm:$0xff] %v2763
        %2929 = vst [vmem:[%s2880 + $0x178] sm:$0xff] %v2765
        %2930 = vst.msk [vmem:[%s2880 + $0x180] sm:$0xff] %vm2887, %v2870
        %2931 = vst [vmem:[%s2880 + $0x188] sm:$0xff] %v2543
        %2932 = vst [vmem:[%s2880 + $0x190] sm:$0xff] %v2545
        %2933 = vst [vmem:[%s2880 + $0x198] sm:$0xff] %v2656
        %2934 = vst [vmem:[%s2880 + $0x1a0] sm:$0xff] %v2658
        %2935 = vst [vmem:[%s2880 + $0x1a8] sm:$0xff] %v2769
        %2936 = vst [vmem:[%s2880 + $0x1b0] sm:$0xff] %v2771
        %2937 = vst.msk [vmem:[%s2880 + $0x1b8] sm:$0xff] %vm2887, %v2875
        %p2938 = scmp.eq.s32.totalorder %s34, 1
        // Predicated region
        $region73: #{tpu_custom_call.1} parent=71 // pred_check
          %p2939 = pneg %p2938
        $region74: #{tpu_custom_call.1} parent=71 // pred_check_branch
          %2941 = sbr.rel (%p2939) target = $region76
        $region75: #{tpu_custom_call.1} parent=71 // pred_region
          %v2942 = vld [vmem:[#allocation2] sm:$0xff]
          %v2943 = vld [vmem:[#allocation2 + $0x8] sm:$0xff]
          %v2944 = vld [vmem:[#allocation2 + $0x10] sm:$0xff]
          %v2945 = vld [vmem:[#allocation2 + $0x18] sm:$0xff]
          %v2946 = vld [vmem:[#allocation2 + $0x20] sm:$0xff]
          %v2947 = vld [vmem:[#allocation2 + $0x28] sm:$0xff]
          %v2948 = vld [vmem:[#allocation2 + $0x30] sm:$0xff]
          %v2949 = vld [vmem:[#allocation2 + $0x38] sm:$0xff]
          %v2950 = vld [vmem:[#allocation2 + $0x40] sm:$0xff]
          %v2951 = vld [vmem:[#allocation2 + $0x48] sm:$0xff]
          %v2952 = vld [vmem:[#allocation2 + $0x50] sm:$0xff]
          %v2953 = vld [vmem:[#allocation2 + $0x58] sm:$0xff]
          %v2954 = vld [vmem:[#allocation2 + $0x60] sm:$0xff]
          %v2955 = vld [vmem:[#allocation2 + $0x68] sm:$0xff]
          %v2956 = vld [vmem:[#allocation2 + $0x70] sm:$0xff]
          %v2957 = vld [vmem:[#allocation2 + $0x78] sm:$0xff]
          %v2958 = vld [vmem:[#allocation2 + $0x80] sm:$0xff]
          %v2959 = vld [vmem:[#allocation2 + $0x88] sm:$0xff]
          %v2960 = vld [vmem:[#allocation2 + $0x90] sm:$0xff]
          %v2961 = vld [vmem:[#allocation2 + $0x98] sm:$0xff]
          %v2962 = vld [vmem:[#allocation2 + $0xa0] sm:$0xff]
          %v2963 = vld [vmem:[#allocation2 + $0xa8] sm:$0xff]
          %v2964 = vld [vmem:[#allocation2 + $0xb0] sm:$0xff]
          %v2965 = vld [vmem:[#allocation2 + $0xb8] sm:$0xff]
          %v2966 = vld [vmem:[#allocation2 + $0xc0] sm:$0xff]
          %v2967 = vld [vmem:[#allocation2 + $0xc8] sm:$0xff]
          %v2968 = vld [vmem:[#allocation2 + $0xd0] sm:$0xff]
          %v2969 = vld [vmem:[#allocation2 + $0xd8] sm:$0xff]
          %v2970 = vld [vmem:[#allocation2 + $0xe0] sm:$0xff]
          %v2971 = vld [vmem:[#allocation2 + $0xe8] sm:$0xff]
          %v2972 = vld [vmem:[#allocation2 + $0xf0] sm:$0xff]
          %v2973 = vld [vmem:[#allocation2 + $0xf8] sm:$0xff]
          %v2974 = vld [vmem:[#allocation2 + $0x100] sm:$0xff]
          %v2975 = vld [vmem:[#allocation2 + $0x108] sm:$0xff]
          %v2976 = vld [vmem:[#allocation2 + $0x110] sm:$0xff]
          %v2977 = vld [vmem:[#allocation2 + $0x118] sm:$0xff]
          %v2978 = vld [vmem:[#allocation2 + $0x120] sm:$0xff]
          %v2979 = vld [vmem:[#allocation2 + $0x128] sm:$0xff]
          %v2980 = vld [vmem:[#allocation2 + $0x130] sm:$0xff]
          %v2981 = vld [vmem:[#allocation2 + $0x138] sm:$0xff]
          %v2982 = vld [vmem:[#allocation2 + $0x140] sm:$0xff]
          %v2983 = vld [vmem:[#allocation2 + $0x148] sm:$0xff]
          %v2984 = vld [vmem:[#allocation2 + $0x150] sm:$0xff]
          %v2985 = vld [vmem:[#allocation2 + $0x158] sm:$0xff]
          %v2986 = vld [vmem:[#allocation2 + $0x160] sm:$0xff]
          %v2987 = vld [vmem:[#allocation2 + $0x168] sm:$0xff]
          %v2988 = vld [vmem:[#allocation2 + $0x170] sm:$0xff]
          %v2989 = vld [vmem:[#allocation2 + $0x178] sm:$0xff]
          %v2990 = vld [vmem:[#allocation2 + $0x180] sm:$0xff]
          %v2991 = vld [vmem:[#allocation2 + $0x188] sm:$0xff]
          %v2992 = vld [vmem:[#allocation2 + $0x190] sm:$0xff]
          %v2993 = vld [vmem:[#allocation2 + $0x198] sm:$0xff]
          %v2994 = vld [vmem:[#allocation2 + $0x1a0] sm:$0xff]
          %v2995 = vld [vmem:[#allocation2 + $0x1a8] sm:$0xff]
          %v2996 = vld [vmem:[#allocation2 + $0x1b0] sm:$0xff]
          %v2997 = vld [vmem:[#allocation2 + $0x1b8] sm:$0xff]
          %v2998 = vld [vmem:[#allocation2 + $0x1c0] sm:$0xff]
          %v2999 = vld [vmem:[#allocation2 + $0x1c8] sm:$0xff]
          %v3000 = vld [vmem:[#allocation2 + $0x1d0] sm:$0xff]
          %v3001 = vld [vmem:[#allocation2 + $0x1d8] sm:$0xff]
          %v3002 = vld [vmem:[#allocation2 + $0x1e0] sm:$0xff]
          %v3003 = vld [vmem:[#allocation2 + $0x1e8] sm:$0xff]
          %v3004 = vld [vmem:[#allocation2 + $0x1f0] sm:$0xff]
          %v3005 = vld [vmem:[#allocation2 + $0x1f8] sm:$0xff]
          %v3006 = vld [vmem:[#allocation2 + $0x200] sm:$0xff]
          %v3007 = vld [vmem:[#allocation2 + $0x208] sm:$0xff]
          %v3008 = vld [vmem:[#allocation2 + $0x210] sm:$0xff]
          %v3009 = vld [vmem:[#allocation2 + $0x218] sm:$0xff]
          %v3010 = vld [vmem:[#allocation2 + $0x220] sm:$0xff]
          %v3011 = vld [vmem:[#allocation2 + $0x228] sm:$0xff]
          %v3012 = vld [vmem:[#allocation2 + $0x230] sm:$0xff]
          %v3013 = vld [vmem:[#allocation2 + $0x238] sm:$0xff]
          %v3014 = vld [vmem:[#allocation2 + $0x240] sm:$0xff]
          %v3015 = vld [vmem:[#allocation2 + $0x248] sm:$0xff]
          %v3016 = vld [vmem:[#allocation2 + $0x250] sm:$0xff]
          %v3017 = vld [vmem:[#allocation2 + $0x258] sm:$0xff]
          %v3018 = vld [vmem:[#allocation2 + $0x260] sm:$0xff]
          %v3019 = vld [vmem:[#allocation2 + $0x268] sm:$0xff]
          %v3020 = vld [vmem:[#allocation2 + $0x270] sm:$0xff]
          %v3021 = vld [vmem:[#allocation2 + $0x278] sm:$0xff]
          %v3022 = vld [vmem:[#allocation2 + $0x280] sm:$0xff]
          %v3023 = vld [vmem:[#allocation2 + $0x288] sm:$0xff]
          %v3024 = vld [vmem:[#allocation2 + $0x290] sm:$0xff]
          %v3025 = vld [vmem:[#allocation2 + $0x298] sm:$0xff]
          %v3026 = vld [vmem:[#allocation2 + $0x2a0] sm:$0xff]
          %v3027 = vld [vmem:[#allocation2 + $0x2a8] sm:$0xff]
          %v3028 = vld [vmem:[#allocation2 + $0x2b0] sm:$0xff]
          %v3029 = vld [vmem:[#allocation2 + $0x2b8] sm:$0xff]
          %v3030 = vld [vmem:[#allocation2 + $0x2c0] sm:$0xff]
          %v3031 = vld [vmem:[#allocation2 + $0x2c8] sm:$0xff]
          %v3032 = vld [vmem:[#allocation2 + $0x2d0] sm:$0xff]
          %v3033 = vld [vmem:[#allocation2 + $0x2d8] sm:$0xff]
          %v3034 = vld [vmem:[#allocation2 + $0x2e0] sm:$0xff]
          %v3035 = vld [vmem:[#allocation2 + $0x2e8] sm:$0xff]
          %v3036 = vld [vmem:[#allocation2 + $0x2f0] sm:$0xff]
          %v3037 = vld [vmem:[#allocation2 + $0x2f8] sm:$0xff]
          %v3038 = vld [vmem:[#allocation2 + $0x300] sm:$0xff]
          %v3039 = vld [vmem:[#allocation2 + $0x308] sm:$0xff]
          %v3040 = vld [vmem:[#allocation2 + $0x310] sm:$0xff]
          %v3041 = vld [vmem:[#allocation2 + $0x318] sm:$0xff]
          %v3042 = vld [vmem:[#allocation2 + $0x320] sm:$0xff]
          %v3043 = vld [vmem:[#allocation2 + $0x328] sm:$0xff]
          %v3044 = vld [vmem:[#allocation2 + $0x330] sm:$0xff]
          %v3045 = vld [vmem:[#allocation2 + $0x338] sm:$0xff]
          %v3046 = vld [vmem:[#allocation2 + $0x340] sm:$0xff]
          %v3047 = vld [vmem:[#allocation2 + $0x348] sm:$0xff]
          %v3048 = vld [vmem:[#allocation2 + $0x350] sm:$0xff]
          %v3049 = vld [vmem:[#allocation2 + $0x358] sm:$0xff]
          %v3050 = vld [vmem:[#allocation2 + $0x360] sm:$0xff]
          %v3051 = vld [vmem:[#allocation2 + $0x368] sm:$0xff]
          %v3052 = vld [vmem:[#allocation2 + $0x370] sm:$0xff]
          %v3053 = vld [vmem:[#allocation2 + $0x378] sm:$0xff]
          %v3054 = vadd.f32 %v2942, %v2943
          %v3055 = vadd.f32 %v3054, %v2944
          %v3056 = vadd.f32 %v3055, %v2945
          %v3057 = vadd.f32 %v3056, %v2946
          %v3058 = vadd.f32 %v3057, %v2947
          %v3059 = vsel %vm2887, %v2948, 0.0
          %v3060 = vadd.f32 %v3058, %v3059
          %3061 = vadd.xlane.f32.xlu0 %v3060
          %v3062 = vpop.xlane.xlu0 %3061
          %v3063 = vadd.f32 %v2949, %v2950
          %v3064 = vadd.f32 %v3063, %v2951
          %v3065 = vadd.f32 %v3064, %v2952
          %v3066 = vadd.f32 %v3065, %v2953
          %v3067 = vadd.f32 %v3066, %v2954
          %v3068 = vsel %vm2887, %v2955, 0.0
          %v3069 = vadd.f32 %v3067, %v3068
          %3070 = vadd.xlane.f32.xlu0 %v3069
          %v3071 = vpop.xlane.xlu0 %3070
          %v3072 = vadd.f32 %v2956, %v2957
          %v3073 = vadd.f32 %v3072, %v2958
          %v3074 = vadd.f32 %v3073, %v2959
          %v3075 = vadd.f32 %v3074, %v2960
          %v3076 = vadd.f32 %v3075, %v2961
          %v3077 = vsel %vm2887, %v2962, 0.0
          %v3078 = vadd.f32 %v3076, %v3077
          %3079 = vadd.xlane.f32.xlu0 %v3078
          %v3080 = vpop.xlane.xlu0 %3079
          %v3081 = vadd.f32 %v2963, %v2964
          %v3082 = vadd.f32 %v3081, %v2965
          %v3083 = vadd.f32 %v3082, %v2966
          %v3084 = vadd.f32 %v3083, %v2967
          %v3085 = vadd.f32 %v3084, %v2968
          %v3086 = vsel %vm2887, %v2969, 0.0
          %v3087 = vadd.f32 %v3085, %v3086
          %3088 = vadd.xlane.f32.xlu0 %v3087
          %v3089 = vpop.xlane.xlu0 %3088
          %v3090 = vadd.f32 %v2970, %v2971
          %v3091 = vadd.f32 %v3090, %v2972
          %v3092 = vadd.f32 %v3091, %v2973
          %v3093 = vadd.f32 %v3092, %v2974
          %v3094 = vadd.f32 %v3093, %v2975
          %v3095 = vsel %vm2887, %v2976, 0.0
          %v3096 = vadd.f32 %v3094, %v3095
          %3097 = vadd.xlane.f32.xlu0 %v3096
          %v3098 = vpop.xlane.xlu0 %3097
          %v3099 = vadd.f32 %v2977, %v2978
          %v3100 = vadd.f32 %v3099, %v2979
          %v3101 = vadd.f32 %v3100, %v2980
          %v3102 = vadd.f32 %v3101, %v2981
          %v3103 = vadd.f32 %v3102, %v2982
          %v3104 = vsel %vm2887, %v2983, 0.0
          %v3105 = vadd.f32 %v3103, %v3104
          %3106 = vadd.xlane.f32.xlu0 %v3105
          %v3107 = vpop.xlane.xlu0 %3106
          %v3108 = vadd.f32 %v2984, %v2985
          %v3109 = vadd.f32 %v3108, %v2986
          %v3110 = vadd.f32 %v3109, %v2987
          %v3111 = vadd.f32 %v3110, %v2988
          %v3112 = vadd.f32 %v3111, %v2989
          %v3113 = vsel %vm2887, %v2990, 0.0
          %v3114 = vadd.f32 %v3112, %v3113
          %3115 = vadd.xlane.f32.xlu0 %v3114
          %v3116 = vpop.xlane.xlu0 %3115
          %v3117 = vadd.f32 %v2991, %v2992
          %v3118 = vadd.f32 %v3117, %v2993
          %v3119 = vadd.f32 %v3118, %v2994
          %v3120 = vadd.f32 %v3119, %v2995
          %v3121 = vadd.f32 %v3120, %v2996
          %v3122 = vsel %vm2887, %v2997, 0.0
          %v3123 = vadd.f32 %v3121, %v3122
          %3124 = vadd.xlane.f32.xlu0 %v3123
          %v3125 = vpop.xlane.xlu0 %3124
          %v3126 = vadd.f32 %v2998, %v2999
          %v3127 = vadd.f32 %v3126, %v3000
          %v3128 = vadd.f32 %v3127, %v3001
          %v3129 = vadd.f32 %v3128, %v3002
          %v3130 = vadd.f32 %v3129, %v3003
          %v3131 = vsel %vm2887, %v3004, 0.0
          %v3132 = vadd.f32 %v3130, %v3131
          %3133 = vadd.xlane.f32.xlu0 %v3132
          %v3134 = vpop.xlane.xlu0 %3133
          %v3135 = vadd.f32 %v3005, %v3006
          %v3136 = vadd.f32 %v3135, %v3007
          %v3137 = vadd.f32 %v3136, %v3008
          %v3138 = vadd.f32 %v3137, %v3009
          %v3139 = vadd.f32 %v3138, %v3010
          %v3140 = vsel %vm2887, %v3011, 0.0
          %v3141 = vadd.f32 %v3139, %v3140
          %3142 = vadd.xlane.f32.xlu0 %v3141
          %v3143 = vpop.xlane.xlu0 %3142
          %v3144 = vadd.f32 %v3012, %v3013
          %v3145 = vadd.f32 %v3144, %v3014
          %v3146 = vadd.f32 %v3145, %v3015
          %v3147 = vadd.f32 %v3146, %v3016
          %v3148 = vadd.f32 %v3147, %v3017
          %v3149 = vsel %vm2887, %v3018, 0.0
          %v3150 = vadd.f32 %v3148, %v3149
          %3151 = vadd.xlane.f32.xlu0 %v3150
          %v3152 = vpop.xlane.xlu0 %3151
          %v3153 = vadd.f32 %v3019, %v3020
          %v3154 = vadd.f32 %v3153, %v3021
          %v3155 = vadd.f32 %v3154, %v3022
          %v3156 = vadd.f32 %v3155, %v3023
          %v3157 = vadd.f32 %v3156, %v3024
          %v3158 = vsel %vm2887, %v3025, 0.0
          %v3159 = vadd.f32 %v3157, %v3158
          %3160 = vadd.xlane.f32.xlu0 %v3159
          %v3161 = vpop.xlane.xlu0 %3160
          %v3162 = vadd.f32 %v3026, %v3027
          %v3163 = vadd.f32 %v3162, %v3028
          %v3164 = vadd.f32 %v3163, %v3029
          %v3165 = vadd.f32 %v3164, %v3030
          %v3166 = vadd.f32 %v3165, %v3031
          %v3167 = vsel %vm2887, %v3032, 0.0
          %v3168 = vadd.f32 %v3166, %v3167
          %3169 = vadd.xlane.f32.xlu0 %v3168
          %v3170 = vpop.xlane.xlu0 %3169
          %v3171 = vadd.f32 %v3033, %v3034
          %v3172 = vadd.f32 %v3171, %v3035
          %v3173 = vadd.f32 %v3172, %v3036
          %v3174 = vadd.f32 %v3173, %v3037
          %v3175 = vadd.f32 %v3174, %v3038
          %v3176 = vsel %vm2887, %v3039, 0.0
          %v3177 = vadd.f32 %v3175, %v3176
          %3178 = vadd.xlane.f32.xlu0 %v3177
          %v3179 = vpop.xlane.xlu0 %3178
          %v3180 = vadd.f32 %v3040, %v3041
          %v3181 = vadd.f32 %v3180, %v3042
          %v3182 = vadd.f32 %v3181, %v3043
          %v3183 = vadd.f32 %v3182, %v3044
          %v3184 = vadd.f32 %v3183, %v3045
          %v3185 = vsel %vm2887, %v3046, 0.0
          %v3186 = vadd.f32 %v3184, %v3185
          %3187 = vadd.xlane.f32.xlu0 %v3186
          %v3188 = vpop.xlane.xlu0 %3187
          %v3189 = vadd.f32 %v3047, %v3048
          %v3190 = vadd.f32 %v3189, %v3049
          %v3191 = vadd.f32 %v3190, %v3050
          %v3192 = vadd.f32 %v3191, %v3051
          %v3193 = vadd.f32 %v3192, %v3052
          %v3194 = vsel %vm2887, %v3053, 0.0
          %v3195 = vadd.f32 %v3193, %v3194
          %3196 = vadd.xlane.f32.xlu0 %v3195
          %v3197 = vpop.xlane.xlu0 %3196
          %v3198 = vadd.f32 %v3062, %v3134
          %v3199 = vadd.f32 %v3071, %v3143
          %v3200 = vadd.f32 %v3080, %v3152
          %v3201 = vadd.f32 %v3089, %v3161
          %v3202 = vadd.f32 %v3098, %v3170
          %v3203 = vadd.f32 %v3107, %v3179
          %v3204 = vadd.f32 %v3116, %v3188
          %v3205 = vadd.f32 %v3125, %v3197
          %v3206 = vrcp.pop 1680.0
          %v3207 = vmul.f32 %v3198, %v3206
          %v3208 = vmul.f32 %v3199, %v3206
          %v3209 = vmul.f32 %v3200, %v3206
          %v3210 = vmul.f32 %v3201, %v3206
          %v3211 = vmul.f32 %v3202, %v3206
          %v3212 = vmul.f32 %v3203, %v3206
          %v3213 = vmul.f32 %v3204, %v3206
          %v3214 = vmul.f32 %v3205, %v3206
          %v3215 = vsub.f32 %v2942, %v3207
          %v3216 = vsub.f32 %v2943, %v3207
          %v3217 = vsub.f32 %v2944, %v3207
          %v3218 = vsub.f32 %v2945, %v3207
          %v3219 = vsub.f32 %v2946, %v3207
          %v3220 = vsub.f32 %v2947, %v3207
          %v3221 = vsub.f32 %v2948, %v3207
          %v3222 = vsub.f32 %v2949, %v3208
          %v3223 = vsub.f32 %v2950, %v3208
          %v3224 = vsub.f32 %v2951, %v3208
          %v3225 = vsub.f32 %v2952, %v3208
          %v3226 = vsub.f32 %v2953, %v3208
          %v3227 = vsub.f32 %v2954, %v3208
          %v3228 = vsub.f32 %v2955, %v3208
          %v3229 = vsub.f32 %v2956, %v3209
          %v3230 = vsub.f32 %v2957, %v3209
          %v3231 = vsub.f32 %v2958, %v3209
          %v3232 = vsub.f32 %v2959, %v3209
          %v3233 = vsub.f32 %v2960, %v3209
          %v3234 = vsub.f32 %v2961, %v3209
          %v3235 = vsub.f32 %v2962, %v3209
          %v3236 = vsub.f32 %v2963, %v3210
          %v3237 = vsub.f32 %v2964, %v3210
          %v3238 = vsub.f32 %v2965, %v3210
          %v3239 = vsub.f32 %v2966, %v3210
          %v3240 = vsub.f32 %v2967, %v3210
          %v3241 = vsub.f32 %v2968, %v3210
          %v3242 = vsub.f32 %v2969, %v3210
          %v3243 = vsub.f32 %v2970, %v3211
          %v3244 = vsub.f32 %v2971, %v3211
          %v3245 = vsub.f32 %v2972, %v3211
          %v3246 = vsub.f32 %v2973, %v3211
          %v3247 = vsub.f32 %v2974, %v3211
          %v3248 = vsub.f32 %v2975, %v3211
          %v3249 = vsub.f32 %v2976, %v3211
          %v3250 = vsub.f32 %v2977, %v3212
          %v3251 = vsub.f32 %v2978, %v3212
          %v3252 = vsub.f32 %v2979, %v3212
          %v3253 = vsub.f32 %v2980, %v3212
          %v3254 = vsub.f32 %v2981, %v3212
          %v3255 = vsub.f32 %v2982, %v3212
          %v3256 = vsub.f32 %v2983, %v3212
          %v3257 = vsub.f32 %v2984, %v3213
          %v3258 = vsub.f32 %v2985, %v3213
          %v3259 = vsub.f32 %v2986, %v3213
          %v3260 = vsub.f32 %v2987, %v3213
          %v3261 = vsub.f32 %v2988, %v3213
          %v3262 = vsub.f32 %v2989, %v3213
          %v3263 = vsub.f32 %v2990, %v3213
          %v3264 = vsub.f32 %v2991, %v3214
          %v3265 = vsub.f32 %v2992, %v3214
          %v3266 = vsub.f32 %v2993, %v3214
          %v3267 = vsub.f32 %v2994, %v3214
          %v3268 = vsub.f32 %v2995, %v3214
          %v3269 = vsub.f32 %v2996, %v3214
          %v3270 = vsub.f32 %v2997, %v3214
          %v3271 = vsub.f32 %v2998, %v3207
          %v3272 = vsub.f32 %v2999, %v3207
          %v3273 = vsub.f32 %v3000, %v3207
          %v3274 = vsub.f32 %v3001, %v3207
          %v3275 = vsub.f32 %v3002, %v3207
          %v3276 = vsub.f32 %v3003, %v3207
          %v3277 = vsub.f32 %v3004, %v3207
          %v3278 = vsub.f32 %v3005, %v3208
          %v3279 = vsub.f32 %v3006, %v3208
          %v3280 = vsub.f32 %v3007, %v3208
          %v3281 = vsub.f32 %v3008, %v3208
          %v3282 = vsub.f32 %v3009, %v3208
          %v3283 = vsub.f32 %v3010, %v3208
          %v3284 = vsub.f32 %v3011, %v3208
          %v3285 = vsub.f32 %v3012, %v3209
          %v3286 = vsub.f32 %v3013, %v3209
          %v3287 = vsub.f32 %v3014, %v3209
          %v3288 = vsub.f32 %v3015, %v3209
          %v3289 = vsub.f32 %v3016, %v3209
          %v3290 = vsub.f32 %v3017, %v3209
          %v3291 = vsub.f32 %v3018, %v3209
          %v3292 = vsub.f32 %v3019, %v3210
          %v3293 = vsub.f32 %v3020, %v3210
          %v3294 = vsub.f32 %v3021, %v3210
          %v3295 = vsub.f32 %v3022, %v3210
          %v3296 = vsub.f32 %v3023, %v3210
          %v3297 = vsub.f32 %v3024, %v3210
          %v3298 = vsub.f32 %v3025, %v3210
          %v3299 = vsub.f32 %v3026, %v3211
          %v3300 = vsub.f32 %v3027, %v3211
          %v3301 = vsub.f32 %v3028, %v3211
          %v3302 = vsub.f32 %v3029, %v3211
          %v3303 = vsub.f32 %v3030, %v3211
          %v3304 = vsub.f32 %v3031, %v3211
          %v3305 = vsub.f32 %v3032, %v3211
          %v3306 = vsub.f32 %v3033, %v3212
          %v3307 = vsub.f32 %v3034, %v3212
          %v3308 = vsub.f32 %v3035, %v3212
          %v3309 = vsub.f32 %v3036, %v3212
          %v3310 = vsub.f32 %v3037, %v3212
          %v3311 = vsub.f32 %v3038, %v3212
          %v3312 = vsub.f32 %v3039, %v3212
          %v3313 = vsub.f32 %v3040, %v3213
          %v3314 = vsub.f32 %v3041, %v3213
          %v3315 = vsub.f32 %v3042, %v3213
          %v3316 = vsub.f32 %v3043, %v3213
          %v3317 = vsub.f32 %v3044, %v3213
          %v3318 = vsub.f32 %v3045, %v3213
          %v3319 = vsub.f32 %v3046, %v3213
          %v3320 = vsub.f32 %v3047, %v3214
          %v3321 = vsub.f32 %v3048, %v3214
          %v3322 = vsub.f32 %v3049, %v3214
          %v3323 = vsub.f32 %v3050, %v3214
          %v3324 = vsub.f32 %v3051, %v3214
          %v3325 = vsub.f32 %v3052, %v3214
          %v3326 = vsub.f32 %v3053, %v3214
          %v3327 = vmul.f32 %v3215, %v3215
          %v3328 = vmul.f32 %v3216, %v3216
          %v3329 = vmul.f32 %v3217, %v3217
          %v3330 = vmul.f32 %v3218, %v3218
          %v3331 = vmul.f32 %v3219, %v3219
          %v3332 = vmul.f32 %v3220, %v3220
          %v3333 = vmul.f32 %v3221, %v3221
          %v3334 = vmul.f32 %v3222, %v3222
          %v3335 = vmul.f32 %v3223, %v3223
          %v3336 = vmul.f32 %v3224, %v3224
          %v3337 = vmul.f32 %v3225, %v3225
          %v3338 = vmul.f32 %v3226, %v3226
          %v3339 = vmul.f32 %v3227, %v3227
          %v3340 = vmul.f32 %v3228, %v3228
          %v3341 = vmul.f32 %v3229, %v3229
          %v3342 = vmul.f32 %v3230, %v3230
          %v3343 = vmul.f32 %v3231, %v3231
          %v3344 = vmul.f32 %v3232, %v3232
          %v3345 = vmul.f32 %v3233, %v3233
          %v3346 = vmul.f32 %v3234, %v3234
          %v3347 = vmul.f32 %v3235, %v3235
          %v3348 = vmul.f32 %v3236, %v3236
          %v3349 = vmul.f32 %v3237, %v3237
          %v3350 = vmul.f32 %v3238, %v3238
          %v3351 = vmul.f32 %v3239, %v3239
          %v3352 = vmul.f32 %v3240, %v3240
          %v3353 = vmul.f32 %v3241, %v3241
          %v3354 = vmul.f32 %v3242, %v3242
          %v3355 = vmul.f32 %v3243, %v3243
          %v3356 = vmul.f32 %v3244, %v3244
          %v3357 = vmul.f32 %v3245, %v3245
          %v3358 = vmul.f32 %v3246, %v3246
          %v3359 = vmul.f32 %v3247, %v3247
          %v3360 = vmul.f32 %v3248, %v3248
          %v3361 = vmul.f32 %v3249, %v3249
          %v3362 = vmul.f32 %v3250, %v3250
          %v3363 = vmul.f32 %v3251, %v3251
          %v3364 = vmul.f32 %v3252, %v3252
          %v3365 = vmul.f32 %v3253, %v3253
          %v3366 = vmul.f32 %v3254, %v3254
          %v3367 = vmul.f32 %v3255, %v3255
          %v3368 = vmul.f32 %v3256, %v3256
          %v3369 = vmul.f32 %v3257, %v3257
          %v3370 = vmul.f32 %v3258, %v3258
          %v3371 = vmul.f32 %v3259, %v3259
          %v3372 = vmul.f32 %v3260, %v3260
          %v3373 = vmul.f32 %v3261, %v3261
          %v3374 = vmul.f32 %v3262, %v3262
          %v3375 = vmul.f32 %v3263, %v3263
          %v3376 = vmul.f32 %v3264, %v3264
          %v3377 = vmul.f32 %v3265, %v3265
          %v3378 = vmul.f32 %v3266, %v3266
          %v3379 = vmul.f32 %v3267, %v3267
          %v3380 = vmul.f32 %v3268, %v3268
          %v3381 = vmul.f32 %v3269, %v3269
          %v3382 = vmul.f32 %v3270, %v3270
          %v3383 = vmul.f32 %v3271, %v3271
          %v3384 = vmul.f32 %v3272, %v3272
          %v3385 = vmul.f32 %v3273, %v3273
          %v3386 = vmul.f32 %v3274, %v3274
          %v3387 = vmul.f32 %v3275, %v3275
          %v3388 = vmul.f32 %v3276, %v3276
          %v3389 = vmul.f32 %v3277, %v3277
          %v3390 = vmul.f32 %v3278, %v3278
          %v3391 = vmul.f32 %v3279, %v3279
          %v3392 = vmul.f32 %v3280, %v3280
          %v3393 = vmul.f32 %v3281, %v3281
          %v3394 = vmul.f32 %v3282, %v3282
          %v3395 = vmul.f32 %v3283, %v3283
          %v3396 = vmul.f32 %v3284, %v3284
          %v3397 = vmul.f32 %v3285, %v3285
          %v3398 = vmul.f32 %v3286, %v3286
          %v3399 = vmul.f32 %v3287, %v3287
          %v3400 = vmul.f32 %v3288, %v3288
          %v3401 = vmul.f32 %v3289, %v3289
          %v3402 = vmul.f32 %v3290, %v3290
          %v3403 = vmul.f32 %v3291, %v3291
          %v3404 = vmul.f32 %v3292, %v3292
          %v3405 = vmul.f32 %v3293, %v3293
          %v3406 = vmul.f32 %v3294, %v3294
          %v3407 = vmul.f32 %v3295, %v3295
          %v3408 = vmul.f32 %v3296, %v3296
          %v3409 = vmul.f32 %v3297, %v3297
          %v3410 = vmul.f32 %v3298, %v3298
          %v3411 = vmul.f32 %v3299, %v3299
          %v3412 = vmul.f32 %v3300, %v3300
          %v3413 = vmul.f32 %v3301, %v3301
          %v3414 = vmul.f32 %v3302, %v3302
          %v3415 = vmul.f32 %v3303, %v3303
          %v3416 = vmul.f32 %v3304, %v3304
          %v3417 = vmul.f32 %v3305, %v3305
          %v3418 = vmul.f32 %v3306, %v3306
          %v3419 = vmul.f32 %v3307, %v3307
          %v3420 = vmul.f32 %v3308, %v3308
          %v3421 = vmul.f32 %v3309, %v3309
          %v3422 = vmul.f32 %v3310, %v3310
          %v3423 = vmul.f32 %v3311, %v3311
          %v3424 = vmul.f32 %v3312, %v3312
          %v3425 = vmul.f32 %v3313, %v3313
          %v3426 = vmul.f32 %v3314, %v3314
          %v3427 = vmul.f32 %v3315, %v3315
          %v3428 = vmul.f32 %v3316, %v3316
          %v3429 = vmul.f32 %v3317, %v3317
          %v3430 = vmul.f32 %v3318, %v3318
          %v3431 = vmul.f32 %v3319, %v3319
          %v3432 = vmul.f32 %v3320, %v3320
          %v3433 = vmul.f32 %v3321, %v3321
          %v3434 = vmul.f32 %v3322, %v3322
          %v3435 = vmul.f32 %v3323, %v3323
          %v3436 = vmul.f32 %v3324, %v3324
          %v3437 = vmul.f32 %v3325, %v3325
          %v3438 = vmul.f32 %v3326, %v3326
          %v3439 = vadd.f32 %v3327, %v3328
          %v3440 = vadd.f32 %v3439, %v3329
          %v3441 = vadd.f32 %v3440, %v3330
          %v3442 = vadd.f32 %v3441, %v3331
          %v3443 = vadd.f32 %v3442, %v3332
          %v3444 = vsel %vm2887, %v3333, 0.0
          %v3445 = vadd.f32 %v3443, %v3444
          %3446 = vadd.xlane.f32.xlu0 %v3445
          %v3447 = vpop.xlane.xlu0 %3446
          %v3448 = vadd.f32 %v3334, %v3335
          %v3449 = vadd.f32 %v3448, %v3336
          %v3450 = vadd.f32 %v3449, %v3337
          %v3451 = vadd.f32 %v3450, %v3338
          %v3452 = vadd.f32 %v3451, %v3339
          %v3453 = vsel %vm2887, %v3340, 0.0
          %v3454 = vadd.f32 %v3452, %v3453
          %3455 = vadd.xlane.f32.xlu0 %v3454
          %v3456 = vpop.xlane.xlu0 %3455
          %v3457 = vadd.f32 %v3341, %v3342
          %v3458 = vadd.f32 %v3457, %v3343
          %v3459 = vadd.f32 %v3458, %v3344
          %v3460 = vadd.f32 %v3459, %v3345
          %v3461 = vadd.f32 %v3460, %v3346
          %v3462 = vsel %vm2887, %v3347, 0.0
          %v3463 = vadd.f32 %v3461, %v3462
          %3464 = vadd.xlane.f32.xlu0 %v3463
          %v3465 = vpop.xlane.xlu0 %3464
          %v3466 = vadd.f32 %v3348, %v3349
          %v3467 = vadd.f32 %v3466, %v3350
          %v3468 = vadd.f32 %v3467, %v3351
          %v3469 = vadd.f32 %v3468, %v3352
          %v3470 = vadd.f32 %v3469, %v3353
          %v3471 = vsel %vm2887, %v3354, 0.0
          %v3472 = vadd.f32 %v3470, %v3471
          %3473 = vadd.xlane.f32.xlu0 %v3472
          %v3474 = vpop.xlane.xlu0 %3473
          %v3475 = vadd.f32 %v3355, %v3356
          %v3476 = vadd.f32 %v3475, %v3357
          %v3477 = vadd.f32 %v3476, %v3358
          %v3478 = vadd.f32 %v3477, %v3359
          %v3479 = vadd.f32 %v3478, %v3360
          %v3480 = vsel %vm2887, %v3361, 0.0
          %v3481 = vadd.f32 %v3479, %v3480
          %3482 = vadd.xlane.f32.xlu0 %v3481
          %v3483 = vpop.xlane.xlu0 %3482
          %v3484 = vadd.f32 %v3362, %v3363
          %v3485 = vadd.f32 %v3484, %v3364
          %v3486 = vadd.f32 %v3485, %v3365
          %v3487 = vadd.f32 %v3486, %v3366
          %v3488 = vadd.f32 %v3487, %v3367
          %v3489 = vsel %vm2887, %v3368, 0.0
          %v3490 = vadd.f32 %v3488, %v3489
          %3491 = vadd.xlane.f32.xlu0 %v3490
          %v3492 = vpop.xlane.xlu0 %3491
          %v3493 = vadd.f32 %v3369, %v3370
          %v3494 = vadd.f32 %v3493, %v3371
          %v3495 = vadd.f32 %v3494, %v3372
          %v3496 = vadd.f32 %v3495, %v3373
          %v3497 = vadd.f32 %v3496, %v3374
          %v3498 = vsel %vm2887, %v3375, 0.0
          %v3499 = vadd.f32 %v3497, %v3498
          %3500 = vadd.xlane.f32.xlu0 %v3499
          %v3501 = vpop.xlane.xlu0 %3500
          %v3502 = vadd.f32 %v3376, %v3377
          %v3503 = vadd.f32 %v3502, %v3378
          %v3504 = vadd.f32 %v3503, %v3379
          %v3505 = vadd.f32 %v3504, %v3380
          %v3506 = vadd.f32 %v3505, %v3381
          %v3507 = vsel %vm2887, %v3382, 0.0
          %v3508 = vadd.f32 %v3506, %v3507
          %3509 = vadd.xlane.f32.xlu0 %v3508
          %v3510 = vpop.xlane.xlu0 %3509
          %v3511 = vadd.f32 %v3383, %v3384
          %v3512 = vadd.f32 %v3511, %v3385
          %v3513 = vadd.f32 %v3512, %v3386
          %v3514 = vadd.f32 %v3513, %v3387
          %v3515 = vadd.f32 %v3514, %v3388
          %v3516 = vsel %vm2887, %v3389, 0.0
          %v3517 = vadd.f32 %v3515, %v3516
          %3518 = vadd.xlane.f32.xlu0 %v3517
          %v3519 = vpop.xlane.xlu0 %3518
          %v3520 = vadd.f32 %v3390, %v3391
          %v3521 = vadd.f32 %v3520, %v3392
          %v3522 = vadd.f32 %v3521, %v3393
          %v3523 = vadd.f32 %v3522, %v3394
          %v3524 = vadd.f32 %v3523, %v3395
          %v3525 = vsel %vm2887, %v3396, 0.0
          %v3526 = vadd.f32 %v3524, %v3525
          %3527 = vadd.xlane.f32.xlu0 %v3526
          %v3528 = vpop.xlane.xlu0 %3527
          %v3529 = vadd.f32 %v3397, %v3398
          %v3530 = vadd.f32 %v3529, %v3399
          %v3531 = vadd.f32 %v3530, %v3400
          %v3532 = vadd.f32 %v3531, %v3401
          %v3533 = vadd.f32 %v3532, %v3402
          %v3534 = vsel %vm2887, %v3403, 0.0
          %v3535 = vadd.f32 %v3533, %v3534
          %3536 = vadd.xlane.f32.xlu0 %v3535
          %v3537 = vpop.xlane.xlu0 %3536
          %v3538 = vadd.f32 %v3404, %v3405
          %v3539 = vadd.f32 %v3538, %v3406
          %v3540 = vadd.f32 %v3539, %v3407
          %v3541 = vadd.f32 %v3540, %v3408
          %v3542 = vadd.f32 %v3541, %v3409
          %v3543 = vsel %vm2887, %v3410, 0.0
          %v3544 = vadd.f32 %v3542, %v3543
          %3545 = vadd.xlane.f32.xlu0 %v3544
          %v3546 = vpop.xlane.xlu0 %3545
          %v3547 = vadd.f32 %v3411, %v3412
          %v3548 = vadd.f32 %v3547, %v3413
          %v3549 = vadd.f32 %v3548, %v3414
          %v3550 = vadd.f32 %v3549, %v3415
          %v3551 = vadd.f32 %v3550, %v3416
          %v3552 = vsel %vm2887, %v3417, 0.0
          %v3553 = vadd.f32 %v3551, %v3552
          %3554 = vadd.xlane.f32.xlu0 %v3553
          %v3555 = vpop.xlane.xlu0 %3554
          %v3556 = vadd.f32 %v3418, %v3419
          %v3557 = vadd.f32 %v3556, %v3420
          %v3558 = vadd.f32 %v3557, %v3421
          %v3559 = vadd.f32 %v3558, %v3422
          %v3560 = vadd.f32 %v3559, %v3423
          %v3561 = vsel %vm2887, %v3424, 0.0
          %v3562 = vadd.f32 %v3560, %v3561
          %3563 = vadd.xlane.f32.xlu0 %v3562
          %v3564 = vpop.xlane.xlu0 %3563
          %v3565 = vadd.f32 %v3425, %v3426
          %v3566 = vadd.f32 %v3565, %v3427
          %v3567 = vadd.f32 %v3566, %v3428
          %v3568 = vadd.f32 %v3567, %v3429
          %v3569 = vadd.f32 %v3568, %v3430
          %v3570 = vsel %vm2887, %v3431, 0.0
          %v3571 = vadd.f32 %v3569, %v3570
          %3572 = vadd.xlane.f32.xlu0 %v3571
          %v3573 = vpop.xlane.xlu0 %3572
          %v3574 = vadd.f32 %v3432, %v3433
          %v3575 = vadd.f32 %v3574, %v3434
          %v3576 = vadd.f32 %v3575, %v3435
          %v3577 = vadd.f32 %v3576, %v3436
          %v3578 = vadd.f32 %v3577, %v3437
          %v3579 = vsel %vm2887, %v3438, 0.0
          %v3580 = vadd.f32 %v3578, %v3579
          %3581 = vadd.xlane.f32.xlu0 %v3580
          %v3582 = vpop.xlane.xlu0 %3581
          %v3583 = vadd.f32 %v3447, %v3519
          %v3584 = vadd.f32 %v3456, %v3528
          %v3585 = vadd.f32 %v3465, %v3537
          %v3586 = vadd.f32 %v3474, %v3546
          %v3587 = vadd.f32 %v3483, %v3555
          %v3588 = vadd.f32 %v3492, %v3564
          %v3589 = vadd.f32 %v3501, %v3573
          %v3590 = vadd.f32 %v3510, %v3582
          %v3591 = vmul.f32 %v3583, %v3206
          %v3592 = vmul.f32 %v3584, %v3206
          %v3593 = vmul.f32 %v3585, %v3206
          %v3594 = vmul.f32 %v3586, %v3206
          %v3595 = vmul.f32 %v3587, %v3206
          %v3596 = vmul.f32 %v3588, %v3206
          %v3597 = vmul.f32 %v3589, %v3206
          %v3598 = vmul.f32 %v3590, %v3206
          %v3599 = vadd.f32 %v3591, 1e-05
          %v3600 = vadd.f32 %v3592, 1e-05
          %v3601 = vadd.f32 %v3593, 1e-05
          %v3602 = vadd.f32 %v3594, 1e-05
          %v3603 = vadd.f32 %v3595, 1e-05
          %v3604 = vadd.f32 %v3596, 1e-05
          %v3605 = vadd.f32 %v3597, 1e-05
          %v3606 = vadd.f32 %v3598, 1e-05
          %v3607 = vrsqrt.pop %v3599
          %v3608 = vmul.f32 %v3599, %v3607
          %vm3609 = vcmp.eq.f32.partialorder %v3599, inf
          %v3610 = vsel %vm3609, %v3599, %v3608
          %vm3611 = vcmp.eq.f32.partialorder %v3599, 0.0
          %v3612 = vand.u32 %v3599, 2147483648
          %v3613 = vsel %vm3611, %v3612, %v3610
          %v3614 = vrsqrt.pop %v3600
          %v3615 = vmul.f32 %v3600, %v3614
          %vm3616 = vcmp.eq.f32.partialorder %v3600, inf
          %v3617 = vsel %vm3616, %v3600, %v3615
          %vm3618 = vcmp.eq.f32.partialorder %v3600, 0.0
          %v3619 = vand.u32 %v3600, 2147483648
          %v3620 = vsel %vm3618, %v3619, %v3617
          %v3621 = vrsqrt.pop %v3601
          %v3622 = vmul.f32 %v3601, %v3621
          %vm3623 = vcmp.eq.f32.partialorder %v3601, inf
          %v3624 = vsel %vm3623, %v3601, %v3622
          %vm3625 = vcmp.eq.f32.partialorder %v3601, 0.0
          %v3626 = vand.u32 %v3601, 2147483648
          %v3627 = vsel %vm3625, %v3626, %v3624
          %v3628 = vrsqrt.pop %v3602
          %v3629 = vmul.f32 %v3602, %v3628
          %vm3630 = vcmp.eq.f32.partialorder %v3602, inf
          %v3631 = vsel %vm3630, %v3602, %v3629
          %vm3632 = vcmp.eq.f32.partialorder %v3602, 0.0
          %v3633 = vand.u32 %v3602, 2147483648
          %v3634 = vsel %vm3632, %v3633, %v3631
          %v3635 = vrsqrt.pop %v3603
          %v3636 = vmul.f32 %v3603, %v3635
          %vm3637 = vcmp.eq.f32.partialorder %v3603, inf
          %v3638 = vsel %vm3637, %v3603, %v3636
          %vm3639 = vcmp.eq.f32.partialorder %v3603, 0.0
          %v3640 = vand.u32 %v3603, 2147483648
          %v3641 = vsel %vm3639, %v3640, %v3638
          %v3642 = vrsqrt.pop %v3604
          %v3643 = vmul.f32 %v3604, %v3642
          %vm3644 = vcmp.eq.f32.partialorder %v3604, inf
          %v3645 = vsel %vm3644, %v3604, %v3643
          %vm3646 = vcmp.eq.f32.partialorder %v3604, 0.0
          %v3647 = vand.u32 %v3604, 2147483648
          %v3648 = vsel %vm3646, %v3647, %v3645
          %v3649 = vrsqrt.pop %v3605
          %v3650 = vmul.f32 %v3605, %v3649
          %vm3651 = vcmp.eq.f32.partialorder %v3605, inf
          %v3652 = vsel %vm3651, %v3605, %v3650
          %vm3653 = vcmp.eq.f32.partialorder %v3605, 0.0
          %v3654 = vand.u32 %v3605, 2147483648
          %v3655 = vsel %vm3653, %v3654, %v3652
          %v3656 = vrsqrt.pop %v3606
          %v3657 = vmul.f32 %v3606, %v3656
          %vm3658 = vcmp.eq.f32.partialorder %v3606, inf
          %v3659 = vsel %vm3658, %v3606, %v3657
          %vm3660 = vcmp.eq.f32.partialorder %v3606, 0.0
          %v3661 = vand.u32 %v3606, 2147483648
          %v3662 = vsel %vm3660, %v3661, %v3659
          %v3663 = vrcp.pop %v3613
          %v3664 = vmul.f32 1.0, %v3663
          %v3665 = vrcp.pop %v3620
          %v3666 = vmul.f32 1.0, %v3665
          %v3667 = vrcp.pop %v3627
          %v3668 = vmul.f32 1.0, %v3667
          %v3669 = vrcp.pop %v3634
          %v3670 = vmul.f32 1.0, %v3669
          %v3671 = vrcp.pop %v3641
          %v3672 = vmul.f32 1.0, %v3671
          %v3673 = vrcp.pop %v3648
          %v3674 = vmul.f32 1.0, %v3673
          %v3675 = vrcp.pop %v3655
          %v3676 = vmul.f32 1.0, %v3675
          %v3677 = vrcp.pop %v3662
          %v3678 = vmul.f32 1.0, %v3677
          %v3679 = vld [vmem:[%s9] sm:$0xff]
          %v3680 = vld [vmem:[%s9 + $0x8] sm:$0xff]
          %v3681 = vld [vmem:[%s9 + $0x10] sm:$0xff]
          %v3682 = vld [vmem:[%s9 + $0x18] sm:$0xff]
          %v3683 = vld [vmem:[%s9 + $0x20] sm:$0xff]
          %v3684 = vld [vmem:[%s9 + $0x28] sm:$0xff]
          %v3685 = vld [vmem:[%s9 + $0x30] sm:$0xff]
          %v3686 = vld [vmem:[%s9 + $0x38] sm:$0xff]
          %v3687 = vmul.f32 %v3679, %v3664
          %v3688 = vmul.f32 %v3680, %v3666
          %v3689 = vmul.f32 %v3681, %v3668
          %v3690 = vmul.f32 %v3682, %v3670
          %v3691 = vmul.f32 %v3683, %v3672
          %v3692 = vmul.f32 %v3684, %v3674
          %v3693 = vmul.f32 %v3685, %v3676
          %v3694 = vmul.f32 %v3686, %v3678
          %v3695 = vld [vmem:[%s10] sm:$0xff]
          %v3696 = vld [vmem:[%s10 + $0x8] sm:$0xff]
          %v3697 = vld [vmem:[%s10 + $0x10] sm:$0xff]
          %v3698 = vld [vmem:[%s10 + $0x18] sm:$0xff]
          %v3699 = vld [vmem:[%s10 + $0x20] sm:$0xff]
          %v3700 = vld [vmem:[%s10 + $0x28] sm:$0xff]
          %v3701 = vld [vmem:[%s10 + $0x30] sm:$0xff]
          %v3702 = vld [vmem:[%s10 + $0x38] sm:$0xff]
          %v3703 = vmul.f32 %v3207, %v3687
          %v3704 = vmul.f32 %v3208, %v3688
          %v3705 = vmul.f32 %v3209, %v3689
          %v3706 = vmul.f32 %v3210, %v3690
          %v3707 = vmul.f32 %v3211, %v3691
          %v3708 = vmul.f32 %v3212, %v3692
          %v3709 = vmul.f32 %v3213, %v3693
          %v3710 = vmul.f32 %v3214, %v3694
          %v3711 = vsub.f32 %v3695, %v3703
          %v3712 = vsub.f32 %v3696, %v3704
          %v3713 = vsub.f32 %v3697, %v3705
          %v3714 = vsub.f32 %v3698, %v3706
          %v3715 = vsub.f32 %v3699, %v3707
          %v3716 = vsub.f32 %v3700, %v3708
          %v3717 = vsub.f32 %v3701, %v3709
          %v3718 = vsub.f32 %v3702, %v3710
          %3720 = vset.pattern.permute.xlu0 0
          %3721 = vperm.xlu0 %3720, %v3687
          %v3722 = vpop.permute.xlu0 %3721
          %3725 = vset.pattern.permute.xlu0 0
          %3726 = vperm.xlu0 %3725, %v3688
          %v3727 = vpop.permute.xlu0 %3726
          %3730 = vset.pattern.permute.xlu0 0
          %3731 = vperm.xlu0 %3730, %v3689
          %v3732 = vpop.permute.xlu0 %3731
          %3735 = vset.pattern.permute.xlu0 0
          %3736 = vperm.xlu0 %3735, %v3690
          %v3737 = vpop.permute.xlu0 %3736
          %3740 = vset.pattern.permute.xlu0 0
          %3741 = vperm.xlu0 %3740, %v3691
          %v3742 = vpop.permute.xlu0 %3741
          %3745 = vset.pattern.permute.xlu0 0
          %3746 = vperm.xlu0 %3745, %v3692
          %v3747 = vpop.permute.xlu0 %3746
          %3750 = vset.pattern.permute.xlu0 0
          %3751 = vperm.xlu0 %3750, %v3693
          %v3752 = vpop.permute.xlu0 %3751
          %3755 = vset.pattern.permute.xlu0 0
          %3756 = vperm.xlu0 %3755, %v3694
          %v3757 = vpop.permute.xlu0 %3756
          %v3759 = vmul.f32 %v2942, %v3722
          %v3760 = vmul.f32 %v2943, %v3722
          %v3761 = vmul.f32 %v2944, %v3722
          %v3762 = vmul.f32 %v2945, %v3722
          %v3763 = vmul.f32 %v2946, %v3722
          %v3764 = vmul.f32 %v2947, %v3722
          %v3765 = vmul.f32 %v2948, %v3722
          %v3766 = vmul.f32 %v2949, %v3727
          %v3767 = vmul.f32 %v2950, %v3727
          %v3768 = vmul.f32 %v2951, %v3727
          %v3769 = vmul.f32 %v2952, %v3727
          %v3770 = vmul.f32 %v2953, %v3727
          %v3771 = vmul.f32 %v2954, %v3727
          %v3772 = vmul.f32 %v2955, %v3727
          %v3773 = vmul.f32 %v2956, %v3732
          %v3774 = vmul.f32 %v2957, %v3732
          %v3775 = vmul.f32 %v2958, %v3732
          %v3776 = vmul.f32 %v2959, %v3732
          %v3777 = vmul.f32 %v2960, %v3732
          %v3778 = vmul.f32 %v2961, %v3732
          %v3779 = vmul.f32 %v2962, %v3732
          %v3780 = vmul.f32 %v2963, %v3737
          %v3781 = vmul.f32 %v2964, %v3737
          %v3782 = vmul.f32 %v2965, %v3737
          %v3783 = vmul.f32 %v2966, %v3737
          %v3784 = vmul.f32 %v2967, %v3737
          %v3785 = vmul.f32 %v2968, %v3737
          %v3786 = vmul.f32 %v2969, %v3737
          %v3787 = vmul.f32 %v2970, %v3742
          %v3788 = vmul.f32 %v2971, %v3742
          %v3789 = vmul.f32 %v2972, %v3742
          %v3790 = vmul.f32 %v2973, %v3742
          %v3791 = vmul.f32 %v2974, %v3742
          %v3792 = vmul.f32 %v2975, %v3742
          %v3793 = vmul.f32 %v2976, %v3742
          %v3794 = vmul.f32 %v2977, %v3747
          %v3795 = vmul.f32 %v2978, %v3747
          %v3796 = vmul.f32 %v2979, %v3747
          %v3797 = vmul.f32 %v2980, %v3747
          %v3798 = vmul.f32 %v2981, %v3747
          %v3799 = vmul.f32 %v2982, %v3747
          %v3800 = vmul.f32 %v2983, %v3747
          %v3801 = vmul.f32 %v2984, %v3752
          %v3802 = vmul.f32 %v2985, %v3752
          %v3803 = vmul.f32 %v2986, %v3752
          %v3804 = vmul.f32 %v2987, %v3752
          %v3805 = vmul.f32 %v2988, %v3752
          %v3806 = vmul.f32 %v2989, %v3752
          %v3807 = vmul.f32 %v2990, %v3752
          %v3808 = vmul.f32 %v2991, %v3757
          %v3809 = vmul.f32 %v2992, %v3757
          %v3810 = vmul.f32 %v2993, %v3757
          %v3811 = vmul.f32 %v2994, %v3757
          %v3812 = vmul.f32 %v2995, %v3757
          %v3813 = vmul.f32 %v2996, %v3757
          %v3814 = vmul.f32 %v2997, %v3757
          %v3815 = vmul.f32 %v2998, %v3722
          %v3816 = vmul.f32 %v2999, %v3722
          %v3817 = vmul.f32 %v3000, %v3722
          %v3818 = vmul.f32 %v3001, %v3722
          %v3819 = vmul.f32 %v3002, %v3722
          %v3820 = vmul.f32 %v3003, %v3722
          %v3821 = vmul.f32 %v3004, %v3722
          %v3822 = vmul.f32 %v3005, %v3727
          %v3823 = vmul.f32 %v3006, %v3727
          %v3824 = vmul.f32 %v3007, %v3727
          %v3825 = vmul.f32 %v3008, %v3727
          %v3826 = vmul.f32 %v3009, %v3727
          %v3827 = vmul.f32 %v3010, %v3727
          %v3828 = vmul.f32 %v3011, %v3727
          %v3829 = vmul.f32 %v3012, %v3732
          %v3830 = vmul.f32 %v3013, %v3732
          %v3831 = vmul.f32 %v3014, %v3732
          %v3832 = vmul.f32 %v3015, %v3732
          %v3833 = vmul.f32 %v3016, %v3732
          %v3834 = vmul.f32 %v3017, %v3732
          %v3835 = vmul.f32 %v3018, %v3732
          %v3836 = vmul.f32 %v3019, %v3737
          %v3837 = vmul.f32 %v3020, %v3737
          %v3838 = vmul.f32 %v3021, %v3737
          %v3839 = vmul.f32 %v3022, %v3737
          %v3840 = vmul.f32 %v3023, %v3737
          %v3841 = vmul.f32 %v3024, %v3737
          %v3842 = vmul.f32 %v3025, %v3737
          %v3843 = vmul.f32 %v3026, %v3742
          %v3844 = vmul.f32 %v3027, %v3742
          %v3845 = vmul.f32 %v3028, %v3742
          %v3846 = vmul.f32 %v3029, %v3742
          %v3847 = vmul.f32 %v3030, %v3742
          %v3848 = vmul.f32 %v3031, %v3742
          %v3849 = vmul.f32 %v3032, %v3742
          %v3850 = vmul.f32 %v3033, %v3747
          %v3851 = vmul.f32 %v3034, %v3747
          %v3852 = vmul.f32 %v3035, %v3747
          %v3853 = vmul.f32 %v3036, %v3747
          %v3854 = vmul.f32 %v3037, %v3747
          %v3855 = vmul.f32 %v3038, %v3747
          %v3856 = vmul.f32 %v3039, %v3747
          %v3857 = vmul.f32 %v3040, %v3752
          %v3858 = vmul.f32 %v3041, %v3752
          %v3859 = vmul.f32 %v3042, %v3752
          %v3860 = vmul.f32 %v3043, %v3752
          %v3861 = vmul.f32 %v3044, %v3752
          %v3862 = vmul.f32 %v3045, %v3752
          %v3863 = vmul.f32 %v3046, %v3752
          %v3864 = vmul.f32 %v3047, %v3757
          %v3865 = vmul.f32 %v3048, %v3757
          %v3866 = vmul.f32 %v3049, %v3757
          %v3867 = vmul.f32 %v3050, %v3757
          %v3868 = vmul.f32 %v3051, %v3757
          %v3869 = vmul.f32 %v3052, %v3757
          %v3870 = vmul.f32 %v3053, %v3757
          %3872 = vset.pattern.permute.xlu0 0
          %3873 = vperm.xlu0 %3872, %v3711
          %v3874 = vpop.permute.xlu0 %3873
          %3877 = vset.pattern.permute.xlu0 0
          %3878 = vperm.xlu0 %3877, %v3712
          %v3879 = vpop.permute.xlu0 %3878
          %3882 = vset.pattern.permute.xlu0 0
          %3883 = vperm.xlu0 %3882, %v3713
          %v3884 = vpop.permute.xlu0 %3883
          %3887 = vset.pattern.permute.xlu0 0
          %3888 = vperm.xlu0 %3887, %v3714
          %v3889 = vpop.permute.xlu0 %3888
          %3892 = vset.pattern.permute.xlu0 0
          %3893 = vperm.xlu0 %3892, %v3715
          %v3894 = vpop.permute.xlu0 %3893
          %3897 = vset.pattern.permute.xlu0 0
          %3898 = vperm.xlu0 %3897, %v3716
          %v3899 = vpop.permute.xlu0 %3898
          %3902 = vset.pattern.permute.xlu0 0
          %3903 = vperm.xlu0 %3902, %v3717
          %v3904 = vpop.permute.xlu0 %3903
          %3907 = vset.pattern.permute.xlu0 0
          %3908 = vperm.xlu0 %3907, %v3718
          %v3909 = vpop.permute.xlu0 %3908
          %v3911 = vadd.f32 %v3759, %v3874
          %v3912 = vadd.f32 %v3760, %v3874
          %v3913 = vadd.f32 %v3761, %v3874
          %v3914 = vadd.f32 %v3762, %v3874
          %v3915 = vadd.f32 %v3763, %v3874
          %v3916 = vadd.f32 %v3764, %v3874
          %v3917 = vadd.f32 %v3765, %v3874
          %v3918 = vadd.f32 %v3766, %v3879
          %v3919 = vadd.f32 %v3767, %v3879
          %v3920 = vadd.f32 %v3768, %v3879
          %v3921 = vadd.f32 %v3769, %v3879
          %v3922 = vadd.f32 %v3770, %v3879
          %v3923 = vadd.f32 %v3771, %v3879
          %v3924 = vadd.f32 %v3772, %v3879
          %v3925 = vadd.f32 %v3773, %v3884
          %v3926 = vadd.f32 %v3774, %v3884
          %v3927 = vadd.f32 %v3775, %v3884
          %v3928 = vadd.f32 %v3776, %v3884
          %v3929 = vadd.f32 %v3777, %v3884
          %v3930 = vadd.f32 %v3778, %v3884
          %v3931 = vadd.f32 %v3779, %v3884
          %v3932 = vadd.f32 %v3780, %v3889
          %v3933 = vadd.f32 %v3781, %v3889
          %v3934 = vadd.f32 %v3782, %v3889
          %v3935 = vadd.f32 %v3783, %v3889
          %v3936 = vadd.f32 %v3784, %v3889
          %v3937 = vadd.f32 %v3785, %v3889
          %v3938 = vadd.f32 %v3786, %v3889
          %v3939 = vadd.f32 %v3787, %v3894
          %v3940 = vadd.f32 %v3788, %v3894
          %v3941 = vadd.f32 %v3789, %v3894
          %v3942 = vadd.f32 %v3790, %v3894
          %v3943 = vadd.f32 %v3791, %v3894
          %v3944 = vadd.f32 %v3792, %v3894
          %v3945 = vadd.f32 %v3793, %v3894
          %v3946 = vadd.f32 %v3794, %v3899
          %v3947 = vadd.f32 %v3795, %v3899
          %v3948 = vadd.f32 %v3796, %v3899
          %v3949 = vadd.f32 %v3797, %v3899
          %v3950 = vadd.f32 %v3798, %v3899
          %v3951 = vadd.f32 %v3799, %v3899
          %v3952 = vadd.f32 %v3800, %v3899
          %v3953 = vadd.f32 %v3801, %v3904
          %v3954 = vadd.f32 %v3802, %v3904
          %v3955 = vadd.f32 %v3803, %v3904
          %v3956 = vadd.f32 %v3804, %v3904
          %v3957 = vadd.f32 %v3805, %v3904
          %v3958 = vadd.f32 %v3806, %v3904
          %v3959 = vadd.f32 %v3807, %v3904
          %v3960 = vadd.f32 %v3808, %v3909
          %v3961 = vadd.f32 %v3809, %v3909
          %v3962 = vadd.f32 %v3810, %v3909
          %v3963 = vadd.f32 %v3811, %v3909
          %v3964 = vadd.f32 %v3812, %v3909
          %v3965 = vadd.f32 %v3813, %v3909
          %v3966 = vadd.f32 %v3814, %v3909
          %v3967 = vadd.f32 %v3815, %v3874
          %v3968 = vadd.f32 %v3816, %v3874
          %v3969 = vadd.f32 %v3817, %v3874
          %v3970 = vadd.f32 %v3818, %v3874
          %v3971 = vadd.f32 %v3819, %v3874
          %v3972 = vadd.f32 %v3820, %v3874
          %v3973 = vadd.f32 %v3821, %v3874
          %v3974 = vadd.f32 %v3822, %v3879
          %v3975 = vadd.f32 %v3823, %v3879
          %v3976 = vadd.f32 %v3824, %v3879
          %v3977 = vadd.f32 %v3825, %v3879
          %v3978 = vadd.f32 %v3826, %v3879
          %v3979 = vadd.f32 %v3827, %v3879
          %v3980 = vadd.f32 %v3828, %v3879
          %v3981 = vadd.f32 %v3829, %v3884
          %v3982 = vadd.f32 %v3830, %v3884
          %v3983 = vadd.f32 %v3831, %v3884
          %v3984 = vadd.f32 %v3832, %v3884
          %v3985 = vadd.f32 %v3833, %v3884
          %v3986 = vadd.f32 %v3834, %v3884
          %v3987 = vadd.f32 %v3835, %v3884
          %v3988 = vadd.f32 %v3836, %v3889
          %v3989 = vadd.f32 %v3837, %v3889
          %v3990 = vadd.f32 %v3838, %v3889
          %v3991 = vadd.f32 %v3839, %v3889
          %v3992 = vadd.f32 %v3840, %v3889
          %v3993 = vadd.f32 %v3841, %v3889
          %v3994 = vadd.f32 %v3842, %v3889
          %v3995 = vadd.f32 %v3843, %v3894
          %v3996 = vadd.f32 %v3844, %v3894
          %v3997 = vadd.f32 %v3845, %v3894
          %v3998 = vadd.f32 %v3846, %v3894
          %v3999 = vadd.f32 %v3847, %v3894
          %v4000 = vadd.f32 %v3848, %v3894
          %v4001 = vadd.f32 %v3849, %v3894
          %v4002 = vadd.f32 %v3850, %v3899
          %v4003 = vadd.f32 %v3851, %v3899
          %v4004 = vadd.f32 %v3852, %v3899
          %v4005 = vadd.f32 %v3853, %v3899
          %v4006 = vadd.f32 %v3854, %v3899
          %v4007 = vadd.f32 %v3855, %v3899
          %v4008 = vadd.f32 %v3856, %v3899
          %v4009 = vadd.f32 %v3857, %v3904
          %v4010 = vadd.f32 %v3858, %v3904
          %v4011 = vadd.f32 %v3859, %v3904
          %v4012 = vadd.f32 %v3860, %v3904
          %v4013 = vadd.f32 %v3861, %v3904
          %v4014 = vadd.f32 %v3862, %v3904
          %v4015 = vadd.f32 %v3863, %v3904
          %v4016 = vadd.f32 %v3864, %v3909
          %v4017 = vadd.f32 %v3865, %v3909
          %v4018 = vadd.f32 %v3866, %v3909
          %v4019 = vadd.f32 %v3867, %v3909
          %v4020 = vadd.f32 %v3868, %v3909
          %v4021 = vadd.f32 %v3869, %v3909
          %v4022 = vadd.f32 %v3870, %v3909
          %v4023 = vmax.f32 %v3911, 0.0
          %v4024 = vmax.f32 %v3912, 0.0
          %v4025 = vmax.f32 %v3913, 0.0
          %v4026 = vmax.f32 %v3914, 0.0
          %v4027 = vmax.f32 %v3915, 0.0
          %v4028 = vmax.f32 %v3916, 0.0
          %v4029 = vmax.f32 %v3917, 0.0
          %v4030 = vmax.f32 %v3918, 0.0
          %v4031 = vmax.f32 %v3919, 0.0
          %v4032 = vmax.f32 %v3920, 0.0
          %v4033 = vmax.f32 %v3921, 0.0
          %v4034 = vmax.f32 %v3922, 0.0
          %v4035 = vmax.f32 %v3923, 0.0
          %v4036 = vmax.f32 %v3924, 0.0
          %v4037 = vmax.f32 %v3925, 0.0
          %v4038 = vmax.f32 %v3926, 0.0
          %v4039 = vmax.f32 %v3927, 0.0
          %v4040 = vmax.f32 %v3928, 0.0
          %v4041 = vmax.f32 %v3929, 0.0
          %v4042 = vmax.f32 %v3930, 0.0
          %v4043 = vmax.f32 %v3931, 0.0
          %v4044 = vmax.f32 %v3932, 0.0
          %v4045 = vmax.f32 %v3933, 0.0
          %v4046 = vmax.f32 %v3934, 0.0
          %v4047 = vmax.f32 %v3935, 0.0
          %v4048 = vmax.f32 %v3936, 0.0
          %v4049 = vmax.f32 %v3937, 0.0
          %v4050 = vmax.f32 %v3938, 0.0
          %v4051 = vmax.f32 %v3939, 0.0
          %v4052 = vmax.f32 %v3940, 0.0
          %v4053 = vmax.f32 %v3941, 0.0
          %v4054 = vmax.f32 %v3942, 0.0
          %v4055 = vmax.f32 %v3943, 0.0
          %v4056 = vmax.f32 %v3944, 0.0
          %v4057 = vmax.f32 %v3945, 0.0
          %v4058 = vmax.f32 %v3946, 0.0
          %v4059 = vmax.f32 %v3947, 0.0
          %v4060 = vmax.f32 %v3948, 0.0
          %v4061 = vmax.f32 %v3949, 0.0
          %v4062 = vmax.f32 %v3950, 0.0
          %v4063 = vmax.f32 %v3951, 0.0
          %v4064 = vmax.f32 %v3952, 0.0
          %v4065 = vmax.f32 %v3953, 0.0
          %v4066 = vmax.f32 %v3954, 0.0
          %v4067 = vmax.f32 %v3955, 0.0
          %v4068 = vmax.f32 %v3956, 0.0
          %v4069 = vmax.f32 %v3957, 0.0
          %v4070 = vmax.f32 %v3958, 0.0
          %v4071 = vmax.f32 %v3959, 0.0
          %v4072 = vmax.f32 %v3960, 0.0
          %v4073 = vmax.f32 %v3961, 0.0
          %v4074 = vmax.f32 %v3962, 0.0
          %v4075 = vmax.f32 %v3963, 0.0
          %v4076 = vmax.f32 %v3964, 0.0
          %v4077 = vmax.f32 %v3965, 0.0
          %v4078 = vmax.f32 %v3966, 0.0
          %v4079 = vmax.f32 %v3967, 0.0
          %v4080 = vmax.f32 %v3968, 0.0
          %v4081 = vmax.f32 %v3969, 0.0
          %v4082 = vmax.f32 %v3970, 0.0
          %v4083 = vmax.f32 %v3971, 0.0
          %v4084 = vmax.f32 %v3972, 0.0
          %v4085 = vmax.f32 %v3973, 0.0
          %v4086 = vmax.f32 %v3974, 0.0
          %v4087 = vmax.f32 %v3975, 0.0
          %v4088 = vmax.f32 %v3976, 0.0
          %v4089 = vmax.f32 %v3977, 0.0
          %v4090 = vmax.f32 %v3978, 0.0
          %v4091 = vmax.f32 %v3979, 0.0
          %v4092 = vmax.f32 %v3980, 0.0
          %v4093 = vmax.f32 %v3981, 0.0
          %v4094 = vmax.f32 %v3982, 0.0
          %v4095 = vmax.f32 %v3983, 0.0
          %v4096 = vmax.f32 %v3984, 0.0
          %v4097 = vmax.f32 %v3985, 0.0
          %v4098 = vmax.f32 %v3986, 0.0
          %v4099 = vmax.f32 %v3987, 0.0
          %v4100 = vmax.f32 %v3988, 0.0
          %v4101 = vmax.f32 %v3989, 0.0
          %v4102 = vmax.f32 %v3990, 0.0
          %v4103 = vmax.f32 %v3991, 0.0
          %v4104 = vmax.f32 %v3992, 0.0
          %v4105 = vmax.f32 %v3993, 0.0
          %v4106 = vmax.f32 %v3994, 0.0
          %v4107 = vmax.f32 %v3995, 0.0
          %v4108 = vmax.f32 %v3996, 0.0
          %v4109 = vmax.f32 %v3997, 0.0
          %v4110 = vmax.f32 %v3998, 0.0
          %v4111 = vmax.f32 %v3999, 0.0
          %v4112 = vmax.f32 %v4000, 0.0
          %v4113 = vmax.f32 %v4001, 0.0
          %v4114 = vmax.f32 %v4002, 0.0
          %v4115 = vmax.f32 %v4003, 0.0
          %v4116 = vmax.f32 %v4004, 0.0
          %v4117 = vmax.f32 %v4005, 0.0
          %v4118 = vmax.f32 %v4006, 0.0
          %v4119 = vmax.f32 %v4007, 0.0
          %v4120 = vmax.f32 %v4008, 0.0
          %v4121 = vmax.f32 %v4009, 0.0
          %v4122 = vmax.f32 %v4010, 0.0
          %v4123 = vmax.f32 %v4011, 0.0
          %v4124 = vmax.f32 %v4012, 0.0
          %v4125 = vmax.f32 %v4013, 0.0
          %v4126 = vmax.f32 %v4014, 0.0
          %v4127 = vmax.f32 %v4015, 0.0
          %v4128 = vmax.f32 %v4016, 0.0
          %v4129 = vmax.f32 %v4017, 0.0
          %v4130 = vmax.f32 %v4018, 0.0
          %v4131 = vmax.f32 %v4019, 0.0
          %v4132 = vmax.f32 %v4020, 0.0
          %v4133 = vmax.f32 %v4021, 0.0
          %v4134 = vmax.f32 %v4022, 0.0
          %v4135 = vld [vmem:[%s11] sm:$0xff]
          %v4136 = vld [vmem:[%s11 + $0x8] sm:$0x1]
          %vm4137 = vcmask 523264
          %v4139 = vsel %vm4137, %v4135, 0
          %v4142 = vsel %vm4137, %v4136, 0
          %4144 = vmatprep.subr.mxu0 0.0
          %4145 = vmatpush1.msra.mxu0 0.0
          %4146 = vmatprep.subr.mxu0 0.0
          %4147 = vmatpush1.msra.mxu0 0.0
          %4148 = vmatprep.subr.mxu0 0.0
          %4149 = vmatpush1.msra.mxu0 0.0
          %4150 = vmatprep.subr.mxu0 0.0
          %4151 = vmatpush1.msra.mxu0 0.0
          %4152 = vmatprep.subr.mxu0 0.0
          %4153 = vmatpush1.msra.mxu0 0.0
          %4154 = vmatprep.subr.mxu0 0.0
          %4155 = vmatpush1.msra.mxu0 0.0
          %4156 = vmatprep.subr.mxu0 0.0
          %4157 = vmatpush1.msra.mxu0 0.0
          %4158 = vmatprep.subr.mxu0 0.0
          %4159 = vmatpush1.msra.mxu0 0.0
          %4160 = vmatprep.subr.mxu0 %v4073
          %4161 = vmatpush1.msra.mxu0 %v4072
          %4162 = vmatprep.subr.mxu0 %v4066
          %4163 = vmatpush1.msra.mxu0 %v4065
          %4164 = vmatprep.subr.mxu0 %v4059
          %4165 = vmatpush1.msra.mxu0 %v4058
          %4166 = vmatprep.subr.mxu0 %v4052
          %4167 = vmatpush1.msra.mxu0 %v4051
          %4168 = vmatprep.subr.mxu0 %v4045
          %4169 = vmatpush1.msra.mxu0 %v4044
          %4170 = vmatprep.subr.mxu0 %v4038
          %4171 = vmatpush1.msra.mxu0 %v4037
          %4172 = vmatprep.subr.mxu0 %v4031
          %4173 = vmatpush1.msra.mxu0 %v4030
          %4174 = vmatprep.subr.mxu0 %v4024
          %4175 = vmatpush1.msra.mxu0 %v4023
          %4176 = vmatprep.subr.mxu0 0.0
          %4177 = vmatpush2.msra.mxu0 0.0
          %4178 = vmatprep.subr.mxu0 0.0
          %4179 = vmatpush2.msra.mxu0 0.0
          %4180 = vmatprep.subr.mxu0 0.0
          %4181 = vmatpush2.msra.mxu0 0.0
          %4182 = vmatprep.subr.mxu0 0.0
          %4183 = vmatpush2.msra.mxu0 0.0
          %4184 = vmatprep.subr.mxu0 0.0
          %4185 = vmatpush2.msra.mxu0 0.0
          %4186 = vmatprep.subr.mxu0 0.0
          %4187 = vmatpush2.msra.mxu0 0.0
          %4188 = vmatprep.subr.mxu0 0.0
          %4189 = vmatpush2.msra.mxu0 0.0
          %4190 = vmatprep.subr.mxu0 0.0
          %4191 = vmatpush2.msra.mxu0 0.0
          %4192 = vmatprep.subr.mxu0 0.0
          %4193 = vmatpush2.msra.mxu0 0.0
          %4194 = vmatprep.subr.mxu0 0.0
          %4195 = vmatpush2.msra.mxu0 0.0
          %4196 = vmatprep.subr.mxu0 0.0
          %4197 = vmatpush2.msra.mxu0 0.0
          %4198 = vmatprep.subr.mxu0 0.0
          %4199 = vmatpush2.msra.mxu0 0.0
          %4200 = vmatprep.subr.mxu0 0.0
          %4201 = vmatpush2.msra.mxu0 0.0
          %4202 = vmatprep.subr.mxu0 0.0
          %4203 = vmatpush2.msra.mxu0 0.0
          %4204 = vmatprep.subr.mxu0 0.0
          %4205 = vmatpush2.msra.mxu0 0.0
          %4206 = vmatprep.subr.mxu0 0.0
          %4207 = vmatpush2.msra.mxu0 0.0
          %4208 = vmatprep.mubr.f32.mxu0 0.0
          %4209 = vmatmul.mubr.f32.gmra.mxu0 %v4139
          %v4210 = vpop.f32.mrf.mxu0
          %v4211 = vadd.f32 0.0, %v4210
          %v4212 = vpop.f32.mrf.mxu0
          %v4213 = vadd.f32 0.0, %v4212
          %4214 = vmatprep.mubr.f32.mxu0 0.0
          %4215 = vmatmul.mubr.f32.gmra.mxu0 %v4142
          %v4216 = vpop.f32.mrf.mxu0
          %v4217 = vadd.f32 0.0, %v4216
          %v4218 = vpop.f32.mrf.mxu0
          %v4219 = vadd.f32 0.0, %v4218
          %4220 = vdwg.mxu0
          %4221 = vmatprep.subr.mxu0 0.0
          %4222 = vmatpush1.msra.mxu0 0.0
          %4223 = vmatprep.subr.mxu0 0.0
          %4224 = vmatpush1.msra.mxu0 0.0
          %4225 = vmatprep.subr.mxu0 0.0
          %4226 = vmatpush1.msra.mxu0 0.0
          %4227 = vmatprep.subr.mxu0 0.0
          %4228 = vmatpush1.msra.mxu0 0.0
          %4229 = vmatprep.subr.mxu0 0.0
          %4230 = vmatpush1.msra.mxu0 0.0
          %4231 = vmatprep.subr.mxu0 0.0
          %4232 = vmatpush1.msra.mxu0 0.0
          %4233 = vmatprep.subr.mxu0 0.0
          %4234 = vmatpush1.msra.mxu0 0.0
          %4235 = vmatprep.subr.mxu0 0.0
          %4236 = vmatpush1.msra.mxu0 0.0
          %4237 = vmatprep.subr.mxu0 %v4075
          %4238 = vmatpush1.msra.mxu0 %v4074
          %4239 = vmatprep.subr.mxu0 %v4068
          %4240 = vmatpush1.msra.mxu0 %v4067
          %4241 = vmatprep.subr.mxu0 %v4061
          %4242 = vmatpush1.msra.mxu0 %v4060
          %4243 = vmatprep.subr.mxu0 %v4054
          %4244 = vmatpush1.msra.mxu0 %v4053
          %4245 = vmatprep.subr.mxu0 %v4047
          %4246 = vmatpush1.msra.mxu0 %v4046
          %4247 = vmatprep.subr.mxu0 %v4040
          %4248 = vmatpush1.msra.mxu0 %v4039
          %4249 = vmatprep.subr.mxu0 %v4033
          %4250 = vmatpush1.msra.mxu0 %v4032
          %4251 = vmatprep.subr.mxu0 %v4026
          %4252 = vmatpush1.msra.mxu0 %v4025
          %4253 = vmatprep.subr.mxu0 0.0
          %4254 = vmatpush2.msra.mxu0 0.0
          %4255 = vmatprep.subr.mxu0 0.0
          %4256 = vmatpush2.msra.mxu0 0.0
          %4257 = vmatprep.subr.mxu0 0.0
          %4258 = vmatpush2.msra.mxu0 0.0
          %4259 = vmatprep.subr.mxu0 0.0
          %4260 = vmatpush2.msra.mxu0 0.0
          %4261 = vmatprep.subr.mxu0 0.0
          %4262 = vmatpush2.msra.mxu0 0.0
          %4263 = vmatprep.subr.mxu0 0.0
          %4264 = vmatpush2.msra.mxu0 0.0
          %4265 = vmatprep.subr.mxu0 0.0
          %4266 = vmatpush2.msra.mxu0 0.0
          %4267 = vmatprep.subr.mxu0 0.0
          %4268 = vmatpush2.msra.mxu0 0.0
          %4269 = vmatprep.subr.mxu0 0.0
          %4270 = vmatpush2.msra.mxu0 0.0
          %4271 = vmatprep.subr.mxu0 0.0
          %4272 = vmatpush2.msra.mxu0 0.0
          %4273 = vmatprep.subr.mxu0 0.0
          %4274 = vmatpush2.msra.mxu0 0.0
          %4275 = vmatprep.subr.mxu0 0.0
          %4276 = vmatpush2.msra.mxu0 0.0
          %4277 = vmatprep.subr.mxu0 0.0
          %4278 = vmatpush2.msra.mxu0 0.0
          %4279 = vmatprep.subr.mxu0 0.0
          %4280 = vmatpush2.msra.mxu0 0.0
          %4281 = vmatprep.subr.mxu0 0.0
          %4282 = vmatpush2.msra.mxu0 0.0
          %4283 = vmatprep.subr.mxu0 0.0
          %4284 = vmatpush2.msra.mxu0 0.0
          %4285 = vmatprep.mubr.f32.mxu0 0.0
          %4286 = vmatmul.mubr.f32.gmra.mxu0 %v4139
          %v4287 = vpop.f32.mrf.mxu0
          %v4288 = vadd.f32 0.0, %v4287
          %v4289 = vpop.f32.mrf.mxu0
          %v4290 = vadd.f32 0.0, %v4289
          %4291 = vmatprep.mubr.f32.mxu0 0.0
          %4292 = vmatmul.mubr.f32.gmra.mxu0 %v4142
          %v4293 = vpop.f32.mrf.mxu0
          %v4294 = vadd.f32 0.0, %v4293
          %v4295 = vpop.f32.mrf.mxu0
          %v4296 = vadd.f32 0.0, %v4295
          %4297 = vdwg.mxu0
          %4298 = vmatprep.subr.mxu0 0.0
          %4299 = vmatpush1.msra.mxu0 0.0
          %4300 = vmatprep.subr.mxu0 0.0
          %4301 = vmatpush1.msra.mxu0 0.0
          %4302 = vmatprep.subr.mxu0 0.0
          %4303 = vmatpush1.msra.mxu0 0.0
          %4304 = vmatprep.subr.mxu0 0.0
          %4305 = vmatpush1.msra.mxu0 0.0
          %4306 = vmatprep.subr.mxu0 0.0
          %4307 = vmatpush1.msra.mxu0 0.0
          %4308 = vmatprep.subr.mxu0 0.0
          %4309 = vmatpush1.msra.mxu0 0.0
          %4310 = vmatprep.subr.mxu0 0.0
          %4311 = vmatpush1.msra.mxu0 0.0
          %4312 = vmatprep.subr.mxu0 0.0
          %4313 = vmatpush1.msra.mxu0 0.0
          %4314 = vmatprep.subr.mxu0 %v4077
          %4315 = vmatpush1.msra.mxu0 %v4076
          %4316 = vmatprep.subr.mxu0 %v4070
          %4317 = vmatpush1.msra.mxu0 %v4069
          %4318 = vmatprep.subr.mxu0 %v4063
          %4319 = vmatpush1.msra.mxu0 %v4062
          %4320 = vmatprep.subr.mxu0 %v4056
          %4321 = vmatpush1.msra.mxu0 %v4055
          %4322 = vmatprep.subr.mxu0 %v4049
          %4323 = vmatpush1.msra.mxu0 %v4048
          %4324 = vmatprep.subr.mxu0 %v4042
          %4325 = vmatpush1.msra.mxu0 %v4041
          %4326 = vmatprep.subr.mxu0 %v4035
          %4327 = vmatpush1.msra.mxu0 %v4034
          %4328 = vmatprep.subr.mxu0 %v4028
          %4329 = vmatpush1.msra.mxu0 %v4027
          %4330 = vmatprep.subr.mxu0 0.0
          %4331 = vmatpush2.msra.mxu0 0.0
          %4332 = vmatprep.subr.mxu0 0.0
          %4333 = vmatpush2.msra.mxu0 0.0
          %4334 = vmatprep.subr.mxu0 0.0
          %4335 = vmatpush2.msra.mxu0 0.0
          %4336 = vmatprep.subr.mxu0 0.0
          %4337 = vmatpush2.msra.mxu0 0.0
          %4338 = vmatprep.subr.mxu0 0.0
          %4339 = vmatpush2.msra.mxu0 0.0
          %4340 = vmatprep.subr.mxu0 0.0
          %4341 = vmatpush2.msra.mxu0 0.0
          %4342 = vmatprep.subr.mxu0 0.0
          %4343 = vmatpush2.msra.mxu0 0.0
          %4344 = vmatprep.subr.mxu0 0.0
          %4345 = vmatpush2.msra.mxu0 0.0
          %4346 = vmatprep.subr.mxu0 0.0
          %4347 = vmatpush2.msra.mxu0 0.0
          %4348 = vmatprep.subr.mxu0 0.0
          %4349 = vmatpush2.msra.mxu0 0.0
          %4350 = vmatprep.subr.mxu0 0.0
          %4351 = vmatpush2.msra.mxu0 0.0
          %4352 = vmatprep.subr.mxu0 0.0
          %4353 = vmatpush2.msra.mxu0 0.0
          %4354 = vmatprep.subr.mxu0 0.0
          %4355 = vmatpush2.msra.mxu0 0.0
          %4356 = vmatprep.subr.mxu0 0.0
          %4357 = vmatpush2.msra.mxu0 0.0
          %4358 = vmatprep.subr.mxu0 0.0
          %4359 = vmatpush2.msra.mxu0 0.0
          %4360 = vmatprep.subr.mxu0 0.0
          %4361 = vmatpush2.msra.mxu0 0.0
          %4362 = vmatprep.mubr.f32.mxu0 0.0
          %4363 = vmatmul.mubr.f32.gmra.mxu0 %v4139
          %v4364 = vpop.f32.mrf.mxu0
          %v4365 = vadd.f32 0.0, %v4364
          %v4366 = vpop.f32.mrf.mxu0
          %v4367 = vadd.f32 0.0, %v4366
          %4368 = vmatprep.mubr.f32.mxu0 0.0
          %4369 = vmatmul.mubr.f32.gmra.mxu0 %v4142
          %v4370 = vpop.f32.mrf.mxu0
          %v4371 = vadd.f32 0.0, %v4370
          %v4372 = vpop.f32.mrf.mxu0
          %v4373 = vadd.f32 0.0, %v4372
          %4374 = vdwg.mxu0
          %4375 = vmatprep.subr.mxu0 0.0
          %4376 = vmatpush1.msra.mxu0 0.0
          %4377 = vmatprep.subr.mxu0 0.0
          %4378 = vmatpush1.msra.mxu0 0.0
          %4379 = vmatprep.subr.mxu0 0.0
          %4380 = vmatpush1.msra.mxu0 0.0
          %4381 = vmatprep.subr.mxu0 0.0
          %4382 = vmatpush1.msra.mxu0 0.0
          %4383 = vmatprep.subr.mxu0 0.0
          %4384 = vmatpush1.msra.mxu0 0.0
          %4385 = vmatprep.subr.mxu0 0.0
          %4386 = vmatpush1.msra.mxu0 0.0
          %4387 = vmatprep.subr.mxu0 0.0
          %4388 = vmatpush1.msra.mxu0 0.0
          %4389 = vmatprep.subr.mxu0 0.0
          %4390 = vmatpush1.msra.mxu0 0.0
          %4391 = vmatprep.subr.mxu0 0.0
          %4392 = vmatpush1.msra.mxu0 %v4078
          %4393 = vmatprep.subr.mxu0 0.0
          %4394 = vmatpush1.msra.mxu0 %v4071
          %4395 = vmatprep.subr.mxu0 0.0
          %4396 = vmatpush1.msra.mxu0 %v4064
          %4397 = vmatprep.subr.mxu0 0.0
          %4398 = vmatpush1.msra.mxu0 %v4057
          %4399 = vmatprep.subr.mxu0 0.0
          %4400 = vmatpush1.msra.mxu0 %v4050
          %4401 = vmatprep.subr.mxu0 0.0
          %4402 = vmatpush1.msra.mxu0 %v4043
          %4403 = vmatprep.subr.mxu0 0.0
          %4404 = vmatpush1.msra.mxu0 %v4036
          %4405 = vmatprep.subr.mxu0 0.0
          %4406 = vmatpush1.msra.mxu0 %v4029
          %4407 = vmatprep.subr.mxu0 0.0
          %4408 = vmatpush2.msra.mxu0 0.0
          %4409 = vmatprep.subr.mxu0 0.0
          %4410 = vmatpush2.msra.mxu0 0.0
          %4411 = vmatprep.subr.mxu0 0.0
          %4412 = vmatpush2.msra.mxu0 0.0
          %4413 = vmatprep.subr.mxu0 0.0
          %4414 = vmatpush2.msra.mxu0 0.0
          %4415 = vmatprep.subr.mxu0 0.0
          %4416 = vmatpush2.msra.mxu0 0.0
          %4417 = vmatprep.subr.mxu0 0.0
          %4418 = vmatpush2.msra.mxu0 0.0
          %4419 = vmatprep.subr.mxu0 0.0
          %4420 = vmatpush2.msra.mxu0 0.0
          %4421 = vmatprep.subr.mxu0 0.0
          %4422 = vmatpush2.msra.mxu0 0.0
          %4423 = vmatprep.subr.mxu0 0.0
          %4424 = vmatpush2.msra.mxu0 0.0
          %4425 = vmatprep.subr.mxu0 0.0
          %4426 = vmatpush2.msra.mxu0 0.0
          %4427 = vmatprep.subr.mxu0 0.0
          %4428 = vmatpush2.msra.mxu0 0.0
          %4429 = vmatprep.subr.mxu0 0.0
          %4430 = vmatpush2.msra.mxu0 0.0
          %4431 = vmatprep.subr.mxu0 0.0
          %4432 = vmatpush2.msra.mxu0 0.0
          %4433 = vmatprep.subr.mxu0 0.0
          %4434 = vmatpush2.msra.mxu0 0.0
          %4435 = vmatprep.subr.mxu0 0.0
          %4436 = vmatpush2.msra.mxu0 0.0
          %4437 = vmatprep.subr.mxu0 0.0
          %4438 = vmatpush2.msra.mxu0 0.0
          %4439 = vmatprep.mubr.f32.mxu0 0.0
          %4440 = vmatmul.mubr.f32.gmra.mxu0 %v4139
          %v4441 = vpop.f32.mrf.mxu0
          %v4442 = vadd.f32 0.0, %v4441
          %v4443 = vpop.f32.mrf.mxu0
          %4444 = vmatprep.mubr.f32.mxu0 0.0
          %4445 = vmatmul.mubr.f32.gmra.mxu0 %v4142
          %v4446 = vpop.f32.mrf.mxu0
          %v4447 = vadd.f32 0.0, %v4446
          %v4448 = vpop.f32.mrf.mxu0
          %4449 = vdwg.mxu0
          %4464 = vrot.lane.b32.xlu0 %v4211, 9
          %v4465 = vpop.permute.xlu0 %4464
          %4466 = vrot.lane.b32.xlu0 %v4213, 9
          %v4467 = vpop.permute.xlu0 %4466
          %4468 = vrot.lane.b32.xlu0 %v4288, 9
          %v4469 = vpop.permute.xlu0 %4468
          %4470 = vrot.lane.b32.xlu0 %v4290, 9
          %v4471 = vpop.permute.xlu0 %4470
          %4472 = vrot.lane.b32.xlu0 %v4365, 9
          %v4473 = vpop.permute.xlu0 %4472
          %4474 = vrot.lane.b32.xlu0 %v4367, 9
          %v4475 = vpop.permute.xlu0 %4474
          %4476 = vrot.lane.b32.xlu0 %v4442, 9
          %v4477 = vpop.permute.xlu0 %4476
          %4478 = vrot.lane.b32.xlu0 %v4217, 9
          %v4479 = vpop.permute.xlu0 %4478
          %4480 = vrot.lane.b32.xlu0 %v4219, 9
          %v4481 = vpop.permute.xlu0 %4480
          %4482 = vrot.lane.b32.xlu0 %v4294, 9
          %v4483 = vpop.permute.xlu0 %4482
          %4484 = vrot.lane.b32.xlu0 %v4296, 9
          %v4485 = vpop.permute.xlu0 %4484
          %4486 = vrot.lane.b32.xlu0 %v4371, 9
          %v4487 = vpop.permute.xlu0 %4486
          %4488 = vrot.lane.b32.xlu0 %v4373, 9
          %v4489 = vpop.permute.xlu0 %4488
          %4490 = vrot.lane.b32.xlu0 %v4447, 9
          %v4491 = vpop.permute.xlu0 %4490
          %v4492 = vsel %vm1375, %v4465, %v4467
          %v4493 = vsel %vm1375, %v4467, %v4469
          %v4494 = vsel %vm1375, %v4469, %v4471
          %v4495 = vsel %vm1375, %v4471, %v4473
          %v4496 = vsel %vm1375, %v4473, %v4475
          %v4497 = vsel %vm1375, %v4475, %v4477
          %v4498 = vsel %vm1375, %v4479, %v4481
          %v4499 = vsel %vm1375, %v4481, %v4483
          %v4500 = vsel %vm1375, %v4483, %v4485
          %v4501 = vsel %vm1375, %v4485, %v4487
          %v4502 = vsel %vm1375, %v4487, %v4489
          %v4503 = vsel %vm1375, %v4489, %v4491
          %v4508 = vsel %vm1375, 0.0, %v4465
          %v4509 = vsel %vm1375, 0.0, %v4479
          %v4510 = vsel %vm1390, %v4497, 0.0
          %v4511 = vsel %vm1390, %v4503, 0.0
          %v4512 = vld [vmem:[%s13] ss:$8 sm:$0xf]
          %v4513 = vld [vmem:[%s13] ss:$8 sm:$0x70]
          %v4514 = vor.u32 %v4512, %v4513
          %v4517 = vcombine.low %v4508, %v4492
          %v4518 = vcombine.low %v4493, %v4494
          %v4519 = vcombine.low %v4495, %v4496
          %v4521 = vunpack.c.l.s4 1966171168
          %v4522 = vunpack.c.0.s8 %v4521
          %v4523 = vlaneseq
          %v4524 = vshrl.u32 %v4523, 7
          %v4525 = vsub.s32 %v4522, %v4524
          %v4526 = vrot.slane %v4517, %v4525
          %v4528 = vunpack.c.l.s4 1966171168
          %v4529 = vunpack.c.0.s8 %v4528
          %v4530 = vlaneseq
          %v4531 = vshrl.u32 %v4530, 7
          %v4532 = vsub.s32 %v4529, %v4531
          %v4533 = vrot.slane %v4518, %v4532
          %v4535 = vunpack.c.l.s4 1966171168
          %v4536 = vunpack.c.0.s8 %v4535
          %v4537 = vlaneseq
          %v4538 = vshrl.u32 %v4537, 7
          %v4539 = vsub.s32 %v4536, %v4538
          %v4540 = vrot.slane %v4519, %v4539
          %v4542 = vunpack.c.l.s4 1966171168
          %v4543 = vunpack.c.0.s8 %v4542
          %v4544 = vlaneseq
          %v4545 = vshrl.u32 %v4544, 7
          %v4546 = vsub.s32 %v4543, %v4545
          %v4547 = vrot.slane %v4510, %v4546
          %v4548 = vcombine.low %v4526, %v4533
          %v4549 = vcombine.low %v4540, %v4547
          %v4551 = vunpack.c.l.s4 1966171168
          %v4552 = vunpack.c.0.s8 %v4551
          %v4553 = vlaneseq
          %v4554 = vshrl.u32 %v4553, 7
          %v4555 = vsub.s32 %v4552, %v4554
          %v4556 = vrot.slane %v4548, %v4555
          %v4558 = vunpack.c.l.s4 1966171168
          %v4559 = vunpack.c.0.s8 %v4558
          %v4560 = vlaneseq
          %v4561 = vshrl.u32 %v4560, 7
          %v4562 = vsub.s32 %v4559, %v4561
          %v4563 = vrot.slane %v4549, %v4562
          %v4564 = vcombine.low %v4556, %v4563
          %v4566 = vmul.f32 %v4514, %v4564
          %v4567 = vadd.f32 %v4566, 0.0
          %v4568 = vld [vmem:[%s1438] ss:$8 sm:$0xf]
          %v4569 = vld [vmem:[%s1438] ss:$8 sm:$0x70]
          %v4570 = vor.u32 %v4568, %v4569
          %v4571 = vcombine.high %v4526, %v4533
          %v4572 = vcombine.high %v4540, %v4547
          %v4574 = vunpack.c.l.s4 1966171168
          %v4575 = vunpack.c.0.s8 %v4574
          %v4576 = vlaneseq
          %v4577 = vshrl.u32 %v4576, 7
          %v4578 = vsub.s32 %v4575, %v4577
          %v4579 = vrot.slane %v4571, %v4578
          %v4581 = vunpack.c.l.s4 1966171168
          %v4582 = vunpack.c.0.s8 %v4581
          %v4583 = vlaneseq
          %v4584 = vshrl.u32 %v4583, 7
          %v4585 = vsub.s32 %v4582, %v4584
          %v4586 = vrot.slane %v4572, %v4585
          %v4587 = vcombine.low %v4579, %v4586
          %4588 = vrot.lane.b32.xlu0 %v4587, 127
          %v4589 = vpop.permute.xlu0 %4588
          %v4590 = vrot.slane %v4589, 1
          %v4591 = vsel %vm2009, %v4589, %v4590
          %v4593 = vmul.f32 %v4570, %v4591
          %v4594 = vadd.f32 %v4567, %v4593
          %v4595 = vld [vmem:[%s1506] ss:$8 sm:$0xf]
          %v4596 = vld [vmem:[%s1506] ss:$8 sm:$0x70]
          %v4597 = vor.u32 %v4595, %v4596
          %v4598 = vcombine.high %v4556, %v4563
          %4599 = vrot.lane.b32.xlu0 %v4598, 126
          %v4600 = vpop.permute.xlu0 %4599
          %v4601 = vrot.slane %v4600, 1
          %v4602 = vsel %vm2051, %v4600, %v4601
          %v4604 = vmul.f32 %v4597, %v4602
          %v4605 = vadd.f32 %v4594, %v4604
          %v4606 = vld [vmem:[%s1574] ss:$8 sm:$0xf]
          %v4607 = vld [vmem:[%s1574] ss:$8 sm:$0x70]
          %v4608 = vor.u32 %v4606, %v4607
          %v4609 = vcombine.high %v4579, %v4586
          %4610 = vrot.lane.b32.xlu0 %v4609, 120
          %v4611 = vpop.permute.xlu0 %4610
          %v4612 = vrot.slane %v4611, 1
          %v4613 = vsel %vm2093, %v4611, %v4612
          %v4615 = vmul.f32 %v4608, %v4613
          %v4616 = vadd.f32 %v4605, %v4615
          %v4617 = vld [vmem:[%s1642] ss:$8 sm:$0xf]
          %v4618 = vld [vmem:[%s1642] ss:$8 sm:$0x70]
          %v4619 = vor.u32 %v4617, %v4618
          %v4620 = vcombine.high %v4508, %v4492
          %v4621 = vcombine.high %v4493, %v4494
          %v4622 = vcombine.high %v4495, %v4496
          %v4623 = vcombine.high %v4510, %v4510
          %v4625 = vunpack.c.l.s4 1966171168
          %v4626 = vunpack.c.0.s8 %v4625
          %v4627 = vlaneseq
          %v4628 = vshrl.u32 %v4627, 7
          %v4629 = vsub.s32 %v4626, %v4628
          %v4630 = vrot.slane %v4620, %v4629
          %v4632 = vunpack.c.l.s4 1966171168
          %v4633 = vunpack.c.0.s8 %v4632
          %v4634 = vlaneseq
          %v4635 = vshrl.u32 %v4634, 7
          %v4636 = vsub.s32 %v4633, %v4635
          %v4637 = vrot.slane %v4621, %v4636
          %v4639 = vunpack.c.l.s4 1966171168
          %v4640 = vunpack.c.0.s8 %v4639
          %v4641 = vlaneseq
          %v4642 = vshrl.u32 %v4641, 7
          %v4643 = vsub.s32 %v4640, %v4642
          %v4644 = vrot.slane %v4622, %v4643
          %v4646 = vunpack.c.l.s4 1966171168
          %v4647 = vunpack.c.0.s8 %v4646
          %v4648 = vlaneseq
          %v4649 = vshrl.u32 %v4648, 7
          %v4650 = vsub.s32 %v4647, %v4649
          %v4651 = vrot.slane %v4623, %v4650
          %v4652 = vcombine.low %v4630, %v4637
          %v4653 = vcombine.low %v4644, %v4651
          %v4655 = vunpack.c.l.s4 1966171168
          %v4656 = vunpack.c.0.s8 %v4655
          %v4657 = vlaneseq
          %v4658 = vshrl.u32 %v4657, 7
          %v4659 = vsub.s32 %v4656, %v4658
          %v4660 = vrot.slane %v4652, %v4659
          %v4662 = vunpack.c.l.s4 1966171168
          %v4663 = vunpack.c.0.s8 %v4662
          %v4664 = vlaneseq
          %v4665 = vshrl.u32 %v4664, 7
          %v4666 = vsub.s32 %v4663, %v4665
          %v4667 = vrot.slane %v4653, %v4666
          %v4668 = vcombine.low %v4660, %v4667
          %4669 = vrot.lane.b32.xlu0 %v4668, 119
          %v4670 = vpop.permute.xlu0 %4669
          %v4671 = vrot.slane %v4670, 1
          %v4672 = vsel %vm2128, %v4670, %v4671
          %v4674 = vmul.f32 %v4619, %v4672
          %v4675 = vadd.f32 %v4616, %v4674
          %v4676 = vld [vmem:[%s1709] ss:$8 sm:$0xf]
          %v4677 = vld [vmem:[%s1709] ss:$8 sm:$0x70]
          %v4678 = vor.u32 %v4676, %v4677
          %v4679 = vcombine.high %v4630, %v4637
          %v4680 = vcombine.high %v4644, %v4651
          %v4682 = vunpack.c.l.s4 1966171168
          %v4683 = vunpack.c.0.s8 %v4682
          %v4684 = vlaneseq
          %v4685 = vshrl.u32 %v4684, 7
          %v4686 = vsub.s32 %v4683, %v4685
          %v4687 = vrot.slane %v4679, %v4686
          %v4689 = vunpack.c.l.s4 1966171168
          %v4690 = vunpack.c.0.s8 %v4689
          %v4691 = vlaneseq
          %v4692 = vshrl.u32 %v4691, 7
          %v4693 = vsub.s32 %v4690, %v4692
          %v4694 = vrot.slane %v4680, %v4693
          %v4695 = vcombine.low %v4687, %v4694
          %4696 = vrot.lane.b32.xlu0 %v4695, 118
          %v4697 = vpop.permute.xlu0 %4696
          %v4698 = vrot.slane %v4697, 1
          %v4699 = vsel %vm2170, %v4697, %v4698
          %v4701 = vmul.f32 %v4678, %v4699
          %v4702 = vadd.f32 %v4675, %v4701
          %v4703 = vld [vmem:[%s1777] ss:$8 sm:$0xf]
          %v4704 = vld [vmem:[%s1777] ss:$8 sm:$0x70]
          %v4705 = vor.u32 %v4703, %v4704
          %v4706 = vcombine.high %v4660, %v4667
          %4707 = vrot.lane.b32.xlu0 %v4706, 112
          %v4708 = vpop.permute.xlu0 %4707
          %v4709 = vrot.slane %v4708, 1
          %v4710 = vsel %vm2212, %v4708, %v4709
          %v4712 = vmul.f32 %v4705, %v4710
          %v4713 = vadd.f32 %v4702, %v4712
          %v4714 = vld [vmem:[%s1845] ss:$8 sm:$0xf]
          %v4715 = vld [vmem:[%s1845] ss:$8 sm:$0x70]
          %v4716 = vor.u32 %v4714, %v4715
          %v4717 = vcombine.high %v4687, %v4694
          %4718 = vrot.lane.b32.xlu0 %v4717, 111
          %v4719 = vpop.permute.xlu0 %4718
          %v4720 = vrot.slane %v4719, 1
          %v4721 = vsel %vm2254, %v4719, %v4720
          %v4723 = vmul.f32 %v4716, %v4721
          %v4724 = vadd.f32 %v4713, %v4723
          %v4725 = vld [vmem:[%s1913] ss:$8 sm:$0xf]
          %v4726 = vld [vmem:[%s1913] ss:$8 sm:$0x70]
          %v4727 = vor.u32 %v4725, %v4726
          %v4730 = vcombine.low %v4509, %v4498
          %v4731 = vcombine.low %v4499, %v4500
          %v4732 = vcombine.low %v4501, %v4502
          %v4734 = vunpack.c.l.s4 1966171168
          %v4735 = vunpack.c.0.s8 %v4734
          %v4736 = vlaneseq
          %v4737 = vshrl.u32 %v4736, 7
          %v4738 = vsub.s32 %v4735, %v4737
          %v4739 = vrot.slane %v4730, %v4738
          %v4741 = vunpack.c.l.s4 1966171168
          %v4742 = vunpack.c.0.s8 %v4741
          %v4743 = vlaneseq
          %v4744 = vshrl.u32 %v4743, 7
          %v4745 = vsub.s32 %v4742, %v4744
          %v4746 = vrot.slane %v4731, %v4745
          %v4748 = vunpack.c.l.s4 1966171168
          %v4749 = vunpack.c.0.s8 %v4748
          %v4750 = vlaneseq
          %v4751 = vshrl.u32 %v4750, 7
          %v4752 = vsub.s32 %v4749, %v4751
          %v4753 = vrot.slane %v4732, %v4752
          %v4755 = vunpack.c.l.s4 1966171168
          %v4756 = vunpack.c.0.s8 %v4755
          %v4757 = vlaneseq
          %v4758 = vshrl.u32 %v4757, 7
          %v4759 = vsub.s32 %v4756, %v4758
          %v4760 = vrot.slane %v4511, %v4759
          %v4761 = vcombine.low %v4739, %v4746
          %v4762 = vcombine.low %v4753, %v4760
          %v4764 = vunpack.c.l.s4 1966171168
          %v4765 = vunpack.c.0.s8 %v4764
          %v4766 = vlaneseq
          %v4767 = vshrl.u32 %v4766, 7
          %v4768 = vsub.s32 %v4765, %v4767
          %v4769 = vrot.slane %v4761, %v4768
          %v4771 = vunpack.c.l.s4 1966171168
          %v4772 = vunpack.c.0.s8 %v4771
          %v4773 = vlaneseq
          %v4774 = vshrl.u32 %v4773, 7
          %v4775 = vsub.s32 %v4772, %v4774
          %v4776 = vrot.slane %v4762, %v4775
          %v4777 = vcombine.low %v4769, %v4776
          %4778 = vrot.lane.b32.xlu0 %v4777, 110
          %v4779 = vpop.permute.xlu0 %4778
          %v4780 = vrot.slane %v4779, 1
          %v4781 = vsel %vm2289, %v4779, %v4780
          %v4783 = vmul.f32 %v4727, %v4781
          %v4784 = vadd.f32 %v4724, %v4783
          %v4785 = vld [vmem:[#allocation5] sm:$0x1]
          %4787 = vset.pattern.permute.xlu0 0
          %4788 = vperm.xlu0 %4787, %v4785
          %v4789 = vpop.permute.xlu0 %4788
          %v4791 = vlaneseq
          %v4792 = vshrl.u32 %v4791, 7
          %v4793 = vsub.s32 0, %v4792
          %v4794 = vrot.slane %v4789, %v4793
          %v4795 = vadd.f32 %v4784, %v4794
          %v4796 = vlaneseq
          %vm4797 = vcmp.ge.s32.totalorder %v4796, 0
          %vm4798 = vcmp.lt.s32.totalorder %v4796, 840
          %vm4799 = vmand %vm4797, %vm4798
          %4800 = vst.msk [vmem:[#allocation6] sm:$0x7f] %vm4799, %v4795
          %v4801 = vld [vmem:[%s11] sm:$0xff]
          %v4802 = vld [vmem:[%s11 + $0x8] sm:$0x1]
          %v4804 = vsel %vm4137, %v4801, 0
          %v4807 = vsel %vm4137, %v4802, 0
          %4809 = vmatprep.subr.mxu0 0.0
          %4810 = vmatpush1.msra.mxu0 0.0
          %4811 = vmatprep.subr.mxu0 0.0
          %4812 = vmatpush1.msra.mxu0 0.0
          %4813 = vmatprep.subr.mxu0 0.0
          %4814 = vmatpush1.msra.mxu0 0.0
          %4815 = vmatprep.subr.mxu0 0.0
          %4816 = vmatpush1.msra.mxu0 0.0
          %4817 = vmatprep.subr.mxu0 0.0
          %4818 = vmatpush1.msra.mxu0 0.0
          %4819 = vmatprep.subr.mxu0 0.0
          %4820 = vmatpush1.msra.mxu0 0.0
          %4821 = vmatprep.subr.mxu0 0.0
          %4822 = vmatpush1.msra.mxu0 0.0
          %4823 = vmatprep.subr.mxu0 0.0
          %4824 = vmatpush1.msra.mxu0 0.0
          %4825 = vmatprep.subr.mxu0 %v4129
          %4826 = vmatpush1.msra.mxu0 %v4128
          %4827 = vmatprep.subr.mxu0 %v4122
          %4828 = vmatpush1.msra.mxu0 %v4121
          %4829 = vmatprep.subr.mxu0 %v4115
          %4830 = vmatpush1.msra.mxu0 %v4114
          %4831 = vmatprep.subr.mxu0 %v4108
          %4832 = vmatpush1.msra.mxu0 %v4107
          %4833 = vmatprep.subr.mxu0 %v4101
          %4834 = vmatpush1.msra.mxu0 %v4100
          %4835 = vmatprep.subr.mxu0 %v4094
          %4836 = vmatpush1.msra.mxu0 %v4093
          %4837 = vmatprep.subr.mxu0 %v4087
          %4838 = vmatpush1.msra.mxu0 %v4086
          %4839 = vmatprep.subr.mxu0 %v4080
          %4840 = vmatpush1.msra.mxu0 %v4079
          %4841 = vmatprep.subr.mxu0 0.0
          %4842 = vmatpush2.msra.mxu0 0.0
          %4843 = vmatprep.subr.mxu0 0.0
          %4844 = vmatpush2.msra.mxu0 0.0
          %4845 = vmatprep.subr.mxu0 0.0
          %4846 = vmatpush2.msra.mxu0 0.0
          %4847 = vmatprep.subr.mxu0 0.0
          %4848 = vmatpush2.msra.mxu0 0.0
          %4849 = vmatprep.subr.mxu0 0.0
          %4850 = vmatpush2.msra.mxu0 0.0
          %4851 = vmatprep.subr.mxu0 0.0
          %4852 = vmatpush2.msra.mxu0 0.0
          %4853 = vmatprep.subr.mxu0 0.0
          %4854 = vmatpush2.msra.mxu0 0.0
          %4855 = vmatprep.subr.mxu0 0.0
          %4856 = vmatpush2.msra.mxu0 0.0
          %4857 = vmatprep.subr.mxu0 0.0
          %4858 = vmatpush2.msra.mxu0 0.0
          %4859 = vmatprep.subr.mxu0 0.0
          %4860 = vmatpush2.msra.mxu0 0.0
          %4861 = vmatprep.subr.mxu0 0.0
          %4862 = vmatpush2.msra.mxu0 0.0
          %4863 = vmatprep.subr.mxu0 0.0
          %4864 = vmatpush2.msra.mxu0 0.0
          %4865 = vmatprep.subr.mxu0 0.0
          %4866 = vmatpush2.msra.mxu0 0.0
          %4867 = vmatprep.subr.mxu0 0.0
          %4868 = vmatpush2.msra.mxu0 0.0
          %4869 = vmatprep.subr.mxu0 0.0
          %4870 = vmatpush2.msra.mxu0 0.0
          %4871 = vmatprep.subr.mxu0 0.0
          %4872 = vmatpush2.msra.mxu0 0.0
          %4873 = vmatprep.mubr.f32.mxu0 0.0
          %4874 = vmatmul.mubr.f32.gmra.mxu0 %v4804
          %v4875 = vpop.f32.mrf.mxu0
          %v4876 = vadd.f32 0.0, %v4875
          %v4877 = vpop.f32.mrf.mxu0
          %v4878 = vadd.f32 0.0, %v4877
          %4879 = vmatprep.mubr.f32.mxu0 0.0
          %4880 = vmatmul.mubr.f32.gmra.mxu0 %v4807
          %v4881 = vpop.f32.mrf.mxu0
          %v4882 = vadd.f32 0.0, %v4881
          %v4883 = vpop.f32.mrf.mxu0
          %v4884 = vadd.f32 0.0, %v4883
          %4885 = vdwg.mxu0
          %4886 = vmatprep.subr.mxu0 0.0
          %4887 = vmatpush1.msra.mxu0 0.0
          %4888 = vmatprep.subr.mxu0 0.0
          %4889 = vmatpush1.msra.mxu0 0.0
          %4890 = vmatprep.subr.mxu0 0.0
          %4891 = vmatpush1.msra.mxu0 0.0
          %4892 = vmatprep.subr.mxu0 0.0
          %4893 = vmatpush1.msra.mxu0 0.0
          %4894 = vmatprep.subr.mxu0 0.0
          %4895 = vmatpush1.msra.mxu0 0.0
          %4896 = vmatprep.subr.mxu0 0.0
          %4897 = vmatpush1.msra.mxu0 0.0
          %4898 = vmatprep.subr.mxu0 0.0
          %4899 = vmatpush1.msra.mxu0 0.0
          %4900 = vmatprep.subr.mxu0 0.0
          %4901 = vmatpush1.msra.mxu0 0.0
          %4902 = vmatprep.subr.mxu0 %v4131
          %4903 = vmatpush1.msra.mxu0 %v4130
          %4904 = vmatprep.subr.mxu0 %v4124
          %4905 = vmatpush1.msra.mxu0 %v4123
          %4906 = vmatprep.subr.mxu0 %v4117
          %4907 = vmatpush1.msra.mxu0 %v4116
          %4908 = vmatprep.subr.mxu0 %v4110
          %4909 = vmatpush1.msra.mxu0 %v4109
          %4910 = vmatprep.subr.mxu0 %v4103
          %4911 = vmatpush1.msra.mxu0 %v4102
          %4912 = vmatprep.subr.mxu0 %v4096
          %4913 = vmatpush1.msra.mxu0 %v4095
          %4914 = vmatprep.subr.mxu0 %v4089
          %4915 = vmatpush1.msra.mxu0 %v4088
          %4916 = vmatprep.subr.mxu0 %v4082
          %4917 = vmatpush1.msra.mxu0 %v4081
          %4918 = vmatprep.subr.mxu0 0.0
          %4919 = vmatpush2.msra.mxu0 0.0
          %4920 = vmatprep.subr.mxu0 0.0
          %4921 = vmatpush2.msra.mxu0 0.0
          %4922 = vmatprep.subr.mxu0 0.0
          %4923 = vmatpush2.msra.mxu0 0.0
          %4924 = vmatprep.subr.mxu0 0.0
          %4925 = vmatpush2.msra.mxu0 0.0
          %4926 = vmatprep.subr.mxu0 0.0
          %4927 = vmatpush2.msra.mxu0 0.0
          %4928 = vmatprep.subr.mxu0 0.0
          %4929 = vmatpush2.msra.mxu0 0.0
          %4930 = vmatprep.subr.mxu0 0.0
          %4931 = vmatpush2.msra.mxu0 0.0
          %4932 = vmatprep.subr.mxu0 0.0
          %4933 = vmatpush2.msra.mxu0 0.0
          %4934 = vmatprep.subr.mxu0 0.0
          %4935 = vmatpush2.msra.mxu0 0.0
          %4936 = vmatprep.subr.mxu0 0.0
          %4937 = vmatpush2.msra.mxu0 0.0
          %4938 = vmatprep.subr.mxu0 0.0
          %4939 = vmatpush2.msra.mxu0 0.0
          %4940 = vmatprep.subr.mxu0 0.0
          %4941 = vmatpush2.msra.mxu0 0.0
          %4942 = vmatprep.subr.mxu0 0.0
          %4943 = vmatpush2.msra.mxu0 0.0
          %4944 = vmatprep.subr.mxu0 0.0
          %4945 = vmatpush2.msra.mxu0 0.0
          %4946 = vmatprep.subr.mxu0 0.0
          %4947 = vmatpush2.msra.mxu0 0.0
          %4948 = vmatprep.subr.mxu0 0.0
          %4949 = vmatpush2.msra.mxu0 0.0
          %4950 = vmatprep.mubr.f32.mxu0 0.0
          %4951 = vmatmul.mubr.f32.gmra.mxu0 %v4804
          %v4952 = vpop.f32.mrf.mxu0
          %v4953 = vadd.f32 0.0, %v4952
          %v4954 = vpop.f32.mrf.mxu0
          %v4955 = vadd.f32 0.0, %v4954
          %4956 = vmatprep.mubr.f32.mxu0 0.0
          %4957 = vmatmul.mubr.f32.gmra.mxu0 %v4807
          %v4958 = vpop.f32.mrf.mxu0
          %v4959 = vadd.f32 0.0, %v4958
          %v4960 = vpop.f32.mrf.mxu0
          %v4961 = vadd.f32 0.0, %v4960
          %4962 = vdwg.mxu0
          %4963 = vmatprep.subr.mxu0 0.0
          %4964 = vmatpush1.msra.mxu0 0.0
          %4965 = vmatprep.subr.mxu0 0.0
          %4966 = vmatpush1.msra.mxu0 0.0
          %4967 = vmatprep.subr.mxu0 0.0
          %4968 = vmatpush1.msra.mxu0 0.0
          %4969 = vmatprep.subr.mxu0 0.0
          %4970 = vmatpush1.msra.mxu0 0.0
          %4971 = vmatprep.subr.mxu0 0.0
          %4972 = vmatpush1.msra.mxu0 0.0
          %4973 = vmatprep.subr.mxu0 0.0
          %4974 = vmatpush1.msra.mxu0 0.0
          %4975 = vmatprep.subr.mxu0 0.0
          %4976 = vmatpush1.msra.mxu0 0.0
          %4977 = vmatprep.subr.mxu0 0.0
          %4978 = vmatpush1.msra.mxu0 0.0
          %4979 = vmatprep.subr.mxu0 %v4133
          %4980 = vmatpush1.msra.mxu0 %v4132
          %4981 = vmatprep.subr.mxu0 %v4126
          %4982 = vmatpush1.msra.mxu0 %v4125
          %4983 = vmatprep.subr.mxu0 %v4119
          %4984 = vmatpush1.msra.mxu0 %v4118
          %4985 = vmatprep.subr.mxu0 %v4112
          %4986 = vmatpush1.msra.mxu0 %v4111
          %4987 = vmatprep.subr.mxu0 %v4105
          %4988 = vmatpush1.msra.mxu0 %v4104
          %4989 = vmatprep.subr.mxu0 %v4098
          %4990 = vmatpush1.msra.mxu0 %v4097
          %4991 = vmatprep.subr.mxu0 %v4091
          %4992 = vmatpush1.msra.mxu0 %v4090
          %4993 = vmatprep.subr.mxu0 %v4084
          %4994 = vmatpush1.msra.mxu0 %v4083
          %4995 = vmatprep.subr.mxu0 0.0
          %4996 = vmatpush2.msra.mxu0 0.0
          %4997 = vmatprep.subr.mxu0 0.0
          %4998 = vmatpush2.msra.mxu0 0.0
          %4999 = vmatprep.subr.mxu0 0.0
          %5000 = vmatpush2.msra.mxu0 0.0
          %5001 = vmatprep.subr.mxu0 0.0
          %5002 = vmatpush2.msra.mxu0 0.0
          %5003 = vmatprep.subr.mxu0 0.0
          %5004 = vmatpush2.msra.mxu0 0.0
          %5005 = vmatprep.subr.mxu0 0.0
          %5006 = vmatpush2.msra.mxu0 0.0
          %5007 = vmatprep.subr.mxu0 0.0
          %5008 = vmatpush2.msra.mxu0 0.0
          %5009 = vmatprep.subr.mxu0 0.0
          %5010 = vmatpush2.msra.mxu0 0.0
          %5011 = vmatprep.subr.mxu0 0.0
          %5012 = vmatpush2.msra.mxu0 0.0
          %5013 = vmatprep.subr.mxu0 0.0
          %5014 = vmatpush2.msra.mxu0 0.0
          %5015 = vmatprep.subr.mxu0 0.0
          %5016 = vmatpush2.msra.mxu0 0.0
          %5017 = vmatprep.subr.mxu0 0.0
          %5018 = vmatpush2.msra.mxu0 0.0
          %5019 = vmatprep.subr.mxu0 0.0
          %5020 = vmatpush2.msra.mxu0 0.0
          %5021 = vmatprep.subr.mxu0 0.0
          %5022 = vmatpush2.msra.mxu0 0.0
          %5023 = vmatprep.subr.mxu0 0.0
          %5024 = vmatpush2.msra.mxu0 0.0
          %5025 = vmatprep.subr.mxu0 0.0
          %5026 = vmatpush2.msra.mxu0 0.0
          %5027 = vmatprep.mubr.f32.mxu0 0.0
          %5028 = vmatmul.mubr.f32.gmra.mxu0 %v4804
          %v5029 = vpop.f32.mrf.mxu0
          %v5030 = vadd.f32 0.0, %v5029
          %v5031 = vpop.f32.mrf.mxu0
          %v5032 = vadd.f32 0.0, %v5031
          %5033 = vmatprep.mubr.f32.mxu0 0.0
          %5034 = vmatmul.mubr.f32.gmra.mxu0 %v4807
          %v5035 = vpop.f32.mrf.mxu0
          %v5036 = vadd.f32 0.0, %v5035
          %v5037 = vpop.f32.mrf.mxu0
          %v5038 = vadd.f32 0.0, %v5037
          %5039 = vdwg.mxu0
          %5040 = vmatprep.subr.mxu0 0.0
          %5041 = vmatpush1.msra.mxu0 0.0
          %5042 = vmatprep.subr.mxu0 0.0
          %5043 = vmatpush1.msra.mxu0 0.0
          %5044 = vmatprep.subr.mxu0 0.0
          %5045 = vmatpush1.msra.mxu0 0.0
          %5046 = vmatprep.subr.mxu0 0.0
          %5047 = vmatpush1.msra.mxu0 0.0
          %5048 = vmatprep.subr.mxu0 0.0
          %5049 = vmatpush1.msra.mxu0 0.0
          %5050 = vmatprep.subr.mxu0 0.0
          %5051 = vmatpush1.msra.mxu0 0.0
          %5052 = vmatprep.subr.mxu0 0.0
          %5053 = vmatpush1.msra.mxu0 0.0
          %5054 = vmatprep.subr.mxu0 0.0
          %5055 = vmatpush1.msra.mxu0 0.0
          %5056 = vmatprep.subr.mxu0 0.0
          %5057 = vmatpush1.msra.mxu0 %v4134
          %5058 = vmatprep.subr.mxu0 0.0
          %5059 = vmatpush1.msra.mxu0 %v4127
          %5060 = vmatprep.subr.mxu0 0.0
          %5061 = vmatpush1.msra.mxu0 %v4120
          %5062 = vmatprep.subr.mxu0 0.0
          %5063 = vmatpush1.msra.mxu0 %v4113
          %5064 = vmatprep.subr.mxu0 0.0
          %5065 = vmatpush1.msra.mxu0 %v4106
          %5066 = vmatprep.subr.mxu0 0.0
          %5067 = vmatpush1.msra.mxu0 %v4099
          %5068 = vmatprep.subr.mxu0 0.0
          %5069 = vmatpush1.msra.mxu0 %v4092
          %5070 = vmatprep.subr.mxu0 0.0
          %5071 = vmatpush1.msra.mxu0 %v4085
          %5072 = vmatprep.subr.mxu0 0.0
          %5073 = vmatpush2.msra.mxu0 0.0
          %5074 = vmatprep.subr.mxu0 0.0
          %5075 = vmatpush2.msra.mxu0 0.0
          %5076 = vmatprep.subr.mxu0 0.0
          %5077 = vmatpush2.msra.mxu0 0.0
          %5078 = vmatprep.subr.mxu0 0.0
          %5079 = vmatpush2.msra.mxu0 0.0
          %5080 = vmatprep.subr.mxu0 0.0
          %5081 = vmatpush2.msra.mxu0 0.0
          %5082 = vmatprep.subr.mxu0 0.0
          %5083 = vmatpush2.msra.mxu0 0.0
          %5084 = vmatprep.subr.mxu0 0.0
          %5085 = vmatpush2.msra.mxu0 0.0
          %5086 = vmatprep.subr.mxu0 0.0
          %5087 = vmatpush2.msra.mxu0 0.0
          %5088 = vmatprep.subr.mxu0 0.0
          %5089 = vmatpush2.msra.mxu0 0.0
          %5090 = vmatprep.subr.mxu0 0.0
          %5091 = vmatpush2.msra.mxu0 0.0
          %5092 = vmatprep.subr.mxu0 0.0
          %5093 = vmatpush2.msra.mxu0 0.0
          %5094 = vmatprep.subr.mxu0 0.0
          %5095 = vmatpush2.msra.mxu0 0.0
          %5096 = vmatprep.subr.mxu0 0.0
          %5097 = vmatpush2.msra.mxu0 0.0
          %5098 = vmatprep.subr.mxu0 0.0
          %5099 = vmatpush2.msra.mxu0 0.0
          %5100 = vmatprep.subr.mxu0 0.0
          %5101 = vmatpush2.msra.mxu0 0.0
          %5102 = vmatprep.subr.mxu0 0.0
          %5103 = vmatpush2.msra.mxu0 0.0
          %5104 = vmatprep.mubr.f32.mxu0 0.0
          %5105 = vmatmul.mubr.f32.gmra.mxu0 %v4804
          %v5106 = vpop.f32.mrf.mxu0
          %v5107 = vadd.f32 0.0, %v5106
          %v5108 = vpop.f32.mrf.mxu0
          %5109 = vmatprep.mubr.f32.mxu0 0.0
          %5110 = vmatmul.mubr.f32.gmra.mxu0 %v4807
          %v5111 = vpop.f32.mrf.mxu0
          %v5112 = vadd.f32 0.0, %v5111
          %v5113 = vpop.f32.mrf.mxu0
          %5114 = vdwg.mxu0
          %5129 = vrot.lane.b32.xlu0 %v4876, 9
          %v5130 = vpop.permute.xlu0 %5129
          %5131 = vrot.lane.b32.xlu0 %v4878, 9
          %v5132 = vpop.permute.xlu0 %5131
          %5133 = vrot.lane.b32.xlu0 %v4953, 9
          %v5134 = vpop.permute.xlu0 %5133
          %5135 = vrot.lane.b32.xlu0 %v4955, 9
          %v5136 = vpop.permute.xlu0 %5135
          %5137 = vrot.lane.b32.xlu0 %v5030, 9
          %v5138 = vpop.permute.xlu0 %5137
          %5139 = vrot.lane.b32.xlu0 %v5032, 9
          %v5140 = vpop.permute.xlu0 %5139
          %5141 = vrot.lane.b32.xlu0 %v5107, 9
          %v5142 = vpop.permute.xlu0 %5141
          %5143 = vrot.lane.b32.xlu0 %v4882, 9
          %v5144 = vpop.permute.xlu0 %5143
          %5145 = vrot.lane.b32.xlu0 %v4884, 9
          %v5146 = vpop.permute.xlu0 %5145
          %5147 = vrot.lane.b32.xlu0 %v4959, 9
          %v5148 = vpop.permute.xlu0 %5147
          %5149 = vrot.lane.b32.xlu0 %v4961, 9
          %v5150 = vpop.permute.xlu0 %5149
          %5151 = vrot.lane.b32.xlu0 %v5036, 9
          %v5152 = vpop.permute.xlu0 %5151
          %5153 = vrot.lane.b32.xlu0 %v5038, 9
          %v5154 = vpop.permute.xlu0 %5153
          %5155 = vrot.lane.b32.xlu0 %v5112, 9
          %v5156 = vpop.permute.xlu0 %5155
          %v5157 = vsel %vm1375, %v5130, %v5132
          %v5158 = vsel %vm1375, %v5132, %v5134
          %v5159 = vsel %vm1375, %v5134, %v5136
          %v5160 = vsel %vm1375, %v5136, %v5138
          %v5161 = vsel %vm1375, %v5138, %v5140
          %v5162 = vsel %vm1375, %v5140, %v5142
          %v5163 = vsel %vm1375, %v5144, %v5146
          %v5164 = vsel %vm1375, %v5146, %v5148
          %v5165 = vsel %vm1375, %v5148, %v5150
          %v5166 = vsel %vm1375, %v5150, %v5152
          %v5167 = vsel %vm1375, %v5152, %v5154
          %v5168 = vsel %vm1375, %v5154, %v5156
          %v5173 = vsel %vm1375, 0.0, %v5130
          %v5174 = vsel %vm1375, 0.0, %v5144
          %v5175 = vsel %vm1390, %v5162, 0.0
          %v5176 = vsel %vm1390, %v5168, 0.0
          %v5177 = vld [vmem:[%s13] ss:$8 sm:$0xf]
          %v5178 = vld [vmem:[%s13] ss:$8 sm:$0x70]
          %v5179 = vor.u32 %v5177, %v5178
          %v5182 = vcombine.low %v5173, %v5157
          %v5183 = vcombine.low %v5158, %v5159
          %v5184 = vcombine.low %v5160, %v5161
          %v5186 = vunpack.c.l.s4 1966171168
          %v5187 = vunpack.c.0.s8 %v5186
          %v5188 = vlaneseq
          %v5189 = vshrl.u32 %v5188, 7
          %v5190 = vsub.s32 %v5187, %v5189
          %v5191 = vrot.slane %v5182, %v5190
          %v5193 = vunpack.c.l.s4 1966171168
          %v5194 = vunpack.c.0.s8 %v5193
          %v5195 = vlaneseq
          %v5196 = vshrl.u32 %v5195, 7
          %v5197 = vsub.s32 %v5194, %v5196
          %v5198 = vrot.slane %v5183, %v5197
          %v5200 = vunpack.c.l.s4 1966171168
          %v5201 = vunpack.c.0.s8 %v5200
          %v5202 = vlaneseq
          %v5203 = vshrl.u32 %v5202, 7
          %v5204 = vsub.s32 %v5201, %v5203
          %v5205 = vrot.slane %v5184, %v5204
          %v5207 = vunpack.c.l.s4 1966171168
          %v5208 = vunpack.c.0.s8 %v5207
          %v5209 = vlaneseq
          %v5210 = vshrl.u32 %v5209, 7
          %v5211 = vsub.s32 %v5208, %v5210
          %v5212 = vrot.slane %v5175, %v5211
          %v5213 = vcombine.low %v5191, %v5198
          %v5214 = vcombine.low %v5205, %v5212
          %v5216 = vunpack.c.l.s4 1966171168
          %v5217 = vunpack.c.0.s8 %v5216
          %v5218 = vlaneseq
          %v5219 = vshrl.u32 %v5218, 7
          %v5220 = vsub.s32 %v5217, %v5219
          %v5221 = vrot.slane %v5213, %v5220
          %v5223 = vunpack.c.l.s4 1966171168
          %v5224 = vunpack.c.0.s8 %v5223
          %v5225 = vlaneseq
          %v5226 = vshrl.u32 %v5225, 7
          %v5227 = vsub.s32 %v5224, %v5226
          %v5228 = vrot.slane %v5214, %v5227
          %v5229 = vcombine.low %v5221, %v5228
          %v5231 = vmul.f32 %v5179, %v5229
          %v5232 = vadd.f32 %v5231, 0.0
          %v5233 = vld [vmem:[%s1438] ss:$8 sm:$0xf]
          %v5234 = vld [vmem:[%s1438] ss:$8 sm:$0x70]
          %v5235 = vor.u32 %v5233, %v5234
          %v5236 = vcombine.high %v5191, %v5198
          %v5237 = vcombine.high %v5205, %v5212
          %v5239 = vunpack.c.l.s4 1966171168
          %v5240 = vunpack.c.0.s8 %v5239
          %v5241 = vlaneseq
          %v5242 = vshrl.u32 %v5241, 7
          %v5243 = vsub.s32 %v5240, %v5242
          %v5244 = vrot.slane %v5236, %v5243
          %v5246 = vunpack.c.l.s4 1966171168
          %v5247 = vunpack.c.0.s8 %v5246
          %v5248 = vlaneseq
          %v5249 = vshrl.u32 %v5248, 7
          %v5250 = vsub.s32 %v5247, %v5249
          %v5251 = vrot.slane %v5237, %v5250
          %v5252 = vcombine.low %v5244, %v5251
          %5253 = vrot.lane.b32.xlu0 %v5252, 127
          %v5254 = vpop.permute.xlu0 %5253
          %v5255 = vrot.slane %v5254, 1
          %v5256 = vsel %vm2009, %v5254, %v5255
          %v5258 = vmul.f32 %v5235, %v5256
          %v5259 = vadd.f32 %v5232, %v5258
          %v5260 = vld [vmem:[%s1506] ss:$8 sm:$0xf]
          %v5261 = vld [vmem:[%s1506] ss:$8 sm:$0x70]
          %v5262 = vor.u32 %v5260, %v5261
          %v5263 = vcombine.high %v5221, %v5228
          %5264 = vrot.lane.b32.xlu0 %v5263, 126
          %v5265 = vpop.permute.xlu0 %5264
          %v5266 = vrot.slane %v5265, 1
          %v5267 = vsel %vm2051, %v5265, %v5266
          %v5269 = vmul.f32 %v5262, %v5267
          %v5270 = vadd.f32 %v5259, %v5269
          %v5271 = vld [vmem:[%s1574] ss:$8 sm:$0xf]
          %v5272 = vld [vmem:[%s1574] ss:$8 sm:$0x70]
          %v5273 = vor.u32 %v5271, %v5272
          %v5274 = vcombine.high %v5244, %v5251
          %5275 = vrot.lane.b32.xlu0 %v5274, 120
          %v5276 = vpop.permute.xlu0 %5275
          %v5277 = vrot.slane %v5276, 1
          %v5278 = vsel %vm2093, %v5276, %v5277
          %v5280 = vmul.f32 %v5273, %v5278
          %v5281 = vadd.f32 %v5270, %v5280
          %v5282 = vld [vmem:[%s1642] ss:$8 sm:$0xf]
          %v5283 = vld [vmem:[%s1642] ss:$8 sm:$0x70]
          %v5284 = vor.u32 %v5282, %v5283
          %v5285 = vcombine.high %v5173, %v5157
          %v5286 = vcombine.high %v5158, %v5159
          %v5287 = vcombine.high %v5160, %v5161
          %v5288 = vcombine.high %v5175, %v5175
          %v5290 = vunpack.c.l.s4 1966171168
          %v5291 = vunpack.c.0.s8 %v5290
          %v5292 = vlaneseq
          %v5293 = vshrl.u32 %v5292, 7
          %v5294 = vsub.s32 %v5291, %v5293
          %v5295 = vrot.slane %v5285, %v5294
          %v5297 = vunpack.c.l.s4 1966171168
          %v5298 = vunpack.c.0.s8 %v5297
          %v5299 = vlaneseq
          %v5300 = vshrl.u32 %v5299, 7
          %v5301 = vsub.s32 %v5298, %v5300
          %v5302 = vrot.slane %v5286, %v5301
          %v5304 = vunpack.c.l.s4 1966171168
          %v5305 = vunpack.c.0.s8 %v5304
          %v5306 = vlaneseq
          %v5307 = vshrl.u32 %v5306, 7
          %v5308 = vsub.s32 %v5305, %v5307
          %v5309 = vrot.slane %v5287, %v5308
          %v5311 = vunpack.c.l.s4 1966171168
          %v5312 = vunpack.c.0.s8 %v5311
          %v5313 = vlaneseq
          %v5314 = vshrl.u32 %v5313, 7
          %v5315 = vsub.s32 %v5312, %v5314
          %v5316 = vrot.slane %v5288, %v5315
          %v5317 = vcombine.low %v5295, %v5302
          %v5318 = vcombine.low %v5309, %v5316
          %v5320 = vunpack.c.l.s4 1966171168
          %v5321 = vunpack.c.0.s8 %v5320
          %v5322 = vlaneseq
          %v5323 = vshrl.u32 %v5322, 7
          %v5324 = vsub.s32 %v5321, %v5323
          %v5325 = vrot.slane %v5317, %v5324
          %v5327 = vunpack.c.l.s4 1966171168
          %v5328 = vunpack.c.0.s8 %v5327
          %v5329 = vlaneseq
          %v5330 = vshrl.u32 %v5329, 7
          %v5331 = vsub.s32 %v5328, %v5330
          %v5332 = vrot.slane %v5318, %v5331
          %v5333 = vcombine.low %v5325, %v5332
          %5334 = vrot.lane.b32.xlu0 %v5333, 119
          %v5335 = vpop.permute.xlu0 %5334
          %v5336 = vrot.slane %v5335, 1
          %v5337 = vsel %vm2128, %v5335, %v5336
          %v5339 = vmul.f32 %v5284, %v5337
          %v5340 = vadd.f32 %v5281, %v5339
          %v5341 = vld [vmem:[%s1709] ss:$8 sm:$0xf]
          %v5342 = vld [vmem:[%s1709] ss:$8 sm:$0x70]
          %v5343 = vor.u32 %v5341, %v5342
          %v5344 = vcombine.high %v5295, %v5302
          %v5345 = vcombine.high %v5309, %v5316
          %v5347 = vunpack.c.l.s4 1966171168
          %v5348 = vunpack.c.0.s8 %v5347
          %v5349 = vlaneseq
          %v5350 = vshrl.u32 %v5349, 7
          %v5351 = vsub.s32 %v5348, %v5350
          %v5352 = vrot.slane %v5344, %v5351
          %v5354 = vunpack.c.l.s4 1966171168
          %v5355 = vunpack.c.0.s8 %v5354
          %v5356 = vlaneseq
          %v5357 = vshrl.u32 %v5356, 7
          %v5358 = vsub.s32 %v5355, %v5357
          %v5359 = vrot.slane %v5345, %v5358
          %v5360 = vcombine.low %v5352, %v5359
          %5361 = vrot.lane.b32.xlu0 %v5360, 118
          %v5362 = vpop.permute.xlu0 %5361
          %v5363 = vrot.slane %v5362, 1
          %v5364 = vsel %vm2170, %v5362, %v5363
          %v5366 = vmul.f32 %v5343, %v5364
          %v5367 = vadd.f32 %v5340, %v5366
          %v5368 = vld [vmem:[%s1777] ss:$8 sm:$0xf]
          %v5369 = vld [vmem:[%s1777] ss:$8 sm:$0x70]
          %v5370 = vor.u32 %v5368, %v5369
          %v5371 = vcombine.high %v5325, %v5332
          %5372 = vrot.lane.b32.xlu0 %v5371, 112
          %v5373 = vpop.permute.xlu0 %5372
          %v5374 = vrot.slane %v5373, 1
          %v5375 = vsel %vm2212, %v5373, %v5374
          %v5377 = vmul.f32 %v5370, %v5375
          %v5378 = vadd.f32 %v5367, %v5377
          %v5379 = vld [vmem:[%s1845] ss:$8 sm:$0xf]
          %v5380 = vld [vmem:[%s1845] ss:$8 sm:$0x70]
          %v5381 = vor.u32 %v5379, %v5380
          %v5382 = vcombine.high %v5352, %v5359
          %5383 = vrot.lane.b32.xlu0 %v5382, 111
          %v5384 = vpop.permute.xlu0 %5383
          %v5385 = vrot.slane %v5384, 1
          %v5386 = vsel %vm2254, %v5384, %v5385
          %v5388 = vmul.f32 %v5381, %v5386
          %v5389 = vadd.f32 %v5378, %v5388
          %v5390 = vld [vmem:[%s1913] ss:$8 sm:$0xf]
          %v5391 = vld [vmem:[%s1913] ss:$8 sm:$0x70]
          %v5392 = vor.u32 %v5390, %v5391
          %v5395 = vcombine.low %v5174, %v5163
          %v5396 = vcombine.low %v5164, %v5165
          %v5397 = vcombine.low %v5166, %v5167
          %v5399 = vunpack.c.l.s4 1966171168
          %v5400 = vunpack.c.0.s8 %v5399
          %v5401 = vlaneseq
          %v5402 = vshrl.u32 %v5401, 7
          %v5403 = vsub.s32 %v5400, %v5402
          %v5404 = vrot.slane %v5395, %v5403
          %v5406 = vunpack.c.l.s4 1966171168
          %v5407 = vunpack.c.0.s8 %v5406
          %v5408 = vlaneseq
          %v5409 = vshrl.u32 %v5408, 7
          %v5410 = vsub.s32 %v5407, %v5409
          %v5411 = vrot.slane %v5396, %v5410
          %v5413 = vunpack.c.l.s4 1966171168
          %v5414 = vunpack.c.0.s8 %v5413
          %v5415 = vlaneseq
          %v5416 = vshrl.u32 %v5415, 7
          %v5417 = vsub.s32 %v5414, %v5416
          %v5418 = vrot.slane %v5397, %v5417
          %v5420 = vunpack.c.l.s4 1966171168
          %v5421 = vunpack.c.0.s8 %v5420
          %v5422 = vlaneseq
          %v5423 = vshrl.u32 %v5422, 7
          %v5424 = vsub.s32 %v5421, %v5423
          %v5425 = vrot.slane %v5176, %v5424
          %v5426 = vcombine.low %v5404, %v5411
          %v5427 = vcombine.low %v5418, %v5425
          %v5429 = vunpack.c.l.s4 1966171168
          %v5430 = vunpack.c.0.s8 %v5429
          %v5431 = vlaneseq
          %v5432 = vshrl.u32 %v5431, 7
          %v5433 = vsub.s32 %v5430, %v5432
          %v5434 = vrot.slane %v5426, %v5433
          %v5436 = vunpack.c.l.s4 1966171168
          %v5437 = vunpack.c.0.s8 %v5436
          %v5438 = vlaneseq
          %v5439 = vshrl.u32 %v5438, 7
          %v5440 = vsub.s32 %v5437, %v5439
          %v5441 = vrot.slane %v5427, %v5440
          %v5442 = vcombine.low %v5434, %v5441
          %5443 = vrot.lane.b32.xlu0 %v5442, 110
          %v5444 = vpop.permute.xlu0 %5443
          %v5445 = vrot.slane %v5444, 1
          %v5446 = vsel %vm2289, %v5444, %v5445
          %v5448 = vmul.f32 %v5392, %v5446
          %v5449 = vadd.f32 %v5389, %v5448
          %v5450 = vld [vmem:[#allocation5] sm:$0x1]
          %5452 = vset.pattern.permute.xlu0 0
          %5453 = vperm.xlu0 %5452, %v5450
          %v5454 = vpop.permute.xlu0 %5453
          %v5456 = vlaneseq
          %v5457 = vshrl.u32 %v5456, 7
          %v5458 = vsub.s32 0, %v5457
          %v5459 = vrot.slane %v5454, %v5458
          %v5460 = vadd.f32 %v5449, %v5459
          %s5461 = scalar_lea.vmem [#allocation6], 7
          %5462 = vst.msk [vmem:[%s5461] sm:$0x7f] %vm4799, %v5460
        $region76: #{tpu_custom_call.1} parent=71 // pred_fallthru
          _
        // Predicated region
        $region77: #{tpu_custom_call.1} parent=71 // pred_check
          %p5463 = pneg %p332
        $region78: #{tpu_custom_call.1} parent=71 // pred_check_branch
          %5465 = sbr.rel (%p5463) target = $region80
        $region79: #{tpu_custom_call.1} parent=71 // pred_region
          %s5467 = ssub.s32 224, 224
          %5468 = vsyncadd [#allocation7], %s5467
          %s5469 = sshll.u32 [#allocation6], 4
          %s5470 = int_to_ptr.vmem [resolvable:$true] %s5469
          %5475 = dma.vmem_to_hbm [thread:$0]  %s5470, 224, %s14, [#allocation7], 112, 112, 7
        $region80: #{tpu_custom_call.1} parent=71 // pred_fallthru
          _
        // Predicated region
        $region81: #{tpu_custom_call.1} parent=71 // pred_check
          %p5476 = pneg %p332
        $region82: #{tpu_custom_call.1} parent=71 // pred_check_branch
          %5478 = sbr.rel (%p5476) target = $region84
        $region83: #{tpu_custom_call.1} parent=71 // pred_region
          %5479 = dma.done [#allocation7], 224
        $region84: #{tpu_custom_call.1} parent=71 // pred_fallthru
          _
      $region72: #{tpu_custom_call.1} parent=5 // pred_fallthru
        _
      %p5480 = scmp.le.s32.totalorder 2, %s29
      // Predicated region
      $region85: #{tpu_custom_call.1} parent=5 // pred_check
        %p5481 = pneg %p5480
      $region86: #{tpu_custom_call.1} parent=5 // pred_check_branch
        %5483 = sbr.rel (%p5481) target = $region88
      $region87: #{tpu_custom_call.1} parent=5 // pred_region
        %s5484 = ssub.s32 %s29, 2
      $region88: #{tpu_custom_call.1} parent=5 // pred_fallthru
        _
    $region6: #{tpu_custom_call.1} parent=1 // loop_footer
      %s33 = sadd.s32 1, %s29
    $region7: #{tpu_custom_call.1} parent=1 // loop_footer_branch
      %28 = sbr.rel target = $region3
    $region8: #{tpu_custom_call.1} parent=1 // loop_exit
      _
    %5485 = vsyncpa [#allocation7], 1
    %s5486 = scalar_lea.sflag [#allocation7], 1
    %5487 = vsyncpa %s5486, 1

</llo_original>
